<compile_context>
chip_gen: v7x
topology: tpu7x:2x2x1
jax: 0.10.0
libtpu: 0.0.40
codegen_flags: <defaults>
</compile_context>

<pallas_src>
import functools

import jax
import jax.numpy as jnp
from jax.experimental import pallas as pl
from jax.experimental.pallas import tpu as pltpu


# ----------------------------------------------------------------------------
# helpers
# ----------------------------------------------------------------------------
def _round_up(x, m):
    return ((x + m - 1) // m) * m


def _make_knots(grid_size, spline_order, grid_range=(-1.0, 1.0)):
    h = (grid_range[1] - grid_range[0]) / grid_size
    return tuple(float(grid_range[0] + i * h)
                 for i in range(-spline_order, grid_size + spline_order + 1))


# ----------------------------------------------------------------------------
# Pallas kernel #1: SiLU + B-spline basis expansion (channel-major, lane-dense)
# input  x2d   : (Cin, M)            M = B*H*W on lanes
# output feats : (Cin*(1+nb), M)     rows = [SiLU ch 0..Cin) ; basis m rows ...]
# ----------------------------------------------------------------------------
def _features_kernel(x_ref, feat_ref, *, knots, spline_order):
    x = x_ref[...]                                         # (Cin, TM) f32
    # SiLU: sigmoid via EUP reciprocal (off the VALU critical path)
    silu = x * pl.reciprocal(1.0 + jnp.exp(-x), approx=True)
    g = knots                                              # python floats
    # degree-0 bases
    b = [jnp.where((x >= g[m]) & (x < g[m + 1]), 1.0, 0.0).astype(jnp.float32)
         for m in range(len(g) - 1)]
    # Cox-de Boor recursion; knot differences folded into compile-time reciprocals
    for k in range(1, spline_order + 1):
        b = [(x - g[m]) * (1.0 / (g[m + k] - g[m])) * b[m]
             + (g[m + k + 1] - x) * (1.0 / (g[m + k + 1] - g[m + 1])) * b[m + 1]
             for m in range(len(g) - 1 - k)]
    # single full-tile store; bf16 output halves downstream HBM traffic
    feat_ref[...] = jnp.concatenate([silu] + b, axis=0).astype(feat_ref.dtype)


def silu_and_bsplines(x2d, knots, spline_order, nb, tile_m=256):
    Cin, M = x2d.shape
    Cp = Cin * (1 + nb)
    Mp = _round_up(M, tile_m)
    if Mp > M:
        x2d = jnp.pad(x2d, ((0, 0), (0, Mp - M)))
    kern = functools.partial(_features_kernel, knots=knots,
                             spline_order=spline_order)
    feats = pl.pallas_call(
        kern,
        out_shape=jax.ShapeDtypeStruct((Cp, Mp), jnp.bfloat16),
        grid=(Mp // tile_m,),
        in_specs=[pl.BlockSpec((Cin, tile_m), lambda i: (0, i))],
        out_specs=pl.BlockSpec((Cp, tile_m), lambda i: (0, i)),
        compiler_params=pltpu.CompilerParams(
            dimension_semantics=("parallel",)),
    )(x2d)
    return feats[:, :M]


# ----------------------------------------------------------------------------
# Pallas kernel #2: MXU matmul, transposed orientation (spatial M on lanes)
#   out (N, M) = w (N, Kd) @ pats (Kd, M)
# ----------------------------------------------------------------------------
def _matmul_kernel(w_ref, p_ref, o_ref, acc_ref):
    @pl.when(pl.program_id(1) == 0)
    def _():
        acc_ref[...] = jnp.zeros_like(acc_ref)

    acc_ref[...] += jnp.dot(w_ref[...], p_ref[...],
                            preferred_element_type=jnp.float32)

    @pl.when(pl.program_id(1) == pl.num_programs(1) - 1)
    def _():
        o_ref[...] = acc_ref[...]


def pallas_matmul_T(w, pats, tile_m=128, tile_k=512):
    N, Kd = w.shape
    _, M = pats.shape
    Mp = _round_up(M, tile_m)
    if Kd <= tile_k:                    # small contraction: single K block
        tk, Kp = Kd, Kd
    else:                               # tile K, accumulate in VMEM scratch
        tk = tile_k
        Kp = _round_up(Kd, tk)
    wb = w.astype(jnp.bfloat16)
    pb = pats.astype(jnp.bfloat16)
    if Kp > Kd:
        wb = jnp.pad(wb, ((0, 0), (0, Kp - Kd)))
        pb = jnp.pad(pb, ((0, Kp - Kd), (0, 0)))
    if Mp > M:
        pb = jnp.pad(pb, ((0, 0), (0, Mp - M)))
    nk = Kp // tk
    out = pl.pallas_call(
        _matmul_kernel,
        out_shape=jax.ShapeDtypeStruct((N, Mp), jnp.float32),
        grid=(Mp // tile_m, nk),
        in_specs=[pl.BlockSpec((N, tk), lambda i, k: (0, k)),
                  pl.BlockSpec((tk, tile_m), lambda i, k: (k, i))],
        out_specs=pl.BlockSpec((N, tile_m), lambda i, k: (0, i)),
        scratch_shapes=[pltpu.VMEM((N, tile_m), jnp.float32)],
        compiler_params=pltpu.CompilerParams(
            dimension_semantics=("parallel", "arbitrary")),
    )(wb, pb)
    return out[:, :M]


# ----------------------------------------------------------------------------
# weight preparation (done ONCE at parameter-load time)
# Builds the phase-decomposed matmul weight:
#   Wz[(rh, rw, co), (uh, uw, c')] so that
#   y[oh, ow] = sum_{u, c'} feat_pad[c', qh+uh, qw+uw] * Wz[...],
#   with (qh, rh) = divmod(oh + p, s) and kernel tap kh = rh + s*(J-1-uh).
# ----------------------------------------------------------------------------
def _build_phase_weight(w_base, w_spline, *, K, s, d, grid_size, spline_order):
    Cin, Cout = w_base.shape[0], w_base.shape[1]
    nb = grid_size + spline_order
    # reorder spline in-channels from PyTorch (c, m) to the kernel's (m, c) rows
    w_sp = w_spline.reshape(Cin, nb, Cout, K, K)
    w_sp = jnp.transpose(w_sp, (1, 0, 2, 3, 4)).reshape(Cin * nb, Cout, K, K)
    w_comb = jnp.concatenate([w_base, w_sp], axis=0)       # (Cp, Cout, K, K)
    Cp = Cin * (1 + nb)

    Ke = d * (K - 1) + 1                                   # dilated kernel extent
    J = -(-Ke // s)                                        # taps per phase
    # embed into the dilated index space, pad to s*J so (r + s*j) indexing is safe
    we = jnp.zeros((Cp, Cout, Ke, Ke), w_comb.dtype).at[:, :, ::d, ::d].set(w_comb)
    we = jnp.pad(we, ((0, 0), (0, 0), (0, s * J - Ke), (0, s * J - Ke)))
    we = we.reshape(Cp, Cout, J, s, J, s)                  # (c', co, jh, rh, jw, rw)
    we = jnp.flip(we, axis=(2, 4))                         # j -> u = J-1-j
    wz = jnp.transpose(we, (3, 5, 1, 2, 4, 0))             # (rh, rw, co, uh, uw, c')
    return wz.reshape(s * s * Cout, J * J * Cp).astype(jnp.bfloat16)


def prepare_decoder_params(params, cfg):
    prepped = []
    for (w_base, w_spline), K, s in zip(params, cfg['kernel_sizes'],
                                        cfg['strides']):
        prepped.append(_build_phase_weight(
            w_base, w_spline, K=K, s=s, d=cfg['dilation'],
            grid_size=cfg['grid_size'], spline_order=cfg['spline_order']))
    return prepped


# ----------------------------------------------------------------------------
# One KAN ConvTranspose layer (forward), channel-major (C, B, H, W) layout
# ----------------------------------------------------------------------------
def kan_conv_transpose_layer(x_cbhw, wz, *, kernel_size, stride, padding,
                             output_padding, dilation, grid_size, spline_order):
    Cin, B, H, W = x_cbhw.shape
    K, s, p, op, d = kernel_size, stride, padding, output_padding, dilation
    nb = grid_size + spline_order
    Cp = Cin * (1 + nb)
    Cout = wz.shape[0] // (s * s)
    knots = _make_knots(grid_size, spline_order)

    # Pallas kernel #1: SiLU + B-spline features (lane-dense, tiled, parallel)
    feats = silu_and_bsplines(x_cbhw.reshape(Cin, B * H * W), knots,
                              spline_order, nb)
    feats = feats.reshape(Cp, B, H, W)

    # Phase (sub-pixel) decomposition of the stride-s transposed convolution.
    Ke = d * (K - 1) + 1
    J = -(-Ke // s)
    Hout = (H - 1) * s - 2 * p + d * (K - 1) + op + 1
    Wout = (W - 1) * s - 2 * p + d * (K - 1) + op + 1
    Qh = (Hout - 1 + p) // s + 1          # pre-shuffle spatial extent
    Qw = (Wout - 1 + p) // s + 1
    fpad = jnp.pad(feats, ((0, 0), (0, 0),
                           (J - 1, max(0, Qh - H)),
                           (J - 1, max(0, Qw - W))))
    cols = [fpad[:, :, uh:uh + Qh, uw:uw + Qw]            # glue: data movement
            for uh in range(J) for uw in range(J)]
    patches = jnp.concatenate(cols, axis=0).reshape(J * J * Cp, B * Qh * Qw)

    # Pallas kernel #2: MXU matmul -> (s*s*Cout, B*Qh*Qw), lane-dense output
    z = pallas_matmul_T(wz, patches)
    z = z.reshape(s, s, Cout, B, Qh, Qw)
    # depth-to-space (phase interleave) + crop: small tensor, XLA glue
    y = jnp.transpose(z, (2, 3, 4, 0, 5, 1)).reshape(Cout, B, s * Qh, s * Qw)
    return y[:, :, p:p + Hout, p:p + Wout]


# ----------------------------------------------------------------------------
# KAN_decoder forward (NCHW in / NCHW out, matching the PyTorch module)
# ----------------------------------------------------------------------------
def kan_decoder_forward(x_nchw, prepped, cfg):
    x = jnp.transpose(x_nchw, (1, 0, 2, 3))                # NCHW -> C,B,H,W
    for wz, K, s, p, op in zip(prepped, cfg['kernel_sizes'], cfg['strides'],
                               cfg['paddings'], cfg['output_paddings']):
        x = kan_conv_transpose_layer(
            x, wz, kernel_size=K, stride=s, padding=p, output_padding=op,
            dilation=cfg['dilation'], grid_size=cfg['grid_size'],
            spline_order=cfg['spline_order'])
    return jnp.transpose(x, (1, 0, 2, 3))                  # C,B,H,W -> NCHW


# ----------------------------------------------------------------------------
# pure-JAX reference (for verification only)
# ----------------------------------------------------------------------------
def _ref_layer(x_nhwc, w_base, w_spline, *, kernel_size, stride, padding,
               output_padding, dilation, grid_size, spline_order):
    K, s, p, op, d = kernel_size, stride, padding, output_padding, dilation
    nb = grid_size + spline_order
    knots = jnp.asarray(_make_knots(grid_size, spline_order), jnp.float32)
    act = x_nhwc * jax.nn.sigmoid(x_nhwc)
    xe = x_nhwc[..., None]
    b = ((xe >= knots[:-1]) & (xe < knots[1:])).astype(jnp.float32)
    for k in range(1, spline_order + 1):
        b = ((xe - knots[:-(k + 1)]) / (knots[k:-1] - knots[:-(k + 1)])) * b[..., :-1] \
            + ((knots[k + 1:] - xe) / (knots[k + 1:] - knots[1:-k])) * b[..., 1:]
    B, H, W, Cin = x_nhwc.shape
    bases = b.reshape(B, H, W, Cin * nb)

    def convt(t, w_pt):
        w = jnp.flip(jnp.transpose(w_pt, (2, 3, 0, 1)), axis=(0, 1))  # HWIO flipped
        return jax.lax.conv_general_dilated(
            t, w, window_strides=(1, 1),
            padding=[(d * (K - 1) - p, d * (K - 1) - p + op)] * 2,
            lhs_dilation=(s, s), rhs_dilation=(d, d),
            dimension_numbers=('NHWC', 'HWIO', 'NHWC'),
            precision=jax.lax.Precision.HIGHEST)

    return convt(act, w_base) + convt(bases, w_spline)


def _ref_decoder(x_nchw, params, cfg):
    x = jnp.transpose(x_nchw, (0, 2, 3, 1))
    for (w_base, w_spline), K, s, p, op in zip(params, cfg['kernel_sizes'],
                                               cfg['strides'], cfg['paddings'],
                                               cfg['output_paddings']):
        x = _ref_layer(x, w_base, w_spline, kernel_size=K, stride=s, padding=p,
                       output_padding=op, dilation=cfg['dilation'],
                       grid_size=cfg['grid_size'],
                       spline_order=cfg['spline_order'])
    return jnp.transpose(x, (0, 3, 1, 2))


# ----------------------------------------------------------------------------
if __name__ == "__main__":
    cfg = dict(
        layers_hidden=[4, 8, 3],
        kernel_sizes=[3, 3],
        strides=[2, 2],
        paddings=[1, 1],
        output_paddings=[1, 1],
        groups=1,                     # only groups=1 supported here
        grid_size=5,
        spline_order=3,
        dilation=1,
    )
    assert cfg['groups'] == 1
    nb = cfg['grid_size'] + cfg['spline_order']

    key = jax.random.PRNGKey(0)
    k_x, key = jax.random.split(key)
    # input latent feature map, NCHW like the PyTorch module expects
    x = jax.random.normal(k_x, (2, cfg['layers_hidden'][0], 16, 16), jnp.float32)

    # deterministic synthetic weights (PyTorch ConvTranspose2d layout:
    # (in_channels, out_channels, kH, kW); spline conv has in_channels*nb inputs)
    params = []
    for cin, cout, K in zip(cfg['layers_hidden'][:-1], cfg['layers_hidden'][1:],
                            cfg['kernel_sizes']):
        kb, ks, key = jax.random.split(key, 3)
        scale_b = 1.0 / (cin * K * K) ** 0.5
        scale_s = 1.0 / (cin * nb * K * K) ** 0.5
        w_base = scale_b * jax.random.normal(kb, (cin, cout, K, K), jnp.float32)
        w_spline = scale_s * jax.random.normal(ks, (cin * nb, cout, K, K),
                                               jnp.float32)
        params.append((w_base, w_spline))

    # fold flip/reorder/phase-split of the weights once, at load time
    prepped = prepare_decoder_params(params, cfg)

    fwd = jax.jit(lambda inp, wz: kan_decoder_forward(inp, wz, cfg))
    out = jax.block_until_ready(fwd(x, prepped))

    ref = jax.block_until_ready(_ref_decoder(x, params, cfg))
    assert out.shape == ref.shape == (2, cfg['layers_hidden'][-1], 64, 64), out.shape
    if not jnp.allclose(out, ref, atol=2e-2, rtol=2e-2):
        raise AssertionError("Pallas KAN_decoder output mismatch vs JAX reference")

    print("KERNEL_OK")
</pallas_src>

<mosaic_0001>
module attributes {stable_mosaic.version = 11 : i64} {
  func.func @_features_kernel(%arg0: i32, %arg1: memref<4x256xf32, #tpu.memory_space<vmem>>, %arg2: memref<36x256xbf16, #tpu.memory_space<vmem>>) attributes {dimension_semantics = [#tpu.dimension_semantics<parallel>], iteration_bounds = array<i64: 2>, scalar_prefetch = 0 : i64, scratch_operands = 0 : i64, tpu.core_type = #tpu.core_type<tc>, window_params = [{transform_indices = @transform_0, window_bounds = array<i64: 4, 256>}, {transform_indices = @transform_1, window_bounds = array<i64: 36, 256>}]} {
    %c0 = arith.constant 0 : index
    %c0_0 = arith.constant 0 : index
    %0 = vector.load %arg1[%c0, %c0_0] : memref<4x256xf32, #tpu.memory_space<vmem>>, vector<4x256xf32>
    %cst = arith.constant 0.000000e+00 : f32
    %1 = vector.broadcast %cst : f32 to vector<4x256xf32>
    %2 = arith.subf %1, %0 : vector<4x256xf32>
    %3 = math.exp %2 : vector<4x256xf32>
    %cst_1 = arith.constant 1.000000e+00 : f32
    %4 = vector.broadcast %cst_1 : f32 to vector<4x256xf32>
    %5 = arith.addf %4, %3 : vector<4x256xf32>
    %6 = tpu.reciprocal %5 {approx = true} : vector<4x256xf32> -> vector<4x256xf32>
    %7 = arith.mulf %0, %6 : vector<4x256xf32>
    %cst_2 = arith.constant -2.200000e+00 : f32
    %8 = vector.broadcast %cst_2 : f32 to vector<4x256xf32>
    %9 = arith.cmpf oge, %0, %8 : vector<4x256xf32>
    %cst_3 = arith.constant -1.800000e+00 : f32
    %10 = vector.broadcast %cst_3 : f32 to vector<4x256xf32>
    %11 = arith.cmpf olt, %0, %10 : vector<4x256xf32>
    %12 = arith.andi %9, %11 : vector<4x256xi1>
    %cst_4 = arith.constant 1.000000e+00 : f32
    %cst_5 = arith.constant 0.000000e+00 : f32
    %13 = vector.broadcast %cst_4 : f32 to vector<4x256xf32>
    %14 = vector.broadcast %cst_5 : f32 to vector<4x256xf32>
    %15 = arith.select %12, %13, %14 : vector<4x256xi1>, vector<4x256xf32>
    %cst_6 = arith.constant -1.800000e+00 : f32
    %16 = vector.broadcast %cst_6 : f32 to vector<4x256xf32>
    %17 = arith.cmpf oge, %0, %16 : vector<4x256xf32>
    %cst_7 = arith.constant -1.400000e+00 : f32
    %18 = vector.broadcast %cst_7 : f32 to vector<4x256xf32>
    %19 = arith.cmpf olt, %0, %18 : vector<4x256xf32>
    %20 = arith.andi %17, %19 : vector<4x256xi1>
    %cst_8 = arith.constant 1.000000e+00 : f32
    %cst_9 = arith.constant 0.000000e+00 : f32
    %21 = vector.broadcast %cst_8 : f32 to vector<4x256xf32>
    %22 = vector.broadcast %cst_9 : f32 to vector<4x256xf32>
    %23 = arith.select %20, %21, %22 : vector<4x256xi1>, vector<4x256xf32>
    %cst_10 = arith.constant -1.400000e+00 : f32
    %24 = vector.broadcast %cst_10 : f32 to vector<4x256xf32>
    %25 = arith.cmpf oge, %0, %24 : vector<4x256xf32>
    %cst_11 = arith.constant -1.000000e+00 : f32
    %26 = vector.broadcast %cst_11 : f32 to vector<4x256xf32>
    %27 = arith.cmpf olt, %0, %26 : vector<4x256xf32>
    %28 = arith.andi %25, %27 : vector<4x256xi1>
    %cst_12 = arith.constant 1.000000e+00 : f32
    %cst_13 = arith.constant 0.000000e+00 : f32
    %29 = vector.broadcast %cst_12 : f32 to vector<4x256xf32>
    %30 = vector.broadcast %cst_13 : f32 to vector<4x256xf32>
    %31 = arith.select %28, %29, %30 : vector<4x256xi1>, vector<4x256xf32>
    %cst_14 = arith.constant -1.000000e+00 : f32
    %32 = vector.broadcast %cst_14 : f32 to vector<4x256xf32>
    %33 = arith.cmpf oge, %0, %32 : vector<4x256xf32>
    %cst_15 = arith.constant -6.000000e-01 : f32
    %34 = vector.broadcast %cst_15 : f32 to vector<4x256xf32>
    %35 = arith.cmpf olt, %0, %34 : vector<4x256xf32>
    %36 = arith.andi %33, %35 : vector<4x256xi1>
    %cst_16 = arith.constant 1.000000e+00 : f32
    %cst_17 = arith.constant 0.000000e+00 : f32
    %37 = vector.broadcast %cst_16 : f32 to vector<4x256xf32>
    %38 = vector.broadcast %cst_17 : f32 to vector<4x256xf32>
    %39 = arith.select %36, %37, %38 : vector<4x256xi1>, vector<4x256xf32>
    %cst_18 = arith.constant -6.000000e-01 : f32
    %40 = vector.broadcast %cst_18 : f32 to vector<4x256xf32>
    %41 = arith.cmpf oge, %0, %40 : vector<4x256xf32>
    %cst_19 = arith.constant -2.000000e-01 : f32
    %42 = vector.broadcast %cst_19 : f32 to vector<4x256xf32>
    %43 = arith.cmpf olt, %0, %42 : vector<4x256xf32>
    %44 = arith.andi %41, %43 : vector<4x256xi1>
    %cst_20 = arith.constant 1.000000e+00 : f32
    %cst_21 = arith.constant 0.000000e+00 : f32
    %45 = vector.broadcast %cst_20 : f32 to vector<4x256xf32>
    %46 = vector.broadcast %cst_21 : f32 to vector<4x256xf32>
    %47 = arith.select %44, %45, %46 : vector<4x256xi1>, vector<4x256xf32>
    %cst_22 = arith.constant -2.000000e-01 : f32
    %48 = vector.broadcast %cst_22 : f32 to vector<4x256xf32>
    %49 = arith.cmpf oge, %0, %48 : vector<4x256xf32>
    %cst_23 = arith.constant 2.000000e-01 : f32
    %50 = vector.broadcast %cst_23 : f32 to vector<4x256xf32>
    %51 = arith.cmpf olt, %0, %50 : vector<4x256xf32>
    %52 = arith.andi %49, %51 : vector<4x256xi1>
    %cst_24 = arith.constant 1.000000e+00 : f32
    %cst_25 = arith.constant 0.000000e+00 : f32
    %53 = vector.broadcast %cst_24 : f32 to vector<4x256xf32>
    %54 = vector.broadcast %cst_25 : f32 to vector<4x256xf32>
    %55 = arith.select %52, %53, %54 : vector<4x256xi1>, vector<4x256xf32>
    %cst_26 = arith.constant 2.000000e-01 : f32
    %56 = vector.broadcast %cst_26 : f32 to vector<4x256xf32>
    %57 = arith.cmpf oge, %0, %56 : vector<4x256xf32>
    %cst_27 = arith.constant 6.000000e-01 : f32
    %58 = vector.broadcast %cst_27 : f32 to vector<4x256xf32>
    %59 = arith.cmpf olt, %0, %58 : vector<4x256xf32>
    %60 = arith.andi %57, %59 : vector<4x256xi1>
    %cst_28 = arith.constant 1.000000e+00 : f32
    %cst_29 = arith.constant 0.000000e+00 : f32
    %61 = vector.broadcast %cst_28 : f32 to vector<4x256xf32>
    %62 = vector.broadcast %cst_29 : f32 to vector<4x256xf32>
    %63 = arith.select %60, %61, %62 : vector<4x256xi1>, vector<4x256xf32>
    %cst_30 = arith.constant 6.000000e-01 : f32
    %64 = vector.broadcast %cst_30 : f32 to vector<4x256xf32>
    %65 = arith.cmpf oge, %0, %64 : vector<4x256xf32>
    %cst_31 = arith.constant 1.000000e+00 : f32
    %66 = vector.broadcast %cst_31 : f32 to vector<4x256xf32>
    %67 = arith.cmpf olt, %0, %66 : vector<4x256xf32>
    %68 = arith.andi %65, %67 : vector<4x256xi1>
    %cst_32 = arith.constant 1.000000e+00 : f32
    %cst_33 = arith.constant 0.000000e+00 : f32
    %69 = vector.broadcast %cst_32 : f32 to vector<4x256xf32>
    %70 = vector.broadcast %cst_33 : f32 to vector<4x256xf32>
    %71 = arith.select %68, %69, %70 : vector<4x256xi1>, vector<4x256xf32>
    %cst_34 = arith.constant 1.000000e+00 : f32
    %72 = vector.broadcast %cst_34 : f32 to vector<4x256xf32>
    %73 = arith.cmpf oge, %0, %72 : vector<4x256xf32>
    %cst_35 = arith.constant 1.400000e+00 : f32
    %74 = vector.broadcast %cst_35 : f32 to vector<4x256xf32>
    %75 = arith.cmpf olt, %0, %74 : vector<4x256xf32>
    %76 = arith.andi %73, %75 : vector<4x256xi1>
    %cst_36 = arith.constant 1.000000e+00 : f32
    %cst_37 = arith.constant 0.000000e+00 : f32
    %77 = vector.broadcast %cst_36 : f32 to vector<4x256xf32>
    %78 = vector.broadcast %cst_37 : f32 to vector<4x256xf32>
    %79 = arith.select %76, %77, %78 : vector<4x256xi1>, vector<4x256xf32>
    %cst_38 = arith.constant 1.400000e+00 : f32
    %80 = vector.broadcast %cst_38 : f32 to vector<4x256xf32>
    %81 = arith.cmpf oge, %0, %80 : vector<4x256xf32>
    %cst_39 = arith.constant 1.800000e+00 : f32
    %82 = vector.broadcast %cst_39 : f32 to vector<4x256xf32>
    %83 = arith.cmpf olt, %0, %82 : vector<4x256xf32>
    %84 = arith.andi %81, %83 : vector<4x256xi1>
    %cst_40 = arith.constant 1.000000e+00 : f32
    %cst_41 = arith.constant 0.000000e+00 : f32
    %85 = vector.broadcast %cst_40 : f32 to vector<4x256xf32>
    %86 = vector.broadcast %cst_41 : f32 to vector<4x256xf32>
    %87 = arith.select %84, %85, %86 : vector<4x256xi1>, vector<4x256xf32>
    %cst_42 = arith.constant 1.800000e+00 : f32
    %88 = vector.broadcast %cst_42 : f32 to vector<4x256xf32>
    %89 = arith.cmpf oge, %0, %88 : vector<4x256xf32>
    %cst_43 = arith.constant 2.200000e+00 : f32
    %90 = vector.broadcast %cst_43 : f32 to vector<4x256xf32>
    %91 = arith.cmpf olt, %0, %90 : vector<4x256xf32>
    %92 = arith.andi %89, %91 : vector<4x256xi1>
    %cst_44 = arith.constant 1.000000e+00 : f32
    %cst_45 = arith.constant 0.000000e+00 : f32
    %93 = vector.broadcast %cst_44 : f32 to vector<4x256xf32>
    %94 = vector.broadcast %cst_45 : f32 to vector<4x256xf32>
    %95 = arith.select %92, %93, %94 : vector<4x256xi1>, vector<4x256xf32>
    %cst_46 = arith.constant -2.200000e+00 : f32
    %96 = vector.broadcast %cst_46 : f32 to vector<4x256xf32>
    %97 = arith.subf %0, %96 : vector<4x256xf32>
    %cst_47 = arith.constant 2.500000e+00 : f32
    %98 = vector.broadcast %cst_47 : f32 to vector<4x256xf32>
    %99 = arith.mulf %97, %98 : vector<4x256xf32>
    %100 = arith.mulf %99, %15 : vector<4x256xf32>
    %cst_48 = arith.constant -1.400000e+00 : f32
    %101 = vector.broadcast %cst_48 : f32 to vector<4x256xf32>
    %102 = arith.subf %101, %0 : vector<4x256xf32>
    %cst_49 = arith.constant 2.500000e+00 : f32
    %103 = vector.broadcast %cst_49 : f32 to vector<4x256xf32>
    %104 = arith.mulf %102, %103 : vector<4x256xf32>
    %105 = arith.mulf %104, %23 : vector<4x256xf32>
    %106 = arith.addf %100, %105 : vector<4x256xf32>
    %cst_50 = arith.constant -1.800000e+00 : f32
    %107 = vector.broadcast %cst_50 : f32 to vector<4x256xf32>
    %108 = arith.subf %0, %107 : vector<4x256xf32>
    %cst_51 = arith.constant 2.500000e+00 : f32
    %109 = vector.broadcast %cst_51 : f32 to vector<4x256xf32>
    %110 = arith.mulf %108, %109 : vector<4x256xf32>
    %111 = arith.mulf %110, %23 : vector<4x256xf32>
    %cst_52 = arith.constant -1.000000e+00 : f32
    %112 = vector.broadcast %cst_52 : f32 to vector<4x256xf32>
    %113 = arith.subf %112, %0 : vector<4x256xf32>
    %cst_53 = arith.constant 2.500000e+00 : f32
    %114 = vector.broadcast %cst_53 : f32 to vector<4x256xf32>
    %115 = arith.mulf %113, %114 : vector<4x256xf32>
    %116 = arith.mulf %115, %31 : vector<4x256xf32>
    %117 = arith.addf %111, %116 : vector<4x256xf32>
    %cst_54 = arith.constant -1.400000e+00 : f32
    %118 = vector.broadcast %cst_54 : f32 to vector<4x256xf32>
    %119 = arith.subf %0, %118 : vector<4x256xf32>
    %cst_55 = arith.constant 2.500000e+00 : f32
    %120 = vector.broadcast %cst_55 : f32 to vector<4x256xf32>
    %121 = arith.mulf %119, %120 : vector<4x256xf32>
    %122 = arith.mulf %121, %31 : vector<4x256xf32>
    %cst_56 = arith.constant -6.000000e-01 : f32
    %123 = vector.broadcast %cst_56 : f32 to vector<4x256xf32>
    %124 = arith.subf %123, %0 : vector<4x256xf32>
    %cst_57 = arith.constant 2.500000e+00 : f32
    %125 = vector.broadcast %cst_57 : f32 to vector<4x256xf32>
    %126 = arith.mulf %124, %125 : vector<4x256xf32>
    %127 = arith.mulf %126, %39 : vector<4x256xf32>
    %128 = arith.addf %122, %127 : vector<4x256xf32>
    %cst_58 = arith.constant -1.000000e+00 : f32
    %129 = vector.broadcast %cst_58 : f32 to vector<4x256xf32>
    %130 = arith.subf %0, %129 : vector<4x256xf32>
    %cst_59 = arith.constant 2.500000e+00 : f32
    %131 = vector.broadcast %cst_59 : f32 to vector<4x256xf32>
    %132 = arith.mulf %130, %131 : vector<4x256xf32>
    %133 = arith.mulf %132, %39 : vector<4x256xf32>
    %cst_60 = arith.constant -2.000000e-01 : f32
    %134 = vector.broadcast %cst_60 : f32 to vector<4x256xf32>
    %135 = arith.subf %134, %0 : vector<4x256xf32>
    %cst_61 = arith.constant 2.500000e+00 : f32
    %136 = vector.broadcast %cst_61 : f32 to vector<4x256xf32>
    %137 = arith.mulf %135, %136 : vector<4x256xf32>
    %138 = arith.mulf %137, %47 : vector<4x256xf32>
    %139 = arith.addf %133, %138 : vector<4x256xf32>
    %cst_62 = arith.constant -6.000000e-01 : f32
    %140 = vector.broadcast %cst_62 : f32 to vector<4x256xf32>
    %141 = arith.subf %0, %140 : vector<4x256xf32>
    %cst_63 = arith.constant 2.500000e+00 : f32
    %142 = vector.broadcast %cst_63 : f32 to vector<4x256xf32>
    %143 = arith.mulf %141, %142 : vector<4x256xf32>
    %144 = arith.mulf %143, %47 : vector<4x256xf32>
    %cst_64 = arith.constant 2.000000e-01 : f32
    %145 = vector.broadcast %cst_64 : f32 to vector<4x256xf32>
    %146 = arith.subf %145, %0 : vector<4x256xf32>
    %cst_65 = arith.constant 2.500000e+00 : f32
    %147 = vector.broadcast %cst_65 : f32 to vector<4x256xf32>
    %148 = arith.mulf %146, %147 : vector<4x256xf32>
    %149 = arith.mulf %148, %55 : vector<4x256xf32>
    %150 = arith.addf %144, %149 : vector<4x256xf32>
    %cst_66 = arith.constant -2.000000e-01 : f32
    %151 = vector.broadcast %cst_66 : f32 to vector<4x256xf32>
    %152 = arith.subf %0, %151 : vector<4x256xf32>
    %cst_67 = arith.constant 2.500000e+00 : f32
    %153 = vector.broadcast %cst_67 : f32 to vector<4x256xf32>
    %154 = arith.mulf %152, %153 : vector<4x256xf32>
    %155 = arith.mulf %154, %55 : vector<4x256xf32>
    %cst_68 = arith.constant 6.000000e-01 : f32
    %156 = vector.broadcast %cst_68 : f32 to vector<4x256xf32>
    %157 = arith.subf %156, %0 : vector<4x256xf32>
    %cst_69 = arith.constant 2.500000e+00 : f32
    %158 = vector.broadcast %cst_69 : f32 to vector<4x256xf32>
    %159 = arith.mulf %157, %158 : vector<4x256xf32>
    %160 = arith.mulf %159, %63 : vector<4x256xf32>
    %161 = arith.addf %155, %160 : vector<4x256xf32>
    %cst_70 = arith.constant 2.000000e-01 : f32
    %162 = vector.broadcast %cst_70 : f32 to vector<4x256xf32>
    %163 = arith.subf %0, %162 : vector<4x256xf32>
    %cst_71 = arith.constant 2.500000e+00 : f32
    %164 = vector.broadcast %cst_71 : f32 to vector<4x256xf32>
    %165 = arith.mulf %163, %164 : vector<4x256xf32>
    %166 = arith.mulf %165, %63 : vector<4x256xf32>
    %cst_72 = arith.constant 1.000000e+00 : f32
    %167 = vector.broadcast %cst_72 : f32 to vector<4x256xf32>
    %168 = arith.subf %167, %0 : vector<4x256xf32>
    %cst_73 = arith.constant 2.500000e+00 : f32
    %169 = vector.broadcast %cst_73 : f32 to vector<4x256xf32>
    %170 = arith.mulf %168, %169 : vector<4x256xf32>
    %171 = arith.mulf %170, %71 : vector<4x256xf32>
    %172 = arith.addf %166, %171 : vector<4x256xf32>
    %cst_74 = arith.constant 6.000000e-01 : f32
    %173 = vector.broadcast %cst_74 : f32 to vector<4x256xf32>
    %174 = arith.subf %0, %173 : vector<4x256xf32>
    %cst_75 = arith.constant 2.500000e+00 : f32
    %175 = vector.broadcast %cst_75 : f32 to vector<4x256xf32>
    %176 = arith.mulf %174, %175 : vector<4x256xf32>
    %177 = arith.mulf %176, %71 : vector<4x256xf32>
    %cst_76 = arith.constant 1.400000e+00 : f32
    %178 = vector.broadcast %cst_76 : f32 to vector<4x256xf32>
    %179 = arith.subf %178, %0 : vector<4x256xf32>
    %cst_77 = arith.constant 2.500000e+00 : f32
    %180 = vector.broadcast %cst_77 : f32 to vector<4x256xf32>
    %181 = arith.mulf %179, %180 : vector<4x256xf32>
    %182 = arith.mulf %181, %79 : vector<4x256xf32>
    %183 = arith.addf %177, %182 : vector<4x256xf32>
    %cst_78 = arith.constant 1.000000e+00 : f32
    %184 = vector.broadcast %cst_78 : f32 to vector<4x256xf32>
    %185 = arith.subf %0, %184 : vector<4x256xf32>
    %cst_79 = arith.constant 2.500000e+00 : f32
    %186 = vector.broadcast %cst_79 : f32 to vector<4x256xf32>
    %187 = arith.mulf %185, %186 : vector<4x256xf32>
    %188 = arith.mulf %187, %79 : vector<4x256xf32>
    %cst_80 = arith.constant 1.800000e+00 : f32
    %189 = vector.broadcast %cst_80 : f32 to vector<4x256xf32>
    %190 = arith.subf %189, %0 : vector<4x256xf32>
    %cst_81 = arith.constant 2.500000e+00 : f32
    %191 = vector.broadcast %cst_81 : f32 to vector<4x256xf32>
    %192 = arith.mulf %190, %191 : vector<4x256xf32>
    %193 = arith.mulf %192, %87 : vector<4x256xf32>
    %194 = arith.addf %188, %193 : vector<4x256xf32>
    %cst_82 = arith.constant 1.400000e+00 : f32
    %195 = vector.broadcast %cst_82 : f32 to vector<4x256xf32>
    %196 = arith.subf %0, %195 : vector<4x256xf32>
    %cst_83 = arith.constant 2.500000e+00 : f32
    %197 = vector.broadcast %cst_83 : f32 to vector<4x256xf32>
    %198 = arith.mulf %196, %197 : vector<4x256xf32>
    %199 = arith.mulf %198, %87 : vector<4x256xf32>
    %cst_84 = arith.constant 2.200000e+00 : f32
    %200 = vector.broadcast %cst_84 : f32 to vector<4x256xf32>
    %201 = arith.subf %200, %0 : vector<4x256xf32>
    %cst_85 = arith.constant 2.500000e+00 : f32
    %202 = vector.broadcast %cst_85 : f32 to vector<4x256xf32>
    %203 = arith.mulf %201, %202 : vector<4x256xf32>
    %204 = arith.mulf %203, %95 : vector<4x256xf32>
    %205 = arith.addf %199, %204 : vector<4x256xf32>
    %cst_86 = arith.constant -2.200000e+00 : f32
    %206 = vector.broadcast %cst_86 : f32 to vector<4x256xf32>
    %207 = arith.subf %0, %206 : vector<4x256xf32>
    %cst_87 = arith.constant 1.250000e+00 : f32
    %208 = vector.broadcast %cst_87 : f32 to vector<4x256xf32>
    %209 = arith.mulf %207, %208 : vector<4x256xf32>
    %210 = arith.mulf %209, %106 : vector<4x256xf32>
    %cst_88 = arith.constant -1.000000e+00 : f32
    %211 = vector.broadcast %cst_88 : f32 to vector<4x256xf32>
    %212 = arith.subf %211, %0 : vector<4x256xf32>
    %cst_89 = arith.constant 1.250000e+00 : f32
    %213 = vector.broadcast %cst_89 : f32 to vector<4x256xf32>
    %214 = arith.mulf %212, %213 : vector<4x256xf32>
    %215 = arith.mulf %214, %117 : vector<4x256xf32>
    %216 = arith.addf %210, %215 : vector<4x256xf32>
    %cst_90 = arith.constant -1.800000e+00 : f32
    %217 = vector.broadcast %cst_90 : f32 to vector<4x256xf32>
    %218 = arith.subf %0, %217 : vector<4x256xf32>
    %cst_91 = arith.constant 1.250000e+00 : f32
    %219 = vector.broadcast %cst_91 : f32 to vector<4x256xf32>
    %220 = arith.mulf %218, %219 : vector<4x256xf32>
    %221 = arith.mulf %220, %117 : vector<4x256xf32>
    %cst_92 = arith.constant -6.000000e-01 : f32
    %222 = vector.broadcast %cst_92 : f32 to vector<4x256xf32>
    %223 = arith.subf %222, %0 : vector<4x256xf32>
    %cst_93 = arith.constant 1.250000e+00 : f32
    %224 = vector.broadcast %cst_93 : f32 to vector<4x256xf32>
    %225 = arith.mulf %223, %224 : vector<4x256xf32>
    %226 = arith.mulf %225, %128 : vector<4x256xf32>
    %227 = arith.addf %221, %226 : vector<4x256xf32>
    %cst_94 = arith.constant -1.400000e+00 : f32
    %228 = vector.broadcast %cst_94 : f32 to vector<4x256xf32>
    %229 = arith.subf %0, %228 : vector<4x256xf32>
    %cst_95 = arith.constant 1.250000e+00 : f32
    %230 = vector.broadcast %cst_95 : f32 to vector<4x256xf32>
    %231 = arith.mulf %229, %230 : vector<4x256xf32>
    %232 = arith.mulf %231, %128 : vector<4x256xf32>
    %cst_96 = arith.constant -2.000000e-01 : f32
    %233 = vector.broadcast %cst_96 : f32 to vector<4x256xf32>
    %234 = arith.subf %233, %0 : vector<4x256xf32>
    %cst_97 = arith.constant 1.250000e+00 : f32
    %235 = vector.broadcast %cst_97 : f32 to vector<4x256xf32>
    %236 = arith.mulf %234, %235 : vector<4x256xf32>
    %237 = arith.mulf %236, %139 : vector<4x256xf32>
    %238 = arith.addf %232, %237 : vector<4x256xf32>
    %cst_98 = arith.constant -1.000000e+00 : f32
    %239 = vector.broadcast %cst_98 : f32 to vector<4x256xf32>
    %240 = arith.subf %0, %239 : vector<4x256xf32>
    %cst_99 = arith.constant 1.250000e+00 : f32
    %241 = vector.broadcast %cst_99 : f32 to vector<4x256xf32>
    %242 = arith.mulf %240, %241 : vector<4x256xf32>
    %243 = arith.mulf %242, %139 : vector<4x256xf32>
    %cst_100 = arith.constant 2.000000e-01 : f32
    %244 = vector.broadcast %cst_100 : f32 to vector<4x256xf32>
    %245 = arith.subf %244, %0 : vector<4x256xf32>
    %cst_101 = arith.constant 1.250000e+00 : f32
    %246 = vector.broadcast %cst_101 : f32 to vector<4x256xf32>
    %247 = arith.mulf %245, %246 : vector<4x256xf32>
    %248 = arith.mulf %247, %150 : vector<4x256xf32>
    %249 = arith.addf %243, %248 : vector<4x256xf32>
    %cst_102 = arith.constant -6.000000e-01 : f32
    %250 = vector.broadcast %cst_102 : f32 to vector<4x256xf32>
    %251 = arith.subf %0, %250 : vector<4x256xf32>
    %cst_103 = arith.constant 1.250000e+00 : f32
    %252 = vector.broadcast %cst_103 : f32 to vector<4x256xf32>
    %253 = arith.mulf %251, %252 : vector<4x256xf32>
    %254 = arith.mulf %253, %150 : vector<4x256xf32>
    %cst_104 = arith.constant 6.000000e-01 : f32
    %255 = vector.broadcast %cst_104 : f32 to vector<4x256xf32>
    %256 = arith.subf %255, %0 : vector<4x256xf32>
    %cst_105 = arith.constant 1.250000e+00 : f32
    %257 = vector.broadcast %cst_105 : f32 to vector<4x256xf32>
    %258 = arith.mulf %256, %257 : vector<4x256xf32>
    %259 = arith.mulf %258, %161 : vector<4x256xf32>
    %260 = arith.addf %254, %259 : vector<4x256xf32>
    %cst_106 = arith.constant -2.000000e-01 : f32
    %261 = vector.broadcast %cst_106 : f32 to vector<4x256xf32>
    %262 = arith.subf %0, %261 : vector<4x256xf32>
    %cst_107 = arith.constant 1.250000e+00 : f32
    %263 = vector.broadcast %cst_107 : f32 to vector<4x256xf32>
    %264 = arith.mulf %262, %263 : vector<4x256xf32>
    %265 = arith.mulf %264, %161 : vector<4x256xf32>
    %cst_108 = arith.constant 1.000000e+00 : f32
    %266 = vector.broadcast %cst_108 : f32 to vector<4x256xf32>
    %267 = arith.subf %266, %0 : vector<4x256xf32>
    %cst_109 = arith.constant 1.250000e+00 : f32
    %268 = vector.broadcast %cst_109 : f32 to vector<4x256xf32>
    %269 = arith.mulf %267, %268 : vector<4x256xf32>
    %270 = arith.mulf %269, %172 : vector<4x256xf32>
    %271 = arith.addf %265, %270 : vector<4x256xf32>
    %cst_110 = arith.constant 2.000000e-01 : f32
    %272 = vector.broadcast %cst_110 : f32 to vector<4x256xf32>
    %273 = arith.subf %0, %272 : vector<4x256xf32>
    %cst_111 = arith.constant 1.250000e+00 : f32
    %274 = vector.broadcast %cst_111 : f32 to vector<4x256xf32>
    %275 = arith.mulf %273, %274 : vector<4x256xf32>
    %276 = arith.mulf %275, %172 : vector<4x256xf32>
    %cst_112 = arith.constant 1.400000e+00 : f32
    %277 = vector.broadcast %cst_112 : f32 to vector<4x256xf32>
    %278 = arith.subf %277, %0 : vector<4x256xf32>
    %cst_113 = arith.constant 1.250000e+00 : f32
    %279 = vector.broadcast %cst_113 : f32 to vector<4x256xf32>
    %280 = arith.mulf %278, %279 : vector<4x256xf32>
    %281 = arith.mulf %280, %183 : vector<4x256xf32>
    %282 = arith.addf %276, %281 : vector<4x256xf32>
    %cst_114 = arith.constant 6.000000e-01 : f32
    %283 = vector.broadcast %cst_114 : f32 to vector<4x256xf32>
    %284 = arith.subf %0, %283 : vector<4x256xf32>
    %cst_115 = arith.constant 1.250000e+00 : f32
    %285 = vector.broadcast %cst_115 : f32 to vector<4x256xf32>
    %286 = arith.mulf %284, %285 : vector<4x256xf32>
    %287 = arith.mulf %286, %183 : vector<4x256xf32>
    %cst_116 = arith.constant 1.800000e+00 : f32
    %288 = vector.broadcast %cst_116 : f32 to vector<4x256xf32>
    %289 = arith.subf %288, %0 : vector<4x256xf32>
    %cst_117 = arith.constant 1.250000e+00 : f32
    %290 = vector.broadcast %cst_117 : f32 to vector<4x256xf32>
    %291 = arith.mulf %289, %290 : vector<4x256xf32>
    %292 = arith.mulf %291, %194 : vector<4x256xf32>
    %293 = arith.addf %287, %292 : vector<4x256xf32>
    %cst_118 = arith.constant 1.000000e+00 : f32
    %294 = vector.broadcast %cst_118 : f32 to vector<4x256xf32>
    %295 = arith.subf %0, %294 : vector<4x256xf32>
    %cst_119 = arith.constant 1.250000e+00 : f32
    %296 = vector.broadcast %cst_119 : f32 to vector<4x256xf32>
    %297 = arith.mulf %295, %296 : vector<4x256xf32>
    %298 = arith.mulf %297, %194 : vector<4x256xf32>
    %cst_120 = arith.constant 2.200000e+00 : f32
    %299 = vector.broadcast %cst_120 : f32 to vector<4x256xf32>
    %300 = arith.subf %299, %0 : vector<4x256xf32>
    %cst_121 = arith.constant 1.250000e+00 : f32
    %301 = vector.broadcast %cst_121 : f32 to vector<4x256xf32>
    %302 = arith.mulf %300, %301 : vector<4x256xf32>
    %303 = arith.mulf %302, %205 : vector<4x256xf32>
    %304 = arith.addf %298, %303 : vector<4x256xf32>
    %cst_122 = arith.constant -2.200000e+00 : f32
    %305 = vector.broadcast %cst_122 : f32 to vector<4x256xf32>
    %306 = arith.subf %0, %305 : vector<4x256xf32>
    %cst_123 = arith.constant 0.833333313 : f32
    %307 = vector.broadcast %cst_123 : f32 to vector<4x256xf32>
    %308 = arith.mulf %306, %307 : vector<4x256xf32>
    %309 = arith.mulf %308, %216 : vector<4x256xf32>
    %cst_124 = arith.constant -6.000000e-01 : f32
    %310 = vector.broadcast %cst_124 : f32 to vector<4x256xf32>
    %311 = arith.subf %310, %0 : vector<4x256xf32>
    %cst_125 = arith.constant 0.833333313 : f32
    %312 = vector.broadcast %cst_125 : f32 to vector<4x256xf32>
    %313 = arith.mulf %311, %312 : vector<4x256xf32>
    %314 = arith.mulf %313, %227 : vector<4x256xf32>
    %315 = arith.addf %309, %314 : vector<4x256xf32>
    %cst_126 = arith.constant -1.800000e+00 : f32
    %316 = vector.broadcast %cst_126 : f32 to vector<4x256xf32>
    %317 = arith.subf %0, %316 : vector<4x256xf32>
    %cst_127 = arith.constant 0.833333313 : f32
    %318 = vector.broadcast %cst_127 : f32 to vector<4x256xf32>
    %319 = arith.mulf %317, %318 : vector<4x256xf32>
    %320 = arith.mulf %319, %227 : vector<4x256xf32>
    %cst_128 = arith.constant -2.000000e-01 : f32
    %321 = vector.broadcast %cst_128 : f32 to vector<4x256xf32>
    %322 = arith.subf %321, %0 : vector<4x256xf32>
    %cst_129 = arith.constant 0.833333313 : f32
    %323 = vector.broadcast %cst_129 : f32 to vector<4x256xf32>
    %324 = arith.mulf %322, %323 : vector<4x256xf32>
    %325 = arith.mulf %324, %238 : vector<4x256xf32>
    %326 = arith.addf %320, %325 : vector<4x256xf32>
    %cst_130 = arith.constant -1.400000e+00 : f32
    %327 = vector.broadcast %cst_130 : f32 to vector<4x256xf32>
    %328 = arith.subf %0, %327 : vector<4x256xf32>
    %cst_131 = arith.constant 0.833333313 : f32
    %329 = vector.broadcast %cst_131 : f32 to vector<4x256xf32>
    %330 = arith.mulf %328, %329 : vector<4x256xf32>
    %331 = arith.mulf %330, %238 : vector<4x256xf32>
    %cst_132 = arith.constant 2.000000e-01 : f32
    %332 = vector.broadcast %cst_132 : f32 to vector<4x256xf32>
    %333 = arith.subf %332, %0 : vector<4x256xf32>
    %cst_133 = arith.constant 0.833333313 : f32
    %334 = vector.broadcast %cst_133 : f32 to vector<4x256xf32>
    %335 = arith.mulf %333, %334 : vector<4x256xf32>
    %336 = arith.mulf %335, %249 : vector<4x256xf32>
    %337 = arith.addf %331, %336 : vector<4x256xf32>
    %cst_134 = arith.constant -1.000000e+00 : f32
    %338 = vector.broadcast %cst_134 : f32 to vector<4x256xf32>
    %339 = arith.subf %0, %338 : vector<4x256xf32>
    %cst_135 = arith.constant 0.833333313 : f32
    %340 = vector.broadcast %cst_135 : f32 to vector<4x256xf32>
    %341 = arith.mulf %339, %340 : vector<4x256xf32>
    %342 = arith.mulf %341, %249 : vector<4x256xf32>
    %cst_136 = arith.constant 6.000000e-01 : f32
    %343 = vector.broadcast %cst_136 : f32 to vector<4x256xf32>
    %344 = arith.subf %343, %0 : vector<4x256xf32>
    %cst_137 = arith.constant 0.833333313 : f32
    %345 = vector.broadcast %cst_137 : f32 to vector<4x256xf32>
    %346 = arith.mulf %344, %345 : vector<4x256xf32>
    %347 = arith.mulf %346, %260 : vector<4x256xf32>
    %348 = arith.addf %342, %347 : vector<4x256xf32>
    %cst_138 = arith.constant -6.000000e-01 : f32
    %349 = vector.broadcast %cst_138 : f32 to vector<4x256xf32>
    %350 = arith.subf %0, %349 : vector<4x256xf32>
    %cst_139 = arith.constant 0.833333313 : f32
    %351 = vector.broadcast %cst_139 : f32 to vector<4x256xf32>
    %352 = arith.mulf %350, %351 : vector<4x256xf32>
    %353 = arith.mulf %352, %260 : vector<4x256xf32>
    %cst_140 = arith.constant 1.000000e+00 : f32
    %354 = vector.broadcast %cst_140 : f32 to vector<4x256xf32>
    %355 = arith.subf %354, %0 : vector<4x256xf32>
    %cst_141 = arith.constant 0.833333313 : f32
    %356 = vector.broadcast %cst_141 : f32 to vector<4x256xf32>
    %357 = arith.mulf %355, %356 : vector<4x256xf32>
    %358 = arith.mulf %357, %271 : vector<4x256xf32>
    %359 = arith.addf %353, %358 : vector<4x256xf32>
    %cst_142 = arith.constant -2.000000e-01 : f32
    %360 = vector.broadcast %cst_142 : f32 to vector<4x256xf32>
    %361 = arith.subf %0, %360 : vector<4x256xf32>
    %cst_143 = arith.constant 0.833333313 : f32
    %362 = vector.broadcast %cst_143 : f32 to vector<4x256xf32>
    %363 = arith.mulf %361, %362 : vector<4x256xf32>
    %364 = arith.mulf %363, %271 : vector<4x256xf32>
    %cst_144 = arith.constant 1.400000e+00 : f32
    %365 = vector.broadcast %cst_144 : f32 to vector<4x256xf32>
    %366 = arith.subf %365, %0 : vector<4x256xf32>
    %cst_145 = arith.constant 0.833333313 : f32
    %367 = vector.broadcast %cst_145 : f32 to vector<4x256xf32>
    %368 = arith.mulf %366, %367 : vector<4x256xf32>
    %369 = arith.mulf %368, %282 : vector<4x256xf32>
    %370 = arith.addf %364, %369 : vector<4x256xf32>
    %cst_146 = arith.constant 2.000000e-01 : f32
    %371 = vector.broadcast %cst_146 : f32 to vector<4x256xf32>
    %372 = arith.subf %0, %371 : vector<4x256xf32>
    %cst_147 = arith.constant 0.833333313 : f32
    %373 = vector.broadcast %cst_147 : f32 to vector<4x256xf32>
    %374 = arith.mulf %372, %373 : vector<4x256xf32>
    %375 = arith.mulf %374, %282 : vector<4x256xf32>
    %cst_148 = arith.constant 1.800000e+00 : f32
    %376 = vector.broadcast %cst_148 : f32 to vector<4x256xf32>
    %377 = arith.subf %376, %0 : vector<4x256xf32>
    %cst_149 = arith.constant 0.833333313 : f32
    %378 = vector.broadcast %cst_149 : f32 to vector<4x256xf32>
    %379 = arith.mulf %377, %378 : vector<4x256xf32>
    %380 = arith.mulf %379, %293 : vector<4x256xf32>
    %381 = arith.addf %375, %380 : vector<4x256xf32>
    %cst_150 = arith.constant 6.000000e-01 : f32
    %382 = vector.broadcast %cst_150 : f32 to vector<4x256xf32>
    %383 = arith.subf %0, %382 : vector<4x256xf32>
    %cst_151 = arith.constant 0.833333313 : f32
    %384 = vector.broadcast %cst_151 : f32 to vector<4x256xf32>
    %385 = arith.mulf %383, %384 : vector<4x256xf32>
    %386 = arith.mulf %385, %293 : vector<4x256xf32>
    %cst_152 = arith.constant 2.200000e+00 : f32
    %387 = vector.broadcast %cst_152 : f32 to vector<4x256xf32>
    %388 = arith.subf %387, %0 : vector<4x256xf32>
    %cst_153 = arith.constant 0.833333313 : f32
    %389 = vector.broadcast %cst_153 : f32 to vector<4x256xf32>
    %390 = arith.mulf %388, %389 : vector<4x256xf32>
    %391 = arith.mulf %390, %304 : vector<4x256xf32>
    %392 = arith.addf %386, %391 : vector<4x256xf32>
    %393 = tpu.concatenate %7, %315, %326, %337, %348, %359, %370, %381, %392 in 0 : vector<4x256xf32>, vector<4x256xf32>, vector<4x256xf32>, vector<4x256xf32>, vector<4x256xf32>, vector<4x256xf32>, vector<4x256xf32>, vector<4x256xf32>, vector<4x256xf32> -> vector<36x256xf32>
    %394 = arith.truncf %393 : vector<36x256xf32> to vector<36x256xbf16>
    %c0_154 = arith.constant 0 : index
    %c0_155 = arith.constant 0 : index
    %395 = vector.load %arg2[%c0_154, %c0_155] : memref<36x256xbf16, #tpu.memory_space<vmem>>, vector<36x256xbf16>
    tpu.vector_store %arg2[%c0_154, %c0_155], %394 {strides = array<i32>} : memref<36x256xbf16, #tpu.memory_space<vmem>>, vector<36x256xbf16>,
    return
  }
  func.func @transform_0(%arg0: i32) -> (i32, i32) {
    %c0_i32 = arith.constant 0 : i32
    %c0_i32_0 = arith.constant 0 : i32
    return %c0_i32, %arg0 : i32, i32
  }
  func.func @transform_1(%arg0: i32) -> (i32, i32) {
    %c0_i32 = arith.constant 0 : i32
    %c0_i32_0 = arith.constant 0 : i32
    return %c0_i32, %arg0 : i32, i32
  }
}

module attributes {stable_mosaic.version = 11 : i64} {
  func.func @_matmul_kernel(%arg0: i32, %arg1: i32, %arg2: memref<32x144xbf16, #tpu.memory_space<vmem>>, %arg3: memref<144x128xbf16, #tpu.memory_space<vmem>>, %arg4: memref<32x128xf32, #tpu.memory_space<vmem>>, %arg5: memref<32x128xf32, #tpu.memory_space<vmem>>) attributes {dimension_semantics = [#tpu.dimension_semantics<parallel>, #tpu.dimension_semantics<arbitrary>], iteration_bounds = array<i64: 5, 1>, scalar_prefetch = 0 : i64, scratch_operands = 1 : i64, tpu.core_type = #tpu.core_type<tc>, window_params = [{transform_indices = @transform_0, window_bounds = array<i64: 32, 144>}, {transform_indices = @transform_1, window_bounds = array<i64: 144, 128>}, {transform_indices = @transform_2, window_bounds = array<i64: 32, 128>}]} {
    %c0_i32 = arith.constant 0 : i32
    %0 = arith.cmpi eq, %arg1, %c0_i32 : i32
    %1 = arith.extui %0 : i1 to i32
    %c0_i32_0 = arith.constant 0 : i32
    %2 = arith.cmpi ne, %1, %c0_i32_0 : i32
    scf.if %2 {
      %cst_10 = arith.constant 0.000000e+00 : f32
      %12 = vector.broadcast %cst_10 : f32 to vector<32x128xf32>
      %c0_11 = arith.constant 0 : index
      %c0_12 = arith.constant 0 : index
      %13 = vector.load %arg5[%c0_11, %c0_12] : memref<32x128xf32, #tpu.memory_space<vmem>>, vector<32x128xf32>
      tpu.vector_store %arg5[%c0_11, %c0_12], %12 {strides = array<i32>} : memref<32x128xf32, #tpu.memory_space<vmem>>, vector<32x128xf32>,
    } else {
    }
    %c0 = arith.constant 0 : index
    %c0_1 = arith.constant 0 : index
    %3 = vector.load %arg5[%c0, %c0_1] : memref<32x128xf32, #tpu.memory_space<vmem>>, vector<32x128xf32>
    %c0_2 = arith.constant 0 : index
    %c0_3 = arith.constant 0 : index
    %4 = vector.load %arg2[%c0_2, %c0_3] : memref<32x144xbf16, #tpu.memory_space<vmem>>, vector<32x144xbf16>
    %c0_4 = arith.constant 0 : index
    %c0_5 = arith.constant 0 : index
    %5 = vector.load %arg3[%c0_4, %c0_5] : memref<144x128xbf16, #tpu.memory_space<vmem>>, vector<144x128xbf16>
    %cst = arith.constant dense<0.000000e+00> : vector<32x128xf32>
    %6 = tpu.matmul %4, %5, %cst {dimension_numbers = #tpu.dot_dimension_numbers<[1], [0], [0], [1], [0, 0, 1, 1], [], []>} : vector<32x144xbf16>, vector<144x128xbf16>, vector<32x128xf32> -> vector<32x128xf32>
    %7 = arith.addf %3, %6 : vector<32x128xf32>
    %c0_6 = arith.constant 0 : index
    %c0_7 = arith.constant 0 : index
    %8 = vector.load %arg5[%c0_6, %c0_7] : memref<32x128xf32, #tpu.memory_space<vmem>>, vector<32x128xf32>
    tpu.vector_store %arg5[%c0_6, %c0_7], %7 {strides = array<i32>} : memref<32x128xf32, #tpu.memory_space<vmem>>, vector<32x128xf32>,
    %c0_i32_8 = arith.constant 0 : i32
    %9 = arith.cmpi eq, %arg1, %c0_i32_8 : i32
    %10 = arith.extui %9 : i1 to i32
    %c0_i32_9 = arith.constant 0 : i32
    %11 = arith.cmpi ne, %10, %c0_i32_9 : i32
    scf.if %11 {
      %c0_10 = arith.constant 0 : index
      %c0_11 = arith.constant 0 : index
      %12 = vector.load %arg5[%c0_10, %c0_11] : memref<32x128xf32, #tpu.memory_space<vmem>>, vector<32x128xf32>
      %c0_12 = arith.constant 0 : index
      %c0_13 = arith.constant 0 : index
      %13 = vector.load %arg4[%c0_12, %c0_13] : memref<32x128xf32, #tpu.memory_space<vmem>>, vector<32x128xf32>
      tpu.vector_store %arg4[%c0_12, %c0_13], %12 {strides = array<i32>} : memref<32x128xf32, #tpu.memory_space<vmem>>, vector<32x128xf32>,
    } else {
    }
    return
  }
  func.func @transform_0(%arg0: i32, %arg1: i32) -> (i32, i32) {
    %c0_i32 = arith.constant 0 : i32
    %c0_i32_0 = arith.constant 0 : i32
    return %c0_i32, %arg1 : i32, i32
  }
  func.func @transform_1(%arg0: i32, %arg1: i32) -> (i32, i32) {
    %c0_i32 = arith.constant 0 : i32
    return %arg1, %arg0 : i32, i32
  }
  func.func @transform_2(%arg0: i32, %arg1: i32) -> (i32, i32) {
    %c0_i32 = arith.constant 0 : i32
    %c0_i32_0 = arith.constant 0 : i32
    return %c0_i32, %arg0 : i32, i32
  }
}

module attributes {stable_mosaic.version = 11 : i64} {
  func.func @_features_kernel(%arg0: i32, %arg1: memref<8x256xf32, #tpu.memory_space<vmem>>, %arg2: memref<72x256xbf16, #tpu.memory_space<vmem>>) attributes {dimension_semantics = [#tpu.dimension_semantics<parallel>], iteration_bounds = array<i64: 8>, scalar_prefetch = 0 : i64, scratch_operands = 0 : i64, tpu.core_type = #tpu.core_type<tc>, window_params = [{transform_indices = @transform_0, window_bounds = array<i64: 8, 256>}, {transform_indices = @transform_1, window_bounds = array<i64: 72, 256>}]} {
    %c0 = arith.constant 0 : index
    %c0_0 = arith.constant 0 : index
    %0 = vector.load %arg1[%c0, %c0_0] : memref<8x256xf32, #tpu.memory_space<vmem>>, vector<8x256xf32>
    %cst = arith.constant 0.000000e+00 : f32
    %1 = vector.broadcast %cst : f32 to vector<8x256xf32>
    %2 = arith.subf %1, %0 : vector<8x256xf32>
    %3 = math.exp %2 : vector<8x256xf32>
    %cst_1 = arith.constant 1.000000e+00 : f32
    %4 = vector.broadcast %cst_1 : f32 to vector<8x256xf32>
    %5 = arith.addf %4, %3 : vector<8x256xf32>
    %6 = tpu.reciprocal %5 {approx = true} : vector<8x256xf32> -> vector<8x256xf32>
    %7 = arith.mulf %0, %6 : vector<8x256xf32>
    %cst_2 = arith.constant -2.200000e+00 : f32
    %8 = vector.broadcast %cst_2 : f32 to vector<8x256xf32>
    %9 = arith.cmpf oge, %0, %8 : vector<8x256xf32>
    %cst_3 = arith.constant -1.800000e+00 : f32
    %10 = vector.broadcast %cst_3 : f32 to vector<8x256xf32>
    %11 = arith.cmpf olt, %0, %10 : vector<8x256xf32>
    %12 = arith.andi %9, %11 : vector<8x256xi1>
    %cst_4 = arith.constant 1.000000e+00 : f32
    %cst_5 = arith.constant 0.000000e+00 : f32
    %13 = vector.broadcast %cst_4 : f32 to vector<8x256xf32>
    %14 = vector.broadcast %cst_5 : f32 to vector<8x256xf32>
    %15 = arith.select %12, %13, %14 : vector<8x256xi1>, vector<8x256xf32>
    %cst_6 = arith.constant -1.800000e+00 : f32
    %16 = vector.broadcast %cst_6 : f32 to vector<8x256xf32>
    %17 = arith.cmpf oge, %0, %16 : vector<8x256xf32>
    %cst_7 = arith.constant -1.400000e+00 : f32
    %18 = vector.broadcast %cst_7 : f32 to vector<8x256xf32>
    %19 = arith.cmpf olt, %0, %18 : vector<8x256xf32>
    %20 = arith.andi %17, %19 : vector<8x256xi1>
    %cst_8 = arith.constant 1.000000e+00 : f32
    %cst_9 = arith.constant 0.000000e+00 : f32
    %21 = vector.broadcast %cst_8 : f32 to vector<8x256xf32>
    %22 = vector.broadcast %cst_9 : f32 to vector<8x256xf32>
    %23 = arith.select %20, %21, %22 : vector<8x256xi1>, vector<8x256xf32>
    %cst_10 = arith.constant -1.400000e+00 : f32
    %24 = vector.broadcast %cst_10 : f32 to vector<8x256xf32>
    %25 = arith.cmpf oge, %0, %24 : vector<8x256xf32>
    %cst_11 = arith.constant -1.000000e+00 : f32
    %26 = vector.broadcast %cst_11 : f32 to vector<8x256xf32>
    %27 = arith.cmpf olt, %0, %26 : vector<8x256xf32>
    %28 = arith.andi %25, %27 : vector<8x256xi1>
    %cst_12 = arith.constant 1.000000e+00 : f32
    %cst_13 = arith.constant 0.000000e+00 : f32
    %29 = vector.broadcast %cst_12 : f32 to vector<8x256xf32>
    %30 = vector.broadcast %cst_13 : f32 to vector<8x256xf32>
    %31 = arith.select %28, %29, %30 : vector<8x256xi1>, vector<8x256xf32>
    %cst_14 = arith.constant -1.000000e+00 : f32
    %32 = vector.broadcast %cst_14 : f32 to vector<8x256xf32>
    %33 = arith.cmpf oge, %0, %32 : vector<8x256xf32>
    %cst_15 = arith.constant -6.000000e-01 : f32
    %34 = vector.broadcast %cst_15 : f32 to vector<8x256xf32>
    %35 = arith.cmpf olt, %0, %34 : vector<8x256xf32>
    %36 = arith.andi %33, %35 : vector<8x256xi1>
    %cst_16 = arith.constant 1.000000e+00 : f32
    %cst_17 = arith.constant 0.000000e+00 : f32
    %37 = vector.broadcast %cst_16 : f32 to vector<8x256xf32>
    %38 = vector.broadcast %cst_17 : f32 to vector<8x256xf32>
    %39 = arith.select %36, %37, %38 : vector<8x256xi1>, vector<8x256xf32>
    %cst_18 = arith.constant -6.000000e-01 : f32
    %40 = vector.broadcast %cst_18 : f32 to vector<8x256xf32>
    %41 = arith.cmpf oge, %0, %40 : vector<8x256xf32>
    %cst_19 = arith.constant -2.000000e-01 : f32
    %42 = vector.broadcast %cst_19 : f32 to vector<8x256xf32>
    %43 = arith.cmpf olt, %0, %42 : vector<8x256xf32>
    %44 = arith.andi %41, %43 : vector<8x256xi1>
    %cst_20 = arith.constant 1.000000e+00 : f32
    %cst_21 = arith.constant 0.000000e+00 : f32
    %45 = vector.broadcast %cst_20 : f32 to vector<8x256xf32>
    %46 = vector.broadcast %cst_21 : f32 to vector<8x256xf32>
    %47 = arith.select %44, %45, %46 : vector<8x256xi1>, vector<8x256xf32>
    %cst_22 = arith.constant -2.000000e-01 : f32
    %48 = vector.broadcast %cst_22 : f32 to vector<8x256xf32>
    %49 = arith.cmpf oge, %0, %48 : vector<8x256xf32>
    %cst_23 = arith.constant 2.000000e-01 : f32
    %50 = vector.broadcast %cst_23 : f32 to vector<8x256xf32>
    %51 = arith.cmpf olt, %0, %50 : vector<8x256xf32>
    %52 = arith.andi %49, %51 : vector<8x256xi1>
    %cst_24 = arith.constant 1.000000e+00 : f32
    %cst_25 = arith.constant 0.000000e+00 : f32
    %53 = vector.broadcast %cst_24 : f32 to vector<8x256xf32>
    %54 = vector.broadcast %cst_25 : f32 to vector<8x256xf32>
    %55 = arith.select %52, %53, %54 : vector<8x256xi1>, vector<8x256xf32>
    %cst_26 = arith.constant 2.000000e-01 : f32
    %56 = vector.broadcast %cst_26 : f32 to vector<8x256xf32>
    %57 = arith.cmpf oge, %0, %56 : vector<8x256xf32>
    %cst_27 = arith.constant 6.000000e-01 : f32
    %58 = vector.broadcast %cst_27 : f32 to vector<8x256xf32>
    %59 = arith.cmpf olt, %0, %58 : vector<8x256xf32>
    %60 = arith.andi %57, %59 : vector<8x256xi1>
    %cst_28 = arith.constant 1.000000e+00 : f32
    %cst_29 = arith.constant 0.000000e+00 : f32
    %61 = vector.broadcast %cst_28 : f32 to vector<8x256xf32>
    %62 = vector.broadcast %cst_29 : f32 to vector<8x256xf32>
    %63 = arith.select %60, %61, %62 : vector<8x256xi1>, vector<8x256xf32>
    %cst_30 = arith.constant 6.000000e-01 : f32
    %64 = vector.broadcast %cst_30 : f32 to vector<8x256xf32>
    %65 = arith.cmpf oge, %0, %64 : vector<8x256xf32>
    %cst_31 = arith.constant 1.000000e+00 : f32
    %66 = vector.broadcast %cst_31 : f32 to vector<8x256xf32>
    %67 = arith.cmpf olt, %0, %66 : vector<8x256xf32>
    %68 = arith.andi %65, %67 : vector<8x256xi1>
    %cst_32 = arith.constant 1.000000e+00 : f32
    %cst_33 = arith.constant 0.000000e+00 : f32
    %69 = vector.broadcast %cst_32 : f32 to vector<8x256xf32>
    %70 = vector.broadcast %cst_33 : f32 to vector<8x256xf32>
    %71 = arith.select %68, %69, %70 : vector<8x256xi1>, vector<8x256xf32>
    %cst_34 = arith.constant 1.000000e+00 : f32
    %72 = vector.broadcast %cst_34 : f32 to vector<8x256xf32>
    %73 = arith.cmpf oge, %0, %72 : vector<8x256xf32>
    %cst_35 = arith.constant 1.400000e+00 : f32
    %74 = vector.broadcast %cst_35 : f32 to vector<8x256xf32>
    %75 = arith.cmpf olt, %0, %74 : vector<8x256xf32>
    %76 = arith.andi %73, %75 : vector<8x256xi1>
    %cst_36 = arith.constant 1.000000e+00 : f32
    %cst_37 = arith.constant 0.000000e+00 : f32
    %77 = vector.broadcast %cst_36 : f32 to vector<8x256xf32>
    %78 = vector.broadcast %cst_37 : f32 to vector<8x256xf32>
    %79 = arith.select %76, %77, %78 : vector<8x256xi1>, vector<8x256xf32>
    %cst_38 = arith.constant 1.400000e+00 : f32
    %80 = vector.broadcast %cst_38 : f32 to vector<8x256xf32>
    %81 = arith.cmpf oge, %0, %80 : vector<8x256xf32>
    %cst_39 = arith.constant 1.800000e+00 : f32
    %82 = vector.broadcast %cst_39 : f32 to vector<8x256xf32>
    %83 = arith.cmpf olt, %0, %82 : vector<8x256xf32>
    %84 = arith.andi %81, %83 : vector<8x256xi1>
    %cst_40 = arith.constant 1.000000e+00 : f32
    %cst_41 = arith.constant 0.000000e+00 : f32
    %85 = vector.broadcast %cst_40 : f32 to vector<8x256xf32>
    %86 = vector.broadcast %cst_41 : f32 to vector<8x256xf32>
    %87 = arith.select %84, %85, %86 : vector<8x256xi1>, vector<8x256xf32>
    %cst_42 = arith.constant 1.800000e+00 : f32
    %88 = vector.broadcast %cst_42 : f32 to vector<8x256xf32>
    %89 = arith.cmpf oge, %0, %88 : vector<8x256xf32>
    %cst_43 = arith.constant 2.200000e+00 : f32
    %90 = vector.broadcast %cst_43 : f32 to vector<8x256xf32>
    %91 = arith.cmpf olt, %0, %90 : vector<8x256xf32>
    %92 = arith.andi %89, %91 : vector<8x256xi1>
    %cst_44 = arith.constant 1.000000e+00 : f32
    %cst_45 = arith.constant 0.000000e+00 : f32
    %93 = vector.broadcast %cst_44 : f32 to vector<8x256xf32>
    %94 = vector.broadcast %cst_45 : f32 to vector<8x256xf32>
    %95 = arith.select %92, %93, %94 : vector<8x256xi1>, vector<8x256xf32>
    %cst_46 = arith.constant -2.200000e+00 : f32
    %96 = vector.broadcast %cst_46 : f32 to vector<8x256xf32>
    %97 = arith.subf %0, %96 : vector<8x256xf32>
    %cst_47 = arith.constant 2.500000e+00 : f32
    %98 = vector.broadcast %cst_47 : f32 to vector<8x256xf32>
    %99 = arith.mulf %97, %98 : vector<8x256xf32>
    %100 = arith.mulf %99, %15 : vector<8x256xf32>
    %cst_48 = arith.constant -1.400000e+00 : f32
    %101 = vector.broadcast %cst_48 : f32 to vector<8x256xf32>
    %102 = arith.subf %101, %0 : vector<8x256xf32>
    %cst_49 = arith.constant 2.500000e+00 : f32
    %103 = vector.broadcast %cst_49 : f32 to vector<8x256xf32>
    %104 = arith.mulf %102, %103 : vector<8x256xf32>
    %105 = arith.mulf %104, %23 : vector<8x256xf32>
    %106 = arith.addf %100, %105 : vector<8x256xf32>
    %cst_50 = arith.constant -1.800000e+00 : f32
    %107 = vector.broadcast %cst_50 : f32 to vector<8x256xf32>
    %108 = arith.subf %0, %107 : vector<8x256xf32>
    %cst_51 = arith.constant 2.500000e+00 : f32
    %109 = vector.broadcast %cst_51 : f32 to vector<8x256xf32>
    %110 = arith.mulf %108, %109 : vector<8x256xf32>
    %111 = arith.mulf %110, %23 : vector<8x256xf32>
    %cst_52 = arith.constant -1.000000e+00 : f32
    %112 = vector.broadcast %cst_52 : f32 to vector<8x256xf32>
    %113 = arith.subf %112, %0 : vector<8x256xf32>
    %cst_53 = arith.constant 2.500000e+00 : f32
    %114 = vector.broadcast %cst_53 : f32 to vector<8x256xf32>
    %115 = arith.mulf %113, %114 : vector<8x256xf32>
    %116 = arith.mulf %115, %31 : vector<8x256xf32>
    %117 = arith.addf %111, %116 : vector<8x256xf32>
    %cst_54 = arith.constant -1.400000e+00 : f32
    %118 = vector.broadcast %cst_54 : f32 to vector<8x256xf32>
    %119 = arith.subf %0, %118 : vector<8x256xf32>
    %cst_55 = arith.constant 2.500000e+00 : f32
    %120 = vector.broadcast %cst_55 : f32 to vector<8x256xf32>
    %121 = arith.mulf %119, %120 : vector<8x256xf32>
    %122 = arith.mulf %121, %31 : vector<8x256xf32>
    %cst_56 = arith.constant -6.000000e-01 : f32
    %123 = vector.broadcast %cst_56 : f32 to vector<8x256xf32>
    %124 = arith.subf %123, %0 : vector<8x256xf32>
    %cst_57 = arith.constant 2.500000e+00 : f32
    %125 = vector.broadcast %cst_57 : f32 to vector<8x256xf32>
    %126 = arith.mulf %124, %125 : vector<8x256xf32>
    %127 = arith.mulf %126, %39 : vector<8x256xf32>
    %128 = arith.addf %122, %127 : vector<8x256xf32>
    %cst_58 = arith.constant -1.000000e+00 : f32
    %129 = vector.broadcast %cst_58 : f32 to vector<8x256xf32>
    %130 = arith.subf %0, %129 : vector<8x256xf32>
    %cst_59 = arith.constant 2.500000e+00 : f32
    %131 = vector.broadcast %cst_59 : f32 to vector<8x256xf32>
    %132 = arith.mulf %130, %131 : vector<8x256xf32>
    %133 = arith.mulf %132, %39 : vector<8x256xf32>
    %cst_60 = arith.constant -2.000000e-01 : f32
    %134 = vector.broadcast %cst_60 : f32 to vector<8x256xf32>
    %135 = arith.subf %134, %0 : vector<8x256xf32>
    %cst_61 = arith.constant 2.500000e+00 : f32
    %136 = vector.broadcast %cst_61 : f32 to vector<8x256xf32>
    %137 = arith.mulf %135, %136 : vector<8x256xf32>
    %138 = arith.mulf %137, %47 : vector<8x256xf32>
    %139 = arith.addf %133, %138 : vector<8x256xf32>
    %cst_62 = arith.constant -6.000000e-01 : f32
    %140 = vector.broadcast %cst_62 : f32 to vector<8x256xf32>
    %141 = arith.subf %0, %140 : vector<8x256xf32>
    %cst_63 = arith.constant 2.500000e+00 : f32
    %142 = vector.broadcast %cst_63 : f32 to vector<8x256xf32>
    %143 = arith.mulf %141, %142 : vector<8x256xf32>
    %144 = arith.mulf %143, %47 : vector<8x256xf32>
    %cst_64 = arith.constant 2.000000e-01 : f32
    %145 = vector.broadcast %cst_64 : f32 to vector<8x256xf32>
    %146 = arith.subf %145, %0 : vector<8x256xf32>
    %cst_65 = arith.constant 2.500000e+00 : f32
    %147 = vector.broadcast %cst_65 : f32 to vector<8x256xf32>
    %148 = arith.mulf %146, %147 : vector<8x256xf32>
    %149 = arith.mulf %148, %55 : vector<8x256xf32>
    %150 = arith.addf %144, %149 : vector<8x256xf32>
    %cst_66 = arith.constant -2.000000e-01 : f32
    %151 = vector.broadcast %cst_66 : f32 to vector<8x256xf32>
    %152 = arith.subf %0, %151 : vector<8x256xf32>
    %cst_67 = arith.constant 2.500000e+00 : f32
    %153 = vector.broadcast %cst_67 : f32 to vector<8x256xf32>
    %154 = arith.mulf %152, %153 : vector<8x256xf32>
    %155 = arith.mulf %154, %55 : vector<8x256xf32>
    %cst_68 = arith.constant 6.000000e-01 : f32
    %156 = vector.broadcast %cst_68 : f32 to vector<8x256xf32>
    %157 = arith.subf %156, %0 : vector<8x256xf32>
    %cst_69 = arith.constant 2.500000e+00 : f32
    %158 = vector.broadcast %cst_69 : f32 to vector<8x256xf32>
    %159 = arith.mulf %157, %158 : vector<8x256xf32>
    %160 = arith.mulf %159, %63 : vector<8x256xf32>
    %161 = arith.addf %155, %160 : vector<8x256xf32>
    %cst_70 = arith.constant 2.000000e-01 : f32
    %162 = vector.broadcast %cst_70 : f32 to vector<8x256xf32>
    %163 = arith.subf %0, %162 : vector<8x256xf32>
    %cst_71 = arith.constant 2.500000e+00 : f32
    %164 = vector.broadcast %cst_71 : f32 to vector<8x256xf32>
    %165 = arith.mulf %163, %164 : vector<8x256xf32>
    %166 = arith.mulf %165, %63 : vector<8x256xf32>
    %cst_72 = arith.constant 1.000000e+00 : f32
    %167 = vector.broadcast %cst_72 : f32 to vector<8x256xf32>
    %168 = arith.subf %167, %0 : vector<8x256xf32>
    %cst_73 = arith.constant 2.500000e+00 : f32
    %169 = vector.broadcast %cst_73 : f32 to vector<8x256xf32>
    %170 = arith.mulf %168, %169 : vector<8x256xf32>
    %171 = arith.mulf %170, %71 : vector<8x256xf32>
    %172 = arith.addf %166, %171 : vector<8x256xf32>
    %cst_74 = arith.constant 6.000000e-01 : f32
    %173 = vector.broadcast %cst_74 : f32 to vector<8x256xf32>
    %174 = arith.subf %0, %173 : vector<8x256xf32>
    %cst_75 = arith.constant 2.500000e+00 : f32
    %175 = vector.broadcast %cst_75 : f32 to vector<8x256xf32>
    %176 = arith.mulf %174, %175 : vector<8x256xf32>
    %177 = arith.mulf %176, %71 : vector<8x256xf32>
    %cst_76 = arith.constant 1.400000e+00 : f32
    %178 = vector.broadcast %cst_76 : f32 to vector<8x256xf32>
    %179 = arith.subf %178, %0 : vector<8x256xf32>
    %cst_77 = arith.constant 2.500000e+00 : f32
    %180 = vector.broadcast %cst_77 : f32 to vector<8x256xf32>
    %181 = arith.mulf %179, %180 : vector<8x256xf32>
    %182 = arith.mulf %181, %79 : vector<8x256xf32>
    %183 = arith.addf %177, %182 : vector<8x256xf32>
    %cst_78 = arith.constant 1.000000e+00 : f32
    %184 = vector.broadcast %cst_78 : f32 to vector<8x256xf32>
    %185 = arith.subf %0, %184 : vector<8x256xf32>
    %cst_79 = arith.constant 2.500000e+00 : f32
    %186 = vector.broadcast %cst_79 : f32 to vector<8x256xf32>
    %187 = arith.mulf %185, %186 : vector<8x256xf32>
    %188 = arith.mulf %187, %79 : vector<8x256xf32>
    %cst_80 = arith.constant 1.800000e+00 : f32
    %189 = vector.broadcast %cst_80 : f32 to vector<8x256xf32>
    %190 = arith.subf %189, %0 : vector<8x256xf32>
    %cst_81 = arith.constant 2.500000e+00 : f32
    %191 = vector.broadcast %cst_81 : f32 to vector<8x256xf32>
    %192 = arith.mulf %190, %191 : vector<8x256xf32>
    %193 = arith.mulf %192, %87 : vector<8x256xf32>
    %194 = arith.addf %188, %193 : vector<8x256xf32>
    %cst_82 = arith.constant 1.400000e+00 : f32
    %195 = vector.broadcast %cst_82 : f32 to vector<8x256xf32>
    %196 = arith.subf %0, %195 : vector<8x256xf32>
    %cst_83 = arith.constant 2.500000e+00 : f32
    %197 = vector.broadcast %cst_83 : f32 to vector<8x256xf32>
    %198 = arith.mulf %196, %197 : vector<8x256xf32>
    %199 = arith.mulf %198, %87 : vector<8x256xf32>
    %cst_84 = arith.constant 2.200000e+00 : f32
    %200 = vector.broadcast %cst_84 : f32 to vector<8x256xf32>
    %201 = arith.subf %200, %0 : vector<8x256xf32>
    %cst_85 = arith.constant 2.500000e+00 : f32
    %202 = vector.broadcast %cst_85 : f32 to vector<8x256xf32>
    %203 = arith.mulf %201, %202 : vector<8x256xf32>
    %204 = arith.mulf %203, %95 : vector<8x256xf32>
    %205 = arith.addf %199, %204 : vector<8x256xf32>
    %cst_86 = arith.constant -2.200000e+00 : f32
    %206 = vector.broadcast %cst_86 : f32 to vector<8x256xf32>
    %207 = arith.subf %0, %206 : vector<8x256xf32>
    %cst_87 = arith.constant 1.250000e+00 : f32
    %208 = vector.broadcast %cst_87 : f32 to vector<8x256xf32>
    %209 = arith.mulf %207, %208 : vector<8x256xf32>
    %210 = arith.mulf %209, %106 : vector<8x256xf32>
    %cst_88 = arith.constant -1.000000e+00 : f32
    %211 = vector.broadcast %cst_88 : f32 to vector<8x256xf32>
    %212 = arith.subf %211, %0 : vector<8x256xf32>
    %cst_89 = arith.constant 1.250000e+00 : f32
    %213 = vector.broadcast %cst_89 : f32 to vector<8x256xf32>
    %214 = arith.mulf %212, %213 : vector<8x256xf32>
    %215 = arith.mulf %214, %117 : vector<8x256xf32>
    %216 = arith.addf %210, %215 : vector<8x256xf32>
    %cst_90 = arith.constant -1.800000e+00 : f32
    %217 = vector.broadcast %cst_90 : f32 to vector<8x256xf32>
    %218 = arith.subf %0, %217 : vector<8x256xf32>
    %cst_91 = arith.constant 1.250000e+00 : f32
    %219 = vector.broadcast %cst_91 : f32 to vector<8x256xf32>
    %220 = arith.mulf %218, %219 : vector<8x256xf32>
    %221 = arith.mulf %220, %117 : vector<8x256xf32>
    %cst_92 = arith.constant -6.000000e-01 : f32
    %222 = vector.broadcast %cst_92 : f32 to vector<8x256xf32>
    %223 = arith.subf %222, %0 : vector<8x256xf32>
    %cst_93 = arith.constant 1.250000e+00 : f32
    %224 = vector.broadcast %cst_93 : f32 to vector<8x256xf32>
    %225 = arith.mulf %223, %224 : vector<8x256xf32>
    %226 = arith.mulf %225, %128 : vector<8x256xf32>
    %227 = arith.addf %221, %226 : vector<8x256xf32>
    %cst_94 = arith.constant -1.400000e+00 : f32
    %228 = vector.broadcast %cst_94 : f32 to vector<8x256xf32>
    %229 = arith.subf %0, %228 : vector<8x256xf32>
    %cst_95 = arith.constant 1.250000e+00 : f32
    %230 = vector.broadcast %cst_95 : f32 to vector<8x256xf32>
    %231 = arith.mulf %229, %230 : vector<8x256xf32>
    %232 = arith.mulf %231, %128 : vector<8x256xf32>
    %cst_96 = arith.constant -2.000000e-01 : f32
    %233 = vector.broadcast %cst_96 : f32 to vector<8x256xf32>
    %234 = arith.subf %233, %0 : vector<8x256xf32>
    %cst_97 = arith.constant 1.250000e+00 : f32
    %235 = vector.broadcast %cst_97 : f32 to vector<8x256xf32>
    %236 = arith.mulf %234, %235 : vector<8x256xf32>
    %237 = arith.mulf %236, %139 : vector<8x256xf32>
    %238 = arith.addf %232, %237 : vector<8x256xf32>
    %cst_98 = arith.constant -1.000000e+00 : f32
    %239 = vector.broadcast %cst_98 : f32 to vector<8x256xf32>
    %240 = arith.subf %0, %239 : vector<8x256xf32>
    %cst_99 = arith.constant 1.250000e+00 : f32
    %241 = vector.broadcast %cst_99 : f32 to vector<8x256xf32>
    %242 = arith.mulf %240, %241 : vector<8x256xf32>
    %243 = arith.mulf %242, %139 : vector<8x256xf32>
    %cst_100 = arith.constant 2.000000e-01 : f32
    %244 = vector.broadcast %cst_100 : f32 to vector<8x256xf32>
    %245 = arith.subf %244, %0 : vector<8x256xf32>
    %cst_101 = arith.constant 1.250000e+00 : f32
    %246 = vector.broadcast %cst_101 : f32 to vector<8x256xf32>
    %247 = arith.mulf %245, %246 : vector<8x256xf32>
    %248 = arith.mulf %247, %150 : vector<8x256xf32>
    %249 = arith.addf %243, %248 : vector<8x256xf32>
    %cst_102 = arith.constant -6.000000e-01 : f32
    %250 = vector.broadcast %cst_102 : f32 to vector<8x256xf32>
    %251 = arith.subf %0, %250 : vector<8x256xf32>
    %cst_103 = arith.constant 1.250000e+00 : f32
    %252 = vector.broadcast %cst_103 : f32 to vector<8x256xf32>
    %253 = arith.mulf %251, %252 : vector<8x256xf32>
    %254 = arith.mulf %253, %150 : vector<8x256xf32>
    %cst_104 = arith.constant 6.000000e-01 : f32
    %255 = vector.broadcast %cst_104 : f32 to vector<8x256xf32>
    %256 = arith.subf %255, %0 : vector<8x256xf32>
    %cst_105 = arith.constant 1.250000e+00 : f32
    %257 = vector.broadcast %cst_105 : f32 to vector<8x256xf32>
    %258 = arith.mulf %256, %257 : vector<8x256xf32>
    %259 = arith.mulf %258, %161 : vector<8x256xf32>
    %260 = arith.addf %254, %259 : vector<8x256xf32>
    %cst_106 = arith.constant -2.000000e-01 : f32
    %261 = vector.broadcast %cst_106 : f32 to vector<8x256xf32>
    %262 = arith.subf %0, %261 : vector<8x256xf32>
    %cst_107 = arith.constant 1.250000e+00 : f32
    %263 = vector.broadcast %cst_107 : f32 to vector<8x256xf32>
    %264 = arith.mulf %262, %263 : vector<8x256xf32>
    %265 = arith.mulf %264, %161 : vector<8x256xf32>
    %cst_108 = arith.constant 1.000000e+00 : f32
    %266 = vector.broadcast %cst_108 : f32 to vector<8x256xf32>
    %267 = arith.subf %266, %0 : vector<8x256xf32>
    %cst_109 = arith.constant 1.250000e+00 : f32
    %268 = vector.broadcast %cst_109 : f32 to vector<8x256xf32>
    %269 = arith.mulf %267, %268 : vector<8x256xf32>
    %270 = arith.mulf %269, %172 : vector<8x256xf32>
    %271 = arith.addf %265, %270 : vector<8x256xf32>
    %cst_110 = arith.constant 2.000000e-01 : f32
    %272 = vector.broadcast %cst_110 : f32 to vector<8x256xf32>
    %273 = arith.subf %0, %272 : vector<8x256xf32>
    %cst_111 = arith.constant 1.250000e+00 : f32
    %274 = vector.broadcast %cst_111 : f32 to vector<8x256xf32>
    %275 = arith.mulf %273, %274 : vector<8x256xf32>
    %276 = arith.mulf %275, %172 : vector<8x256xf32>
    %cst_112 = arith.constant 1.400000e+00 : f32
    %277 = vector.broadcast %cst_112 : f32 to vector<8x256xf32>
    %278 = arith.subf %277, %0 : vector<8x256xf32>
    %cst_113 = arith.constant 1.250000e+00 : f32
    %279 = vector.broadcast %cst_113 : f32 to vector<8x256xf32>
    %280 = arith.mulf %278, %279 : vector<8x256xf32>
    %281 = arith.mulf %280, %183 : vector<8x256xf32>
    %282 = arith.addf %276, %281 : vector<8x256xf32>
    %cst_114 = arith.constant 6.000000e-01 : f32
    %283 = vector.broadcast %cst_114 : f32 to vector<8x256xf32>
    %284 = arith.subf %0, %283 : vector<8x256xf32>
    %cst_115 = arith.constant 1.250000e+00 : f32
    %285 = vector.broadcast %cst_115 : f32 to vector<8x256xf32>
    %286 = arith.mulf %284, %285 : vector<8x256xf32>
    %287 = arith.mulf %286, %183 : vector<8x256xf32>
    %cst_116 = arith.constant 1.800000e+00 : f32
    %288 = vector.broadcast %cst_116 : f32 to vector<8x256xf32>
    %289 = arith.subf %288, %0 : vector<8x256xf32>
    %cst_117 = arith.constant 1.250000e+00 : f32
    %290 = vector.broadcast %cst_117 : f32 to vector<8x256xf32>
    %291 = arith.mulf %289, %290 : vector<8x256xf32>
    %292 = arith.mulf %291, %194 : vector<8x256xf32>
    %293 = arith.addf %287, %292 : vector<8x256xf32>
    %cst_118 = arith.constant 1.000000e+00 : f32
    %294 = vector.broadcast %cst_118 : f32 to vector<8x256xf32>
    %295 = arith.subf %0, %294 : vector<8x256xf32>
    %cst_119 = arith.constant 1.250000e+00 : f32
    %296 = vector.broadcast %cst_119 : f32 to vector<8x256xf32>
    %297 = arith.mulf %295, %296 : vector<8x256xf32>
    %298 = arith.mulf %297, %194 : vector<8x256xf32>
    %cst_120 = arith.constant 2.200000e+00 : f32
    %299 = vector.broadcast %cst_120 : f32 to vector<8x256xf32>
    %300 = arith.subf %299, %0 : vector<8x256xf32>
    %cst_121 = arith.constant 1.250000e+00 : f32
    %301 = vector.broadcast %cst_121 : f32 to vector<8x256xf32>
    %302 = arith.mulf %300, %301 : vector<8x256xf32>
    %303 = arith.mulf %302, %205 : vector<8x256xf32>
    %304 = arith.addf %298, %303 : vector<8x256xf32>
    %cst_122 = arith.constant -2.200000e+00 : f32
    %305 = vector.broadcast %cst_122 : f32 to vector<8x256xf32>
    %306 = arith.subf %0, %305 : vector<8x256xf32>
    %cst_123 = arith.constant 0.833333313 : f32
    %307 = vector.broadcast %cst_123 : f32 to vector<8x256xf32>
    %308 = arith.mulf %306, %307 : vector<8x256xf32>
    %309 = arith.mulf %308, %216 : vector<8x256xf32>
    %cst_124 = arith.constant -6.000000e-01 : f32
    %310 = vector.broadcast %cst_124 : f32 to vector<8x256xf32>
    %311 = arith.subf %310, %0 : vector<8x256xf32>
    %cst_125 = arith.constant 0.833333313 : f32
    %312 = vector.broadcast %cst_125 : f32 to vector<8x256xf32>
    %313 = arith.mulf %311, %312 : vector<8x256xf32>
    %314 = arith.mulf %313, %227 : vector<8x256xf32>
    %315 = arith.addf %309, %314 : vector<8x256xf32>
    %cst_126 = arith.constant -1.800000e+00 : f32
    %316 = vector.broadcast %cst_126 : f32 to vector<8x256xf32>
    %317 = arith.subf %0, %316 : vector<8x256xf32>
    %cst_127 = arith.constant 0.833333313 : f32
    %318 = vector.broadcast %cst_127 : f32 to vector<8x256xf32>
    %319 = arith.mulf %317, %318 : vector<8x256xf32>
    %320 = arith.mulf %319, %227 : vector<8x256xf32>
    %cst_128 = arith.constant -2.000000e-01 : f32
    %321 = vector.broadcast %cst_128 : f32 to vector<8x256xf32>
    %322 = arith.subf %321, %0 : vector<8x256xf32>
    %cst_129 = arith.constant 0.833333313 : f32
    %323 = vector.broadcast %cst_129 : f32 to vector<8x256xf32>
    %324 = arith.mulf %322, %323 : vector<8x256xf32>
    %325 = arith.mulf %324, %238 : vector<8x256xf32>
    %326 = arith.addf %320, %325 : vector<8x256xf32>
    %cst_130 = arith.constant -1.400000e+00 : f32
    %327 = vector.broadcast %cst_130 : f32 to vector<8x256xf32>
    %328 = arith.subf %0, %327 : vector<8x256xf32>
    %cst_131 = arith.constant 0.833333313 : f32
    %329 = vector.broadcast %cst_131 : f32 to vector<8x256xf32>
    %330 = arith.mulf %328, %329 : vector<8x256xf32>
    %331 = arith.mulf %330, %238 : vector<8x256xf32>
    %cst_132 = arith.constant 2.000000e-01 : f32
    %332 = vector.broadcast %cst_132 : f32 to vector<8x256xf32>
    %333 = arith.subf %332, %0 : vector<8x256xf32>
    %cst_133 = arith.constant 0.833333313 : f32
    %334 = vector.broadcast %cst_133 : f32 to vector<8x256xf32>
    %335 = arith.mulf %333, %334 : vector<8x256xf32>
    %336 = arith.mulf %335, %249 : vector<8x256xf32>
    %337 = arith.addf %331, %336 : vector<8x256xf32>
    %cst_134 = arith.constant -1.000000e+00 : f32
    %338 = vector.broadcast %cst_134 : f32 to vector<8x256xf32>
    %339 = arith.subf %0, %338 : vector<8x256xf32>
    %cst_135 = arith.constant 0.833333313 : f32
    %340 = vector.broadcast %cst_135 : f32 to vector<8x256xf32>
    %341 = arith.mulf %339, %340 : vector<8x256xf32>
    %342 = arith.mulf %341, %249 : vector<8x256xf32>
    %cst_136 = arith.constant 6.000000e-01 : f32
    %343 = vector.broadcast %cst_136 : f32 to vector<8x256xf32>
    %344 = arith.subf %343, %0 : vector<8x256xf32>
    %cst_137 = arith.constant 0.833333313 : f32
    %345 = vector.broadcast %cst_137 : f32 to vector<8x256xf32>
    %346 = arith.mulf %344, %345 : vector<8x256xf32>
    %347 = arith.mulf %346, %260 : vector<8x256xf32>
    %348 = arith.addf %342, %347 : vector<8x256xf32>
    %cst_138 = arith.constant -6.000000e-01 : f32
    %349 = vector.broadcast %cst_138 : f32 to vector<8x256xf32>
    %350 = arith.subf %0, %349 : vector<8x256xf32>
    %cst_139 = arith.constant 0.833333313 : f32
    %351 = vector.broadcast %cst_139 : f32 to vector<8x256xf32>
    %352 = arith.mulf %350, %351 : vector<8x256xf32>
    %353 = arith.mulf %352, %260 : vector<8x256xf32>
    %cst_140 = arith.constant 1.000000e+00 : f32
    %354 = vector.broadcast %cst_140 : f32 to vector<8x256xf32>
    %355 = arith.subf %354, %0 : vector<8x256xf32>
    %cst_141 = arith.constant 0.833333313 : f32
    %356 = vector.broadcast %cst_141 : f32 to vector<8x256xf32>
    %357 = arith.mulf %355, %356 : vector<8x256xf32>
    %358 = arith.mulf %357, %271 : vector<8x256xf32>
    %359 = arith.addf %353, %358 : vector<8x256xf32>
    %cst_142 = arith.constant -2.000000e-01 : f32
    %360 = vector.broadcast %cst_142 : f32 to vector<8x256xf32>
    %361 = arith.subf %0, %360 : vector<8x256xf32>
    %cst_143 = arith.constant 0.833333313 : f32
    %362 = vector.broadcast %cst_143 : f32 to vector<8x256xf32>
    %363 = arith.mulf %361, %362 : vector<8x256xf32>
    %364 = arith.mulf %363, %271 : vector<8x256xf32>
    %cst_144 = arith.constant 1.400000e+00 : f32
    %365 = vector.broadcast %cst_144 : f32 to vector<8x256xf32>
    %366 = arith.subf %365, %0 : vector<8x256xf32>
    %cst_145 = arith.constant 0.833333313 : f32
    %367 = vector.broadcast %cst_145 : f32 to vector<8x256xf32>
    %368 = arith.mulf %366, %367 : vector<8x256xf32>
    %369 = arith.mulf %368, %282 : vector<8x256xf32>
    %370 = arith.addf %364, %369 : vector<8x256xf32>
    %cst_146 = arith.constant 2.000000e-01 : f32
    %371 = vector.broadcast %cst_146 : f32 to vector<8x256xf32>
    %372 = arith.subf %0, %371 : vector<8x256xf32>
    %cst_147 = arith.constant 0.833333313 : f32
    %373 = vector.broadcast %cst_147 : f32 to vector<8x256xf32>
    %374 = arith.mulf %372, %373 : vector<8x256xf32>
    %375 = arith.mulf %374, %282 : vector<8x256xf32>
    %cst_148 = arith.constant 1.800000e+00 : f32
    %376 = vector.broadcast %cst_148 : f32 to vector<8x256xf32>
    %377 = arith.subf %376, %0 : vector<8x256xf32>
    %cst_149 = arith.constant 0.833333313 : f32
    %378 = vector.broadcast %cst_149 : f32 to vector<8x256xf32>
    %379 = arith.mulf %377, %378 : vector<8x256xf32>
    %380 = arith.mulf %379, %293 : vector<8x256xf32>
    %381 = arith.addf %375, %380 : vector<8x256xf32>
    %cst_150 = arith.constant 6.000000e-01 : f32
    %382 = vector.broadcast %cst_150 : f32 to vector<8x256xf32>
    %383 = arith.subf %0, %382 : vector<8x256xf32>
    %cst_151 = arith.constant 0.833333313 : f32
    %384 = vector.broadcast %cst_151 : f32 to vector<8x256xf32>
    %385 = arith.mulf %383, %384 : vector<8x256xf32>
    %386 = arith.mulf %385, %293 : vector<8x256xf32>
    %cst_152 = arith.constant 2.200000e+00 : f32
    %387 = vector.broadcast %cst_152 : f32 to vector<8x256xf32>
    %388 = arith.subf %387, %0 : vector<8x256xf32>
    %cst_153 = arith.constant 0.833333313 : f32
    %389 = vector.broadcast %cst_153 : f32 to vector<8x256xf32>
    %390 = arith.mulf %388, %389 : vector<8x256xf32>
    %391 = arith.mulf %390, %304 : vector<8x256xf32>
    %392 = arith.addf %386, %391 : vector<8x256xf32>
    %393 = tpu.concatenate %7, %315, %326, %337, %348, %359, %370, %381, %392 in 0 : vector<8x256xf32>, vector<8x256xf32>, vector<8x256xf32>, vector<8x256xf32>, vector<8x256xf32>, vector<8x256xf32>, vector<8x256xf32>, vector<8x256xf32>, vector<8x256xf32> -> vector<72x256xf32>
    %394 = arith.truncf %393 : vector<72x256xf32> to vector<72x256xbf16>
    %c0_154 = arith.constant 0 : index
    %c0_155 = arith.constant 0 : index
    %395 = vector.load %arg2[%c0_154, %c0_155] : memref<72x256xbf16, #tpu.memory_space<vmem>>, vector<72x256xbf16>
    tpu.vector_store %arg2[%c0_154, %c0_155], %394 {strides = array<i32>} : memref<72x256xbf16, #tpu.memory_space<vmem>>, vector<72x256xbf16>,
    return
  }
  func.func @transform_0(%arg0: i32) -> (i32, i32) {
    %c0_i32 = arith.constant 0 : i32
    %c0_i32_0 = arith.constant 0 : i32
    return %c0_i32, %arg0 : i32, i32
  }
  func.func @transform_1(%arg0: i32) -> (i32, i32) {
    %c0_i32 = arith.constant 0 : i32
    %c0_i32_0 = arith.constant 0 : i32
    return %c0_i32, %arg0 : i32, i32
  }
}

module attributes {stable_mosaic.version = 11 : i64} {
  func.func @_matmul_kernel(%arg0: i32, %arg1: i32, %arg2: memref<12x288xbf16, #tpu.memory_space<vmem>>, %arg3: memref<288x128xbf16, #tpu.memory_space<vmem>>, %arg4: memref<12x128xf32, #tpu.memory_space<vmem>>, %arg5: memref<12x128xf32, #tpu.memory_space<vmem>>) attributes {dimension_semantics = [#tpu.dimension_semantics<parallel>, #tpu.dimension_semantics<arbitrary>], iteration_bounds = array<i64: 18, 1>, scalar_prefetch = 0 : i64, scratch_operands = 1 : i64, tpu.core_type = #tpu.core_type<tc>, window_params = [{transform_indices = @transform_0, window_bounds = array<i64: 12, 288>}, {transform_indices = @transform_1, window_bounds = array<i64: 288, 128>}, {transform_indices = @transform_2, window_bounds = array<i64: 12, 128>}]} {
    %c0_i32 = arith.constant 0 : i32
    %0 = arith.cmpi eq, %arg1, %c0_i32 : i32
    %1 = arith.extui %0 : i1 to i32
    %c0_i32_0 = arith.constant 0 : i32
    %2 = arith.cmpi ne, %1, %c0_i32_0 : i32
    scf.if %2 {
      %cst_10 = arith.constant 0.000000e+00 : f32
      %12 = vector.broadcast %cst_10 : f32 to vector<12x128xf32>
      %c0_11 = arith.constant 0 : index
      %c0_12 = arith.constant 0 : index
      %13 = vector.load %arg5[%c0_11, %c0_12] : memref<12x128xf32, #tpu.memory_space<vmem>>, vector<12x128xf32>
      tpu.vector_store %arg5[%c0_11, %c0_12], %12 {strides = array<i32>} : memref<12x128xf32, #tpu.memory_space<vmem>>, vector<12x128xf32>,
    } else {
    }
    %c0 = arith.constant 0 : index
    %c0_1 = arith.constant 0 : index
    %3 = vector.load %arg5[%c0, %c0_1] : memref<12x128xf32, #tpu.memory_space<vmem>>, vector<12x128xf32>
    %c0_2 = arith.constant 0 : index
    %c0_3 = arith.constant 0 : index
    %4 = vector.load %arg2[%c0_2, %c0_3] : memref<12x288xbf16, #tpu.memory_space<vmem>>, vector<12x288xbf16>
    %c0_4 = arith.constant 0 : index
    %c0_5 = arith.constant 0 : index
    %5 = vector.load %arg3[%c0_4, %c0_5] : memref<288x128xbf16, #tpu.memory_space<vmem>>, vector<288x128xbf16>
    %cst = arith.constant dense<0.000000e+00> : vector<12x128xf32>
    %6 = tpu.matmul %4, %5, %cst {dimension_numbers = #tpu.dot_dimension_numbers<[1], [0], [0], [1], [0, 0, 1, 1], [], []>} : vector<12x288xbf16>, vector<288x128xbf16>, vector<12x128xf32> -> vector<12x128xf32>
    %7 = arith.addf %3, %6 : vector<12x128xf32>
    %c0_6 = arith.constant 0 : index
    %c0_7 = arith.constant 0 : index
    %8 = vector.load %arg5[%c0_6, %c0_7] : memref<12x128xf32, #tpu.memory_space<vmem>>, vector<12x128xf32>
    tpu.vector_store %arg5[%c0_6, %c0_7], %7 {strides = array<i32>} : memref<12x128xf32, #tpu.memory_space<vmem>>, vector<12x128xf32>,
    %c0_i32_8 = arith.constant 0 : i32
    %9 = arith.cmpi eq, %arg1, %c0_i32_8 : i32
    %10 = arith.extui %9 : i1 to i32
    %c0_i32_9 = arith.constant 0 : i32
    %11 = arith.cmpi ne, %10, %c0_i32_9 : i32
    scf.if %11 {
      %c0_10 = arith.constant 0 : index
      %c0_11 = arith.constant 0 : index
      %12 = vector.load %arg5[%c0_10, %c0_11] : memref<12x128xf32, #tpu.memory_space<vmem>>, vector<12x128xf32>
      %c0_12 = arith.constant 0 : index
      %c0_13 = arith.constant 0 : index
      %13 = vector.load %arg4[%c0_12, %c0_13] : memref<12x128xf32, #tpu.memory_space<vmem>>, vector<12x128xf32>
      tpu.vector_store %arg4[%c0_12, %c0_13], %12 {strides = array<i32>} : memref<12x128xf32, #tpu.memory_space<vmem>>, vector<12x128xf32>,
    } else {
    }
    return
  }
  func.func @transform_0(%arg0: i32, %arg1: i32) -> (i32, i32) {
    %c0_i32 = arith.constant 0 : i32
    %c0_i32_0 = arith.constant 0 : i32
    return %c0_i32, %arg1 : i32, i32
  }
  func.func @transform_1(%arg0: i32, %arg1: i32) -> (i32, i32) {
    %c0_i32 = arith.constant 0 : i32
    return %arg1, %arg0 : i32, i32
  }
  func.func @transform_2(%arg0: i32, %arg1: i32) -> (i32, i32) {
    %c0_i32 = arith.constant 0 : i32
    %c0_i32_0 = arith.constant 0 : i32
    return %c0_i32, %arg0 : i32, i32
  }
}

</mosaic_0001>

<llo_original>
// kernel: _lambda_.4
$region0: #{_lambda_.4}
  #allocation0 [shape = 'u32[]', space=smem, size = 0x4, offset = 0x4, fixed_abs, tag = 'smem constant byte address 0x4 - core index']
  #allocation1 [shape = 'u32[144,128]{1,0:T(1,128)}', space=vmem, size = 0x12000, scoped, tag = 'internal scratch']
  %s0 = inlined_call_operand.vmem [shape: f32[4,512], index: 0, kind: input, shape index: {}]
  %s1 = inlined_call_operand.vmem [shape: bf16[36,512], index: 1, kind: output, shape index: {}]
  %s2 = sld [smem:[#allocation0]]
  $region71: #{_lambda_.4} parent=0
    _
  %s4 = ssub.s32 1, %s2
  %s5 = scalar_select 0, %s4, %s2
  $region1: #{_lambda_.4} parent=0
    #allocation2 [shape = 'u8[40960]{0}', space=vmem, size = 0xa000, scoped, tag = 'output window, operand 0']
    loop: start=0, step=1, limit=4
    $region2: #{_lambda_.4} parent=1 // loop_pre_header
      _
    $region3: #{_lambda_.4} parent=1 // loop_header
      %s7 = sphi 0, %s11
      %p8 = scmp.ge.s32.totalorder %s7, 4
      %s17 = sphi 0, %s19
      %s20 = sphi 0, %s17
      %s21 = sphi 0, %s20
      %s37 = sphi 0, %s21
      %s43 = sphi 0, %s45
      %s46 = sphi 0, %s43
      %s47 = sphi 0, %s46
      %s63 = sphi 0, %s47
    $region4: #{_lambda_.4} parent=1 // loop_header_branch
      %10 = sbr.rel (%p8) target = $region8
    $region5: #{_lambda_.4} parent=1 // loop_body
      %s12 = ssub.s32 %s7, 1
      %s13 = ssub.s32 %s7, 2
      %s14 = sadd.s32 %s7, 1
      %s15 = ssub.s32 %s7, %s14
      %p16 = scmp.eq.s32.totalorder %s15, 0
      %s18 = sadd.s32 %s17, 1
      %s19 = scalar_select %p16, %s17, %s18
      %p22 = pneg %p16
      %p23 = scmp.eq.s32.totalorder %s7, 1
      %p24 = por %p22, %p23
      %p25 = scmp.ne.s32.totalorder %s17, %s20
      %p26 = scmp.eq.s32.totalorder %s7, 0
      %p27 = por %p25, %p26
      %p28 = scmp.ne.s32.totalorder %s17, %s20
      %p29 = scmp.eq.s32.totalorder %s12, 1
      %p30 = por %p28, %p29
      %p31 = scmp.ne.s32.totalorder %s20, %s21
      %p32 = scmp.eq.s32.totalorder %s12, 0
      %p33 = por %p31, %p32
      %p34 = scmp.ne.s32.totalorder %s20, %s21
      %p35 = scmp.eq.s32.totalorder %s13, 1
      %p36 = por %p34, %p35
      %p38 = scmp.ne.s32.totalorder %s21, %s37
      %p39 = scmp.eq.s32.totalorder %s13, 0
      %p40 = por %p38, %p39
      %s41 = ssub.s32 %s7, %s14
      %p42 = scmp.eq.s32.totalorder %s41, 0
      %s44 = sadd.s32 %s43, 1
      %s45 = scalar_select %p42, %s43, %s44
      %p48 = pneg %p42
      %p49 = scmp.eq.s32.totalorder %s7, 1
      %p50 = por %p48, %p49
      %p51 = scmp.ne.s32.totalorder %s43, %s46
      %p52 = scmp.eq.s32.totalorder %s7, 0
      %p53 = por %p51, %p52
      %p54 = scmp.ne.s32.totalorder %s43, %s46
      %p55 = scmp.eq.s32.totalorder %s12, 1
      %p56 = por %p54, %p55
      %p57 = scmp.ne.s32.totalorder %s46, %s47
      %p58 = scmp.eq.s32.totalorder %s12, 0
      %p59 = por %p57, %p58
      %p60 = scmp.ne.s32.totalorder %s46, %s47
      %p61 = scmp.eq.s32.totalorder %s13, 1
      %p62 = por %p60, %p61
      %p64 = scmp.ne.s32.totalorder %s47, %s63
      %p65 = scmp.eq.s32.totalorder %s13, 0
      %p66 = por %p64, %p65
      %p67 = scmp.le.s32.totalorder 1, %s7
      %p68 = scmp.lt.s32.totalorder %s7, 3
      %p69 = pnand %p67, %p68
      %p70 = pneg %p69
      // Predicated region
      $region9: #{_lambda_.4} parent=5 // pred_check
        _
      $region10: #{_lambda_.4} parent=5 // pred_check_branch
        %72 = sbr.rel (%p69) target = $region12
      $region11: #{_lambda_.4} parent=5 // pred_region
        %s73 = ssub.s32 %s7, 1
      $region12: #{_lambda_.4} parent=5 // pred_fallthru
        _
      %p74 = scmp.lt.s32.totalorder %s7, 2
      // Predicated region
      $region13: #{_lambda_.4} parent=5 // pred_check
        %p75 = pneg %p74
      $region14: #{_lambda_.4} parent=5 // pred_check_branch
        %77 = sbr.rel (%p75) target = $region16
      $region15: #{_lambda_.4} parent=5 // pred_region
        // Predicated region
        $region17: #{_lambda_.4} parent=15 // pred_check
          %p78 = pneg %p27
        $region18: #{_lambda_.4} parent=15 // pred_check_branch
          %80 = sbr.rel (%p78) target = $region20
        $region19: #{_lambda_.4} parent=15 // pred_region
          %s81 = smul.u32 2, %s7
          %p82 = scmp.lt.s32.totalorder %s81, 3
          %s83 = scalar_select %p82, %s81, 3
          %s84 = smul.addr %s83, 4
          %s85 = scalar_lea.vmem %s0, %s84
          %s86 = smul.u32 2, %s7
        $region20: #{_lambda_.4} parent=15 // pred_fallthru
          _
      $region16: #{_lambda_.4} parent=5 // pred_fallthru
        _
      %p87 = scmp.le.s32.totalorder 1, %s7
      %p88 = scmp.lt.s32.totalorder %s7, 3
      %p89 = pnand %p87, %p88
      %p90 = pneg %p89
      // Predicated region
      $region21: #{_lambda_.4} parent=5 // pred_check
        _
      $region22: #{_lambda_.4} parent=5 // pred_check_branch
        %92 = sbr.rel (%p89) target = $region24
      $region23: #{_lambda_.4} parent=5 // pred_region
        %s93 = ssub.s32 %s7, 1
        %s94 = smul.u32 2, %s12
        %p95 = scmp.lt.s32.totalorder %s94, 3
        %s96 = scalar_select %p95, %s94, 3
        %s97 = smul.addr %s96, 4
        %s98 = scalar_lea.vmem %s0, %s97
        %p99 = pneg %p33
        %p100 = pneg %p30
        %p101 = pneg %p59
        %p102 = pneg %p56
        %s103 = sand.u32 %s46, 1
        %s104 = sand.u32 %s46, 1
        %s105 = smul.addr %s104, 40
        %s106 = scalar_lea.vmem [#allocation2], %s105
        %s107 = smul.u32 2, %s12
        %p108 = scmp.lt.s32.totalorder %s107, 3
        %s109 = scalar_select %p108, %s107, 3
        %s110 = smul.addr %s109, 4
        %s111 = scalar_lea.vmem %s0, %s110
        %s112 = smul.u32 2, %s12
        %s113 = smul.u32 2, %s12
        %v114 = vld [vmem:[%s111] sm:$0xff]
        %v115 = vsub.f32 0.0, %v114
        %v116 = vmul.f32 %v115, 1.442695
        %v117 = vpow.pop %v116
        %v118 = vadd.f32 %v117, 1.0
        %v119 = vrcp.pop %v118
        %v120 = vmul.f32 %v114, %v119
        %vm121 = vcmp.ge.f32.partialorder %v114, -2.2
        %vm122 = vcmp.lt.f32.partialorder %v114, -1.8
        %vm123 = vmand %vm121, %vm122
        %v124 = vsel %vm123, 1.0, 0.0
        %vm125 = vcmp.ge.f32.partialorder %v114, -1.8
        %vm126 = vcmp.lt.f32.partialorder %v114, -1.4
        %vm127 = vmand %vm125, %vm126
        %v128 = vsel %vm127, 1.0, 0.0
        %vm129 = vcmp.ge.f32.partialorder %v114, -1.4
        %vm130 = vcmp.lt.f32.partialorder %v114, -1.0
        %vm131 = vmand %vm129, %vm130
        %v132 = vsel %vm131, 1.0, 0.0
        %vm133 = vcmp.ge.f32.partialorder %v114, -1.0
        %vm134 = vcmp.lt.f32.partialorder %v114, -0.6
        %vm135 = vmand %vm133, %vm134
        %v136 = vsel %vm135, 1.0, 0.0
        %vm137 = vcmp.ge.f32.partialorder %v114, -0.6
        %vm138 = vcmp.lt.f32.partialorder %v114, -0.2
        %vm139 = vmand %vm137, %vm138
        %v140 = vsel %vm139, 1.0, 0.0
        %vm141 = vcmp.ge.f32.partialorder %v114, -0.2
        %vm142 = vcmp.lt.f32.partialorder %v114, 0.2
        %vm143 = vmand %vm141, %vm142
        %v144 = vsel %vm143, 1.0, 0.0
        %vm145 = vcmp.ge.f32.partialorder %v114, 0.2
        %vm146 = vcmp.lt.f32.partialorder %v114, 0.6
        %vm147 = vmand %vm145, %vm146
        %v148 = vsel %vm147, 1.0, 0.0
        %vm149 = vcmp.ge.f32.partialorder %v114, 0.6
        %vm150 = vcmp.lt.f32.partialorder %v114, 1.0
        %vm151 = vmand %vm149, %vm150
        %v152 = vsel %vm151, 1.0, 0.0
        %vm153 = vcmp.ge.f32.partialorder %v114, 1.0
        %vm154 = vcmp.lt.f32.partialorder %v114, 1.4
        %vm155 = vmand %vm153, %vm154
        %v156 = vsel %vm155, 1.0, 0.0
        %vm157 = vcmp.ge.f32.partialorder %v114, 1.4
        %vm158 = vcmp.lt.f32.partialorder %v114, 1.8
        %vm159 = vmand %vm157, %vm158
        %v160 = vsel %vm159, 1.0, 0.0
        %vm161 = vcmp.ge.f32.partialorder %v114, 1.8
        %vm162 = vcmp.lt.f32.partialorder %v114, 2.2
        %vm163 = vmand %vm161, %vm162
        %v164 = vsel %vm163, 1.0, 0.0
        %v165 = vsub.f32 %v114, -2.2
        %v166 = vmul.f32 %v165, 2.5
        %v167 = vmul.f32 %v166, %v124
        %v168 = vsub.f32 -1.4, %v114
        %v169 = vmul.f32 %v168, 2.5
        %v170 = vmul.f32 %v169, %v128
        %v171 = vadd.f32 %v167, %v170
        %v172 = vsub.f32 %v114, -1.8
        %v173 = vmul.f32 %v172, 2.5
        %v174 = vmul.f32 %v173, %v128
        %v175 = vsub.f32 -1.0, %v114
        %v176 = vmul.f32 %v175, 2.5
        %v177 = vmul.f32 %v176, %v132
        %v178 = vadd.f32 %v174, %v177
        %v179 = vsub.f32 %v114, -1.4
        %v180 = vmul.f32 %v179, 2.5
        %v181 = vmul.f32 %v180, %v132
        %v182 = vsub.f32 -0.6, %v114
        %v183 = vmul.f32 %v182, 2.5
        %v184 = vmul.f32 %v183, %v136
        %v185 = vadd.f32 %v181, %v184
        %v186 = vsub.f32 %v114, -1.0
        %v187 = vmul.f32 %v186, 2.5
        %v188 = vmul.f32 %v187, %v136
        %v189 = vsub.f32 -0.2, %v114
        %v190 = vmul.f32 %v189, 2.5
        %v191 = vmul.f32 %v190, %v140
        %v192 = vadd.f32 %v188, %v191
        %v193 = vsub.f32 %v114, -0.6
        %v194 = vmul.f32 %v193, 2.5
        %v195 = vmul.f32 %v194, %v140
        %v196 = vsub.f32 0.2, %v114
        %v197 = vmul.f32 %v196, 2.5
        %v198 = vmul.f32 %v197, %v144
        %v199 = vadd.f32 %v195, %v198
        %v200 = vsub.f32 %v114, -0.2
        %v201 = vmul.f32 %v200, 2.5
        %v202 = vmul.f32 %v201, %v144
        %v203 = vsub.f32 0.6, %v114
        %v204 = vmul.f32 %v203, 2.5
        %v205 = vmul.f32 %v204, %v148
        %v206 = vadd.f32 %v202, %v205
        %v207 = vsub.f32 %v114, 0.2
        %v208 = vmul.f32 %v207, 2.5
        %v209 = vmul.f32 %v208, %v148
        %v210 = vsub.f32 1.0, %v114
        %v211 = vmul.f32 %v210, 2.5
        %v212 = vmul.f32 %v211, %v152
        %v213 = vadd.f32 %v209, %v212
        %v214 = vsub.f32 %v114, 0.6
        %v215 = vmul.f32 %v214, 2.5
        %v216 = vmul.f32 %v215, %v152
        %v217 = vsub.f32 1.4, %v114
        %v218 = vmul.f32 %v217, 2.5
        %v219 = vmul.f32 %v218, %v156
        %v220 = vadd.f32 %v216, %v219
        %v221 = vsub.f32 %v114, 1.0
        %v222 = vmul.f32 %v221, 2.5
        %v223 = vmul.f32 %v222, %v156
        %v224 = vsub.f32 1.8, %v114
        %v225 = vmul.f32 %v224, 2.5
        %v226 = vmul.f32 %v225, %v160
        %v227 = vadd.f32 %v223, %v226
        %v228 = vsub.f32 %v114, 1.4
        %v229 = vmul.f32 %v228, 2.5
        %v230 = vmul.f32 %v229, %v160
        %v231 = vsub.f32 2.2, %v114
        %v232 = vmul.f32 %v231, 2.5
        %v233 = vmul.f32 %v232, %v164
        %v234 = vadd.f32 %v230, %v233
        %v235 = vmul.f32 %v165, 1.25
        %v236 = vmul.f32 %v235, %v171
        %v237 = vmul.f32 %v175, 1.25
        %v238 = vmul.f32 %v237, %v178
        %v239 = vadd.f32 %v236, %v238
        %v240 = vmul.f32 %v172, 1.25
        %v241 = vmul.f32 %v240, %v178
        %v242 = vmul.f32 %v182, 1.25
        %v243 = vmul.f32 %v242, %v185
        %v244 = vadd.f32 %v241, %v243
        %v245 = vmul.f32 %v179, 1.25
        %v246 = vmul.f32 %v245, %v185
        %v247 = vmul.f32 %v189, 1.25
        %v248 = vmul.f32 %v247, %v192
        %v249 = vadd.f32 %v246, %v248
        %v250 = vmul.f32 %v186, 1.25
        %v251 = vmul.f32 %v250, %v192
        %v252 = vmul.f32 %v196, 1.25
        %v253 = vmul.f32 %v252, %v199
        %v254 = vadd.f32 %v251, %v253
        %v255 = vmul.f32 %v193, 1.25
        %v256 = vmul.f32 %v255, %v199
        %v257 = vmul.f32 %v203, 1.25
        %v258 = vmul.f32 %v257, %v206
        %v259 = vadd.f32 %v256, %v258
        %v260 = vmul.f32 %v200, 1.25
        %v261 = vmul.f32 %v260, %v206
        %v262 = vmul.f32 %v210, 1.25
        %v263 = vmul.f32 %v262, %v213
        %v264 = vadd.f32 %v261, %v263
        %v265 = vmul.f32 %v207, 1.25
        %v266 = vmul.f32 %v265, %v213
        %v267 = vmul.f32 %v217, 1.25
        %v268 = vmul.f32 %v267, %v220
        %v269 = vadd.f32 %v266, %v268
        %v270 = vmul.f32 %v214, 1.25
        %v271 = vmul.f32 %v270, %v220
        %v272 = vmul.f32 %v224, 1.25
        %v273 = vmul.f32 %v272, %v227
        %v274 = vadd.f32 %v271, %v273
        %v275 = vmul.f32 %v221, 1.25
        %v276 = vmul.f32 %v275, %v227
        %v277 = vmul.f32 %v231, 1.25
        %v278 = vmul.f32 %v277, %v234
        %v279 = vadd.f32 %v276, %v278
        %v280 = vmul.f32 %v165, 0.8333333
        %v281 = vmul.f32 %v280, %v239
        %v282 = vmul.f32 %v182, 0.8333333
        %v283 = vmul.f32 %v282, %v244
        %v284 = vadd.f32 %v281, %v283
        %v285 = vmul.f32 %v172, 0.8333333
        %v286 = vmul.f32 %v285, %v244
        %v287 = vmul.f32 %v189, 0.8333333
        %v288 = vmul.f32 %v287, %v249
        %v289 = vadd.f32 %v286, %v288
        %v290 = vmul.f32 %v179, 0.8333333
        %v291 = vmul.f32 %v290, %v249
        %v292 = vmul.f32 %v196, 0.8333333
        %v293 = vmul.f32 %v292, %v254
        %v294 = vadd.f32 %v291, %v293
        %v295 = vmul.f32 %v186, 0.8333333
        %v296 = vmul.f32 %v295, %v254
        %v297 = vmul.f32 %v203, 0.8333333
        %v298 = vmul.f32 %v297, %v259
        %v299 = vadd.f32 %v296, %v298
        %v300 = vmul.f32 %v193, 0.8333333
        %v301 = vmul.f32 %v300, %v259
        %v302 = vmul.f32 %v210, 0.8333333
        %v303 = vmul.f32 %v302, %v264
        %v304 = vadd.f32 %v301, %v303
        %v305 = vmul.f32 %v200, 0.8333333
        %v306 = vmul.f32 %v305, %v264
        %v307 = vmul.f32 %v217, 0.8333333
        %v308 = vmul.f32 %v307, %v269
        %v309 = vadd.f32 %v306, %v308
        %v310 = vmul.f32 %v207, 0.8333333
        %v311 = vmul.f32 %v310, %v269
        %v312 = vmul.f32 %v224, 0.8333333
        %v313 = vmul.f32 %v312, %v274
        %v314 = vadd.f32 %v311, %v313
        %v315 = vmul.f32 %v214, 0.8333333
        %v316 = vmul.f32 %v315, %v274
        %v317 = vmul.f32 %v231, 0.8333333
        %v318 = vmul.f32 %v317, %v279
        %v319 = vadd.f32 %v316, %v318
        %v321 = vcombine.high %v120, %v120
        %v324 = vcombine.low %v284, %v284
        %v327 = vcombine.high %v289, %v289
        %v330 = vcombine.low %v294, %v294
        %v333 = vcombine.high %v299, %v299
        %v336 = vcombine.low %v304, %v304
        %v339 = vcombine.high %v309, %v309
        %v342 = vcombine.low %v314, %v314
        %v345 = vcombine.high %v319, %v319
        %vm347 = vcmask 1043456
        %v348 = vsel %vm347, %v120, %v324
        %v349 = vsel %vm347, %v321, %v284
        %v350 = vsel %vm347, %v289, %v330
        %v351 = vsel %vm347, %v327, %v294
        %v352 = vsel %vm347, %v299, %v336
        %v353 = vsel %vm347, %v333, %v304
        %v354 = vsel %vm347, %v309, %v342
        %v355 = vsel %vm347, %v339, %v314
        %v356 = vpack.c.bf16 %v350, %v348
        %v357 = vpack.c.bf16 %v351, %v349
        %v358 = vpack.c.bf16 %v354, %v352
        %v359 = vpack.c.bf16 %v355, %v353
        %v360 = vpack.c.bf16 %v319, %v319
        %v361 = vpack.c.bf16 %v345, %v345
        %v368 = vunpack.c.l.b16 %v356
        %v369 = vunpack.c.l.b16 %v357
        %v370 = vunpack.c.h.b16 %v356
        %v371 = vunpack.c.h.b16 %v357
        %v372 = vunpack.c.l.b16 %v358
        %v373 = vunpack.c.l.b16 %v359
        %v374 = vunpack.c.h.b16 %v358
        %v375 = vunpack.c.h.b16 %v359
        %v376 = vunpack.c.l.b16 %v360
        %v377 = vunpack.c.l.b16 %v361
        %v378 = vpack.c.b16 %v369, %v368
        %v379 = vpack.c.b16 %v371, %v370
        %v380 = vpack.c.b16 %v373, %v372
        %v381 = vpack.c.b16 %v375, %v374
        %v382 = vpack.c.b16 %v377, %v376
        %388 = vst [vmem:[%s106] sm:$0xff] %v378
        %389 = vst [vmem:[%s106 + $0x8] sm:$0xff] %v379
        %390 = vst [vmem:[%s106 + $0x10] sm:$0xff] %v380
        %391 = vst [vmem:[%s106 + $0x18] sm:$0xff] %v381
        %392 = vst [vmem:[%s106 + $0x20] sm:$0x33] %v382
        %s393 = sand.u32 %s46, 1
        %s394 = sand.u32 %s46, 1
        %s395 = smul.addr %s394, 40
        %s396 = scalar_lea.vmem [#allocation2], %s395
        // Predicated region
        $region25: #{_lambda_.4} parent=23 // pred_check
          %p397 = pneg %p56
        $region26: #{_lambda_.4} parent=23 // pred_check_branch
          %399 = sbr.rel (%p397) target = $region28
        $region27: #{_lambda_.4} parent=23 // pred_region
          %s400 = smul.u32 2, %s12
          %s401 = smul.addr %s400, 4
          %s402 = scalar_lea.vmem %s1, %s401
          // Predicated region
          $region29: #{_lambda_.4} parent=27 // pred_check
            _
          $region30: #{_lambda_.4} parent=27 // pred_check_branch
            %404 = sbr.rel (0) target = $region32
          $region31: #{_lambda_.4} parent=27 // pred_region
            // Predicated region
            $region33: #{_lambda_.4} parent=31 // pred_check
              _
            $region34: #{_lambda_.4} parent=31 // pred_check_branch
              %406 = sbr.rel (0) target = $region36
            $region35: #{_lambda_.4} parent=31 // pred_region
              // Predicated region
              $region48: #{_lambda_.4} parent=35 // pred_check
                _
              $region49: #{_lambda_.4} parent=35 // pred_check_branch
                %429 = sbr.rel (0) target = $region51
              $region50: #{_lambda_.4} parent=35 // pred_region
                loop: start=0, step=1, limit=1
                $region52: #{_lambda_.4} parent=50 // loop_pre_header
                  _
                $region53: #{_lambda_.4} parent=50 // loop_header
                  %s431 = sphi 0, %s435
                  %p432 = scmp.ge.s32.totalorder %s431, 1
                  %s436 = sphi %s396, %s396
                  %s437 = sphi %s402, %s402
                $region54: #{_lambda_.4} parent=50 // loop_header_branch
                  %434 = sbr.rel (%p432) target = $region58
                $region55: #{_lambda_.4} parent=50 // loop_body
                  %v438 = vld [vmem:[%s436] sm:$0xff]
                  %439 = vst [vmem:[%s437] sm:$0xff] %v438
                  %v440 = vld [vmem:[%s436 + $0x8] sm:$0xff]
                  %441 = vst [vmem:[%s437 + $0x10] sm:$0xff] %v440
                  %v442 = vld [vmem:[%s436 + $0x10] sm:$0xff]
                  %443 = vst [vmem:[%s437 + $0x20] sm:$0xff] %v442
                  %v444 = vld [vmem:[%s436 + $0x18] sm:$0xff]
                  %445 = vst [vmem:[%s437 + $0x30] sm:$0xff] %v444
                  %v446 = vld [vmem:[%s436 + $0x20] sm:$0xff]
                  %447 = vst [vmem:[%s437 + $0x40] sm:$0xff] %v446
                $region56: #{_lambda_.4} parent=50 // loop_footer
                  %s435 = sadd.s32 1, %s431
                $region57: #{_lambda_.4} parent=50 // loop_footer_branch
                  %430 = sbr.rel target = $region53
                $region58: #{_lambda_.4} parent=50 // loop_exit
                  _
              $region51: #{_lambda_.4} parent=35 // pred_fallthru
                _
              // Predicated region
              $region59: #{_lambda_.4} parent=35 // pred_check
                _
              $region60: #{_lambda_.4} parent=35 // pred_check_branch
                %449 = sbr.rel target = $region62
              $region61: #{_lambda_.4} parent=35 // pred_region
                _
              $region62: #{_lambda_.4} parent=35 // pred_fallthru
                _
            $region36: #{_lambda_.4} parent=31 // pred_fallthru
              _
            // Predicated region
            $region37: #{_lambda_.4} parent=31 // pred_check
              _
            $region38: #{_lambda_.4} parent=31 // pred_check_branch
              %408 = sbr.rel target = $region40
            $region39: #{_lambda_.4} parent=31 // pred_region
              loop: start=0, step=1, limit=1
              $region41: #{_lambda_.4} parent=39 // loop_pre_header
                _
              $region42: #{_lambda_.4} parent=39 // loop_header
                %s411 = sphi 0, %s415
                %p412 = scmp.ge.s32.totalorder %s411, 1
                %s416 = sphi %s396, %s396
                %s417 = sphi %s402, %s402
              $region43: #{_lambda_.4} parent=39 // loop_header_branch
                %414 = sbr.rel (%p412) target = $region47
              $region44: #{_lambda_.4} parent=39 // loop_body
                %v418 = vld [vmem:[%s416] sm:$0xff]
                %419 = vst [vmem:[%s417] sm:$0xff] %v418
                %v420 = vld [vmem:[%s416 + $0x8] sm:$0xff]
                %421 = vst [vmem:[%s417 + $0x10] sm:$0xff] %v420
                %v422 = vld [vmem:[%s416 + $0x10] sm:$0xff]
                %423 = vst [vmem:[%s417 + $0x20] sm:$0xff] %v422
                %v424 = vld [vmem:[%s416 + $0x18] sm:$0xff]
                %425 = vst [vmem:[%s417 + $0x30] sm:$0xff] %v424
                %v426 = vld [vmem:[%s416 + $0x20] sm:$0xff]
                %427 = vst [vmem:[%s417 + $0x40] sm:$0xff] %v426
              $region45: #{_lambda_.4} parent=39 // loop_footer
                %s415 = sadd.s32 1, %s411
              $region46: #{_lambda_.4} parent=39 // loop_footer_branch
                %410 = sbr.rel target = $region42
              $region47: #{_lambda_.4} parent=39 // loop_exit
                _
            $region40: #{_lambda_.4} parent=31 // pred_fallthru
              _
          $region32: #{_lambda_.4} parent=27 // pred_fallthru
            _
          %450 = vnop
        $region28: #{_lambda_.4} parent=23 // pred_fallthru
          _
      $region24: #{_lambda_.4} parent=5 // pred_fallthru
        _
      %p451 = scmp.le.s32.totalorder 2, %s7
      // Predicated region
      $region63: #{_lambda_.4} parent=5 // pred_check
        %p452 = pneg %p451
      $region64: #{_lambda_.4} parent=5 // pred_check_branch
        %454 = sbr.rel (%p452) target = $region66
      $region65: #{_lambda_.4} parent=5 // pred_region
        %s455 = ssub.s32 %s7, 2
        // Predicated region
        $region67: #{_lambda_.4} parent=65 // pred_check
          %p456 = pneg %p62
        $region68: #{_lambda_.4} parent=65 // pred_check_branch
          %458 = sbr.rel (%p456) target = $region70
        $region69: #{_lambda_.4} parent=65 // pred_region
          %s459 = sand.u32 %s47, 1
          %s460 = sand.u32 %s47, 1
          %s461 = smul.addr %s460, 40
          %s462 = scalar_lea.vmem [#allocation2], %s461
        $region70: #{_lambda_.4} parent=65 // pred_fallthru
          _
      $region66: #{_lambda_.4} parent=5 // pred_fallthru
        _
    $region6: #{_lambda_.4} parent=1 // loop_footer
      %s11 = sadd.s32 1, %s7
    $region7: #{_lambda_.4} parent=1 // loop_footer_branch
      %6 = sbr.rel target = $region3
    $region8: #{_lambda_.4} parent=1 // loop_exit
      _

// kernel: _lambda_.5
$region0: #{_lambda_.5}
  #allocation0 [shape = 'u32[]', space=smem, size = 0x4, offset = 0x4, fixed_abs, tag = 'smem constant byte address 0x4 - core index']
  #allocation1 [shape = 'u32[144,128]{1,0:T(1,128)}', space=vmem, size = 0x12000, scoped, tag = 'internal scratch']
  #allocation2 [shape = 'f32[32,128]{1,0:T(8,128)}', space=vmem, size = 0x4000, scoped, tag = 'scratch operand']
  %s0 = inlined_call_operand.vmem [shape: bf16[32,144], index: 0, kind: input, shape index: {}]
  %s1 = inlined_call_operand.vmem [shape: bf16[144,640], index: 1, kind: input, shape index: {}]
  %s2 = inlined_call_operand.vmem [shape: f32[32,640], index: 2, kind: output, shape index: {}]
  %s3 = sld [smem:[#allocation0]]
  $region124: #{_lambda_.5} parent=0
    _
  %s5 = ssub.s32 1, %s3
  %s6 = scalar_select 0, %s5, %s3
  $region1: #{_lambda_.5} parent=0
    #allocation3 [shape = 'u8[73728]{0}', space=vmem, size = 0x12000, scoped, tag = 'input window, operand 1']
    #allocation4 [shape = 'u8[32768]{0}', space=vmem, size = 0x8000, scoped, tag = 'output window, operand 0']
    loop: start=0, step=1, limit=7
    $region2: #{_lambda_.5} parent=1 // loop_pre_header
      _
    $region3: #{_lambda_.5} parent=1 // loop_header
      %s8 = sphi 0, %s12
      %p9 = scmp.ge.s32.totalorder %s8, 7
      %s15 = sphi 0, %s27
      %s16 = sphi 0, %s23
      %s17 = sphi 0, %s15
      %s18 = sphi 0, %s16
      %s19 = sphi 0, %s17
      %s20 = sphi 0, %s18
      %s30 = sphi 0, %s32
      %s33 = sphi 0, %s30
      %s34 = sphi 0, %s33
      %s50 = sphi 0, %s34
      %s58 = sphi 0, %s60
      %s61 = sphi 0, %s58
      %s62 = sphi 0, %s61
      %s78 = sphi 0, %s62
      %s84 = sphi 0, %s86
      %s87 = sphi 0, %s84
      %s88 = sphi 0, %s87
      %s104 = sphi 0, %s88
    $region4: #{_lambda_.5} parent=1 // loop_header_branch
      %11 = sbr.rel (%p9) target = $region8
    $region5: #{_lambda_.5} parent=1 // loop_body
      %s13 = ssub.s32 %s8, 1
      %s14 = ssub.s32 %s8, 2
      %s21 = sadd.s32 1, %s16
      %p22 = scmp.ge.s32.totalorder %s21, 1
      %s23 = scalar_select %p22, 0, %s21
      %s24 = sadd.s32 1, %s15
      %s25 = scalar_select %p22, %s24, %s15
      %p26 = scmp.ge.s32.totalorder %s25, 5
      %s27 = scalar_select %p26, 0, %s25
      %s28 = ssub.s32 %s16, %s23
      %p29 = scmp.eq.s32.totalorder %s28, 0
      %s31 = sadd.s32 %s30, 1
      %s32 = scalar_select %p29, %s30, %s31
      %p35 = pneg %p29
      %p36 = scmp.eq.s32.totalorder %s8, 4
      %p37 = por %p35, %p36
      %p38 = scmp.ne.s32.totalorder %s30, %s33
      %p39 = scmp.eq.s32.totalorder %s8, 0
      %p40 = por %p38, %p39
      %p41 = scmp.ne.s32.totalorder %s30, %s33
      %p42 = scmp.eq.s32.totalorder %s13, 4
      %p43 = por %p41, %p42
      %p44 = scmp.ne.s32.totalorder %s33, %s34
      %p45 = scmp.eq.s32.totalorder %s13, 0
      %p46 = por %p44, %p45
      %p47 = scmp.ne.s32.totalorder %s33, %s34
      %p48 = scmp.eq.s32.totalorder %s14, 4
      %p49 = por %p47, %p48
      %p51 = scmp.ne.s32.totalorder %s34, %s50
      %p52 = scmp.eq.s32.totalorder %s14, 0
      %p53 = por %p51, %p52
      %s54 = ssub.s32 %s16, %s23
      %s55 = ssub.s32 %s15, %s27
      %s56 = sor.u32 %s54, %s55
      %p57 = scmp.eq.s32.totalorder %s56, 0
      %s59 = sadd.s32 %s58, 1
      %s60 = scalar_select %p57, %s58, %s59
      %p63 = pneg %p57
      %p64 = scmp.eq.s32.totalorder %s8, 4
      %p65 = por %p63, %p64
      %p66 = scmp.ne.s32.totalorder %s58, %s61
      %p67 = scmp.eq.s32.totalorder %s8, 0
      %p68 = por %p66, %p67
      %p69 = scmp.ne.s32.totalorder %s58, %s61
      %p70 = scmp.eq.s32.totalorder %s13, 4
      %p71 = por %p69, %p70
      %p72 = scmp.ne.s32.totalorder %s61, %s62
      %p73 = scmp.eq.s32.totalorder %s13, 0
      %p74 = por %p72, %p73
      %p75 = scmp.ne.s32.totalorder %s61, %s62
      %p76 = scmp.eq.s32.totalorder %s14, 4
      %p77 = por %p75, %p76
      %p79 = scmp.ne.s32.totalorder %s62, %s78
      %p80 = scmp.eq.s32.totalorder %s14, 0
      %p81 = por %p79, %p80
      %s82 = ssub.s32 %s15, %s27
      %p83 = scmp.eq.s32.totalorder %s82, 0
      %s85 = sadd.s32 %s84, 1
      %s86 = scalar_select %p83, %s84, %s85
      %p89 = pneg %p83
      %p90 = scmp.eq.s32.totalorder %s8, 4
      %p91 = por %p89, %p90
      %p92 = scmp.ne.s32.totalorder %s84, %s87
      %p93 = scmp.eq.s32.totalorder %s8, 0
      %p94 = por %p92, %p93
      %p95 = scmp.ne.s32.totalorder %s84, %s87
      %p96 = scmp.eq.s32.totalorder %s13, 4
      %p97 = por %p95, %p96
      %p98 = scmp.ne.s32.totalorder %s87, %s88
      %p99 = scmp.eq.s32.totalorder %s13, 0
      %p100 = por %p98, %p99
      %p101 = scmp.ne.s32.totalorder %s87, %s88
      %p102 = scmp.eq.s32.totalorder %s14, 4
      %p103 = por %p101, %p102
      %p105 = scmp.ne.s32.totalorder %s88, %s104
      %p106 = scmp.eq.s32.totalorder %s14, 0
      %p107 = por %p105, %p106
      %p108 = scmp.le.s32.totalorder 1, %s8
      %p109 = scmp.lt.s32.totalorder %s8, 6
      %p110 = pnand %p108, %p109
      %p111 = pneg %p110
      // Predicated region
      $region9: #{_lambda_.5} parent=5 // pred_check
        _
      $region10: #{_lambda_.5} parent=5 // pred_check_branch
        %113 = sbr.rel (%p110) target = $region12
      $region11: #{_lambda_.5} parent=5 // pred_region
        %s114 = ssub.s32 %s8, 1
        // Predicated region
        $region13: #{_lambda_.5} parent=11 // pred_check
          %p115 = pneg %p46
        $region14: #{_lambda_.5} parent=11 // pred_check_branch
          %117 = sbr.rel (%p115) target = $region16
        $region15: #{_lambda_.5} parent=11 // pred_region
          %s118 = smul.u32 2, %s18
          %p119 = scmp.lt.s32.totalorder %s118, 1
          %s120 = scalar_select %p119, %s118, 1
          %s121 = smul.addr %s120, 4
          %s122 = scalar_lea.vmem %s0, %s121
          %s123 = smul.u32 2, %s18
        $region16: #{_lambda_.5} parent=11 // pred_fallthru
          _
      $region12: #{_lambda_.5} parent=5 // pred_fallthru
        _
      %p124 = scmp.lt.s32.totalorder %s8, 5
      // Predicated region
      $region17: #{_lambda_.5} parent=5 // pred_check
        %p125 = pneg %p124
      $region18: #{_lambda_.5} parent=5 // pred_check_branch
        %127 = sbr.rel (%p125) target = $region20
      $region19: #{_lambda_.5} parent=5 // pred_region
        // Predicated region
        $region21: #{_lambda_.5} parent=19 // pred_check
          %p128 = pneg %p68
        $region22: #{_lambda_.5} parent=19 // pred_check_branch
          %130 = sbr.rel (%p128) target = $region24
        $region23: #{_lambda_.5} parent=19 // pred_region
          %s131 = sand.u32 %s58, 1
          %s132 = sand.u32 %s58, 1
          %s133 = smul.addr %s132, 72
          %s134 = scalar_lea.vmem [#allocation3], %s133
          %s135 = smul.u32 18, %s16
          %s136 = smul.addr %s135, 5
          %s137 = sadd.s32 %s15, %s136
          %s138 = smul.addr %s137, 4
          %s139 = scalar_lea.vmem %s1, %s138
          // Predicated region
          $region25: #{_lambda_.5} parent=23 // pred_check
            _
          $region26: #{_lambda_.5} parent=23 // pred_check_branch
            %141 = sbr.rel (0) target = $region28
          $region27: #{_lambda_.5} parent=23 // pred_region
            // Predicated region
            $region29: #{_lambda_.5} parent=27 // pred_check
              _
            $region30: #{_lambda_.5} parent=27 // pred_check_branch
              %143 = sbr.rel target = $region32
            $region31: #{_lambda_.5} parent=27 // pred_region
              // Predicated region
              $region44: #{_lambda_.5} parent=31 // pred_check
                _
              $region45: #{_lambda_.5} parent=31 // pred_check_branch
                %192 = sbr.rel (0) target = $region47
              $region46: #{_lambda_.5} parent=31 // pred_region
                loop: start=0, step=1, limit=1
                $region48: #{_lambda_.5} parent=46 // loop_pre_header
                  _
                $region49: #{_lambda_.5} parent=46 // loop_header
                  %s194 = sphi 0, %s198
                  %p195 = scmp.ge.s32.totalorder %s194, 1
                  %s199 = sphi %s139, %s139
                  %s200 = sphi %s134, %s134
                $region50: #{_lambda_.5} parent=46 // loop_header_branch
                  %197 = sbr.rel (%p195) target = $region54
                $region51: #{_lambda_.5} parent=46 // loop_body
                  _
                $region52: #{_lambda_.5} parent=46 // loop_footer
                  %s198 = sadd.s32 1, %s194
                $region53: #{_lambda_.5} parent=46 // loop_footer_branch
                  %193 = sbr.rel target = $region49
                $region54: #{_lambda_.5} parent=46 // loop_exit
                  _
                loop: start=0, step=1, limit=1
                $region55: #{_lambda_.5} parent=46 // loop_pre_header
                  _
                $region56: #{_lambda_.5} parent=46 // loop_header
                  %s203 = sphi 0, %s207
                  %p204 = scmp.ge.s32.totalorder %s203, 1
                  %s208 = sphi %s139, %s139
                  %s209 = sphi %s134, %s134
                $region57: #{_lambda_.5} parent=46 // loop_header_branch
                  %206 = sbr.rel (%p204) target = $region61
                $region58: #{_lambda_.5} parent=46 // loop_body
                  %v210 = vld [vmem:[%s208] sm:$0xf]
                  %211 = vst [vmem:[%s209] sm:$0xf] %v210
                  %v212 = vld [vmem:[%s208 + $0x14] sm:$0xf]
                  %213 = vst [vmem:[%s209 + $0x4] sm:$0xf] %v212
                  %v214 = vld [vmem:[%s208 + $0x28] sm:$0xf]
                  %215 = vst [vmem:[%s209 + $0x8] sm:$0xf] %v214
                  %v216 = vld [vmem:[%s208 + $0x3c] sm:$0xf]
                  %217 = vst [vmem:[%s209 + $0xc] sm:$0xf] %v216
                  %v218 = vld [vmem:[%s208 + $0x50] sm:$0xf]
                  %219 = vst [vmem:[%s209 + $0x10] sm:$0xf] %v218
                  %v220 = vld [vmem:[%s208 + $0x64] sm:$0xf]
                  %221 = vst [vmem:[%s209 + $0x14] sm:$0xf] %v220
                  %v222 = vld [vmem:[%s208 + $0x78] sm:$0xf]
                  %223 = vst [vmem:[%s209 + $0x18] sm:$0xf] %v222
                  %v224 = vld [vmem:[%s208 + $0x8c] sm:$0xf]
                  %225 = vst [vmem:[%s209 + $0x1c] sm:$0xf] %v224
                  %v226 = vld [vmem:[%s208 + $0xa0] sm:$0xf]
                  %227 = vst [vmem:[%s209 + $0x20] sm:$0xf] %v226
                  %v228 = vld [vmem:[%s208 + $0xb4] sm:$0xf]
                  %229 = vst [vmem:[%s209 + $0x24] sm:$0xf] %v228
                  %v230 = vld [vmem:[%s208 + $0xc8] sm:$0xf]
                  %231 = vst [vmem:[%s209 + $0x28] sm:$0xf] %v230
                  %v232 = vld [vmem:[%s208 + $0xdc] sm:$0xf]
                  %233 = vst [vmem:[%s209 + $0x2c] sm:$0xf] %v232
                  %v234 = vld [vmem:[%s208 + $0xf0] sm:$0xf]
                  %235 = vst [vmem:[%s209 + $0x30] sm:$0xf] %v234
                  %v236 = vld [vmem:[%s208 + $0x104] sm:$0xf]
                  %237 = vst [vmem:[%s209 + $0x34] sm:$0xf] %v236
                  %v238 = vld [vmem:[%s208 + $0x118] sm:$0xf]
                  %239 = vst [vmem:[%s209 + $0x38] sm:$0xf] %v238
                  %v240 = vld [vmem:[%s208 + $0x12c] sm:$0xf]
                  %241 = vst [vmem:[%s209 + $0x3c] sm:$0xf] %v240
                  %v242 = vld [vmem:[%s208 + $0x140] sm:$0xf]
                  %243 = vst [vmem:[%s209 + $0x40] sm:$0xf] %v242
                  %v244 = vld [vmem:[%s208 + $0x154] sm:$0xf]
                  %245 = vst [vmem:[%s209 + $0x44] sm:$0xf] %v244
                $region59: #{_lambda_.5} parent=46 // loop_footer
                  %s207 = sadd.s32 1, %s203
                $region60: #{_lambda_.5} parent=46 // loop_footer_branch
                  %202 = sbr.rel target = $region56
                $region61: #{_lambda_.5} parent=46 // loop_exit
                  _
              $region47: #{_lambda_.5} parent=31 // pred_fallthru
                _
            $region32: #{_lambda_.5} parent=27 // pred_fallthru
              _
            // Predicated region
            $region33: #{_lambda_.5} parent=27 // pred_check
              _
            $region34: #{_lambda_.5} parent=27 // pred_check_branch
              %145 = sbr.rel (0) target = $region36
            $region35: #{_lambda_.5} parent=27 // pred_region
              loop: start=0, step=1, limit=1
              $region37: #{_lambda_.5} parent=35 // loop_pre_header
                _
              $region38: #{_lambda_.5} parent=35 // loop_header
                %s148 = sphi 0, %s152
                %p149 = scmp.ge.s32.totalorder %s148, 1
                %s153 = sphi %s139, %s139
                %s154 = sphi %s134, %s134
              $region39: #{_lambda_.5} parent=35 // loop_header_branch
                %151 = sbr.rel (%p149) target = $region43
              $region40: #{_lambda_.5} parent=35 // loop_body
                %v155 = vld [vmem:[%s153] sm:$0xf]
                %156 = vst [vmem:[%s154] sm:$0xf] %v155
                %v157 = vld [vmem:[%s153 + $0x14] sm:$0xf]
                %158 = vst [vmem:[%s154 + $0x4] sm:$0xf] %v157
                %v159 = vld [vmem:[%s153 + $0x28] sm:$0xf]
                %160 = vst [vmem:[%s154 + $0x8] sm:$0xf] %v159
                %v161 = vld [vmem:[%s153 + $0x3c] sm:$0xf]
                %162 = vst [vmem:[%s154 + $0xc] sm:$0xf] %v161
                %v163 = vld [vmem:[%s153 + $0x50] sm:$0xf]
                %164 = vst [vmem:[%s154 + $0x10] sm:$0xf] %v163
                %v165 = vld [vmem:[%s153 + $0x64] sm:$0xf]
                %166 = vst [vmem:[%s154 + $0x14] sm:$0xf] %v165
                %v167 = vld [vmem:[%s153 + $0x78] sm:$0xf]
                %168 = vst [vmem:[%s154 + $0x18] sm:$0xf] %v167
                %v169 = vld [vmem:[%s153 + $0x8c] sm:$0xf]
                %170 = vst [vmem:[%s154 + $0x1c] sm:$0xf] %v169
                %v171 = vld [vmem:[%s153 + $0xa0] sm:$0xf]
                %172 = vst [vmem:[%s154 + $0x20] sm:$0xf] %v171
                %v173 = vld [vmem:[%s153 + $0xb4] sm:$0xf]
                %174 = vst [vmem:[%s154 + $0x24] sm:$0xf] %v173
                %v175 = vld [vmem:[%s153 + $0xc8] sm:$0xf]
                %176 = vst [vmem:[%s154 + $0x28] sm:$0xf] %v175
                %v177 = vld [vmem:[%s153 + $0xdc] sm:$0xf]
                %178 = vst [vmem:[%s154 + $0x2c] sm:$0xf] %v177
                %v179 = vld [vmem:[%s153 + $0xf0] sm:$0xf]
                %180 = vst [vmem:[%s154 + $0x30] sm:$0xf] %v179
                %v181 = vld [vmem:[%s153 + $0x104] sm:$0xf]
                %182 = vst [vmem:[%s154 + $0x34] sm:$0xf] %v181
                %v183 = vld [vmem:[%s153 + $0x118] sm:$0xf]
                %184 = vst [vmem:[%s154 + $0x38] sm:$0xf] %v183
                %v185 = vld [vmem:[%s153 + $0x12c] sm:$0xf]
                %186 = vst [vmem:[%s154 + $0x3c] sm:$0xf] %v185
                %v187 = vld [vmem:[%s153 + $0x140] sm:$0xf]
                %188 = vst [vmem:[%s154 + $0x40] sm:$0xf] %v187
                %v189 = vld [vmem:[%s153 + $0x154] sm:$0xf]
                %190 = vst [vmem:[%s154 + $0x44] sm:$0xf] %v189
              $region41: #{_lambda_.5} parent=35 // loop_footer
                %s152 = sadd.s32 1, %s148
              $region42: #{_lambda_.5} parent=35 // loop_footer_branch
                %147 = sbr.rel target = $region38
              $region43: #{_lambda_.5} parent=35 // loop_exit
                _
            $region36: #{_lambda_.5} parent=27 // pred_fallthru
              _
          $region28: #{_lambda_.5} parent=23 // pred_fallthru
            _
          %246 = vnop
        $region24: #{_lambda_.5} parent=19 // pred_fallthru
          _
      $region20: #{_lambda_.5} parent=5 // pred_fallthru
        _
      %p247 = scmp.le.s32.totalorder 1, %s8
      %p248 = scmp.lt.s32.totalorder %s8, 6
      %p249 = pnand %p247, %p248
      %p250 = pneg %p249
      // Predicated region
      $region62: #{_lambda_.5} parent=5 // pred_check
        _
      $region63: #{_lambda_.5} parent=5 // pred_check_branch
        %252 = sbr.rel (%p249) target = $region65
      $region64: #{_lambda_.5} parent=5 // pred_region
        %s253 = ssub.s32 %s8, 1
        %s254 = sand.u32 %s61, 1
        %s255 = sand.u32 %s61, 1
        %s256 = smul.addr %s255, 72
        %s257 = scalar_lea.vmem [#allocation3], %s256
        // Predicated region
        $region66: #{_lambda_.5} parent=64 // pred_check
          %p258 = pneg %p74
        $region67: #{_lambda_.5} parent=64 // pred_check_branch
          %260 = sbr.rel (%p258) target = $region69
        $region68: #{_lambda_.5} parent=64 // pred_region
          _
        $region69: #{_lambda_.5} parent=64 // pred_fallthru
          _
        %s261 = smul.u32 2, %s18
        %p262 = scmp.lt.s32.totalorder %s261, 1
        %s263 = scalar_select %p262, %s261, 1
        %s264 = smul.addr %s263, 4
        %s265 = scalar_lea.vmem %s0, %s264
        %p266 = pneg %p46
        %p267 = pneg %p43
        %s268 = sand.u32 %s61, 1
        %s269 = sand.u32 %s61, 1
        %s270 = smul.addr %s269, 72
        %s271 = scalar_lea.vmem [#allocation3], %s270
        %p272 = pneg %p74
        %p273 = pneg %p71
        %p274 = pneg %p100
        %p275 = pneg %p97
        %s276 = sand.u32 %s87, 1
        %s277 = sand.u32 %s87, 1
        %s278 = smul.addr %s277, 32
        %s279 = scalar_lea.vmem [#allocation4], %s278
        %s280 = smul.u32 2, %s18
        %p281 = scmp.lt.s32.totalorder %s280, 1
        %s282 = scalar_select %p281, %s280, 1
        %s283 = smul.addr %s282, 4
        %s284 = scalar_lea.vmem %s0, %s283
        %s285 = smul.u32 2, %s18
        %s286 = smul.u32 18, %s18
        %p288 = scmp.eq.s32.totalorder %s18, 0
        // Predicated region
        $region70: #{_lambda_.5} parent=64 // pred_check
          %p289 = pneg %p288
        $region71: #{_lambda_.5} parent=64 // pred_check_branch
          %291 = sbr.rel (%p289) target = $region73
        $region72: #{_lambda_.5} parent=64 // pred_region
          %292 = vst [vmem:[#allocation2] sm:$0xff] 0.0
          %293 = vst [vmem:[#allocation2 + $0x8] sm:$0xff] 0.0
          %294 = vst [vmem:[#allocation2 + $0x10] sm:$0xff] 0.0
          %295 = vst [vmem:[#allocation2 + $0x18] sm:$0xff] 0.0
        $region73: #{_lambda_.5} parent=64 // pred_fallthru
          _
        %v296 = vld [vmem:[#allocation2] sm:$0xff]
        %v297 = vld [vmem:[#allocation2 + $0x8] sm:$0xff]
        %v298 = vld [vmem:[#allocation2 + $0x10] sm:$0xff]
        %v299 = vld [vmem:[#allocation2 + $0x18] sm:$0xff]
        %v300 = vld [vmem:[%s284] sm:$0xff]
        %v301 = vld [vmem:[%s284 + $0x8] sm:$0xff]
        %v302 = vld [vmem:[%s284 + $0x10] sm:$0xff]
        %v303 = vld [vmem:[%s284 + $0x18] sm:$0xff]
        %v304 = vld [vmem:[%s257] sm:$0xf]
        %v305 = vld [vmem:[%s257 + $0x4] sm:$0xf]
        %v306 = vld [vmem:[%s257 + $0x8] sm:$0xf]
        %v307 = vld [vmem:[%s257 + $0xc] sm:$0xf]
        %v308 = vld [vmem:[%s257 + $0x10] sm:$0xf]
        %v309 = vld [vmem:[%s257 + $0x14] sm:$0xf]
        %v310 = vld [vmem:[%s257 + $0x18] sm:$0xf]
        %v311 = vld [vmem:[%s257 + $0x1c] sm:$0xf]
        %v312 = vld [vmem:[%s257 + $0x20] sm:$0xf]
        %v313 = vld [vmem:[%s257 + $0x24] sm:$0xf]
        %v314 = vld [vmem:[%s257 + $0x28] sm:$0xf]
        %v315 = vld [vmem:[%s257 + $0x2c] sm:$0xf]
        %v316 = vld [vmem:[%s257 + $0x30] sm:$0xf]
        %v317 = vld [vmem:[%s257 + $0x34] sm:$0xf]
        %v318 = vld [vmem:[%s257 + $0x38] sm:$0xf]
        %v319 = vld [vmem:[%s257 + $0x3c] sm:$0xf]
        %v320 = vld [vmem:[%s257 + $0x40] sm:$0xf]
        %v321 = vld [vmem:[%s257 + $0x44] sm:$0xf]
        %v326 = vunpack.c.l.b16 %v300
        %v327 = vunpack.c.h.b16 %v300
        %v328 = vunpack.c.l.b16 %v301
        %v329 = vunpack.c.h.b16 %v301
        %v330 = vunpack.c.l.b16 %v302
        %v331 = vunpack.c.h.b16 %v302
        %v332 = vunpack.c.l.b16 %v303
        %v333 = vunpack.c.h.b16 %v303
        %v334 = vpack.c.b16 %v328, %v326
        %v335 = vpack.c.b16 %v329, %v327
        %v336 = vpack.c.b16 %v332, %v330
        %v337 = vpack.c.b16 %v333, %v331
        %v358 = vunpack.c.l.b16 %v304
        %v359 = vunpack.c.l.b16 %v305
        %v360 = vunpack.c.l.b16 %v306
        %v361 = vunpack.c.l.b16 %v307
        %v362 = vunpack.c.l.b16 %v308
        %v363 = vunpack.c.l.b16 %v309
        %v364 = vunpack.c.l.b16 %v310
        %v365 = vunpack.c.l.b16 %v311
        %v366 = vunpack.c.l.b16 %v312
        %v367 = vunpack.c.l.b16 %v313
        %v368 = vunpack.c.l.b16 %v314
        %v369 = vunpack.c.l.b16 %v315
        %v370 = vunpack.c.l.b16 %v316
        %v371 = vunpack.c.l.b16 %v317
        %v372 = vunpack.c.l.b16 %v318
        %v373 = vunpack.c.l.b16 %v319
        %v374 = vunpack.c.l.b16 %v320
        %v375 = vunpack.c.l.b16 %v321
        %v376 = vpack.c.b16 %v359, %v358
        %v377 = vpack.c.b16 %v361, %v360
        %v378 = vpack.c.b16 %v363, %v362
        %v379 = vpack.c.b16 %v365, %v364
        %v380 = vpack.c.b16 %v367, %v366
        %v381 = vpack.c.b16 %v369, %v368
        %v382 = vpack.c.b16 %v371, %v370
        %v383 = vpack.c.b16 %v373, %v372
        %v384 = vpack.c.b16 %v375, %v374
        %vm394 = vcmask 130048
        %v396 = vsel %vm394, %v335, 0
        %v399 = vsel %vm394, %v337, 0
        %401 = vmatprep.subr.bf16.mxu0 0
        %402 = vmatpush1.bf16.msra.mxu0 %v376
        %403 = vmatprep.subr.bf16.mxu0 0
        %404 = vmatpush1.bf16.msra.mxu0 %v377
        %405 = vmatprep.subr.bf16.mxu0 0
        %406 = vmatpush1.bf16.msra.mxu0 %v378
        %407 = vmatprep.subr.bf16.mxu0 0
        %408 = vmatpush1.bf16.msra.mxu0 %v379
        %409 = vmatprep.subr.bf16.mxu0 0
        %410 = vmatpush1.bf16.msra.mxu0 %v380
        %411 = vmatprep.subr.bf16.mxu0 0
        %412 = vmatpush1.bf16.msra.mxu0 %v381
        %413 = vmatprep.subr.bf16.mxu0 0
        %414 = vmatpush1.bf16.msra.mxu0 %v382
        %415 = vmatprep.subr.bf16.mxu0 0
        %416 = vmatpush1.bf16.msra.mxu0 %v383
        %417 = vmatprep.subr.bf16.mxu0 0
        %418 = vmatpush1.bf16.msra.mxu0 %v384
        %419 = vmatprep.subr.bf16.mxu0 0
        %420 = vmatpush1.bf16.msra.mxu0 0
        %421 = vmatprep.subr.bf16.mxu0 0
        %422 = vmatpush1.bf16.msra.mxu0 0
        %423 = vmatprep.subr.bf16.mxu0 0
        %424 = vmatpush1.bf16.msra.mxu0 0
        %425 = vmatprep.subr.bf16.mxu0 0
        %426 = vmatpush1.bf16.msra.mxu0 0
        %427 = vmatprep.subr.bf16.mxu0 0
        %428 = vmatpush1.bf16.msra.mxu0 0
        %429 = vmatprep.subr.bf16.mxu0 0
        %430 = vmatpush1.bf16.msra.mxu0 0
        %431 = vmatprep.subr.bf16.mxu0 0
        %432 = vmatpush1.bf16.msra.mxu0 0
        %433 = vmatprep.mubr.bf16.mxu0 %v396
        %434 = vmatmul.mubr.bf16.gmra.mrb[0].mxu0 %v334
        %v435 = vpop.f32.mrb[0].mxu0
        %v436 = vadd.f32 0.0, %v435
        %v437 = vpop.f32.mrb[0].mxu0
        %v438 = vpop.f32.mrb[0].mxu0
        %v439 = vadd.f32 0.0, %v438
        %v440 = vpop.f32.mrb[0].mxu0
        %441 = vmatprep.mubr.bf16.mxu0 %v399
        %442 = vmatmul.mubr.bf16.gmra.mrb[0].mxu0 %v336
        %v443 = vpop.f32.mrb[0].mxu0
        %v444 = vadd.f32 0.0, %v443
        %v445 = vpop.f32.mrb[0].mxu0
        %v446 = vpop.f32.mrb[0].mxu0
        %v447 = vadd.f32 0.0, %v446
        %v448 = vpop.f32.mrb[0].mxu0
        %449 = vdwg.mxu0
        %v450 = vadd.f32 %v296, %v436
        %v451 = vadd.f32 %v297, %v439
        %v452 = vadd.f32 %v298, %v444
        %v453 = vadd.f32 %v299, %v447
        %454 = vst [vmem:[#allocation2] sm:$0xff] %v450
        %455 = vst [vmem:[#allocation2 + $0x8] sm:$0xff] %v451
        %456 = vst [vmem:[#allocation2 + $0x10] sm:$0xff] %v452
        %457 = vst [vmem:[#allocation2 + $0x18] sm:$0xff] %v453
        // Predicated region
        $region74: #{_lambda_.5} parent=64 // pred_check
          %p458 = pneg %p288
        $region75: #{_lambda_.5} parent=64 // pred_check_branch
          %460 = sbr.rel (%p458) target = $region77
        $region76: #{_lambda_.5} parent=64 // pred_region
          %v461 = vld [vmem:[#allocation2] sm:$0xff]
          %v462 = vld [vmem:[#allocation2 + $0x8] sm:$0xff]
          %v463 = vld [vmem:[#allocation2 + $0x10] sm:$0xff]
          %v464 = vld [vmem:[#allocation2 + $0x18] sm:$0xff]
          %465 = vst [vmem:[%s279] sm:$0xff] %v461
          %466 = vst [vmem:[%s279 + $0x8] sm:$0xff] %v462
          %467 = vst [vmem:[%s279 + $0x10] sm:$0xff] %v463
          %468 = vst [vmem:[%s279 + $0x18] sm:$0xff] %v464
        $region77: #{_lambda_.5} parent=64 // pred_fallthru
          _
        %s469 = sand.u32 %s87, 1
        %s470 = sand.u32 %s87, 1
        %s471 = smul.addr %s470, 32
        %s472 = scalar_lea.vmem [#allocation4], %s471
        // Predicated region
        $region78: #{_lambda_.5} parent=64 // pred_check
          %p473 = pneg %p97
        $region79: #{_lambda_.5} parent=64 // pred_check_branch
          %475 = sbr.rel (%p473) target = $region81
        $region80: #{_lambda_.5} parent=64 // pred_region
          %s476 = smul.addr %s17, 8
          %s477 = scalar_lea.vmem %s2, %s476
          // Predicated region
          $region82: #{_lambda_.5} parent=80 // pred_check
            _
          $region83: #{_lambda_.5} parent=80 // pred_check_branch
            %479 = sbr.rel (0) target = $region85
          $region84: #{_lambda_.5} parent=80 // pred_region
            // Predicated region
            $region86: #{_lambda_.5} parent=84 // pred_check
              _
            $region87: #{_lambda_.5} parent=84 // pred_check_branch
              %481 = sbr.rel (0) target = $region89
            $region88: #{_lambda_.5} parent=84 // pred_region
              // Predicated region
              $region101: #{_lambda_.5} parent=88 // pred_check
                _
              $region102: #{_lambda_.5} parent=88 // pred_check_branch
                %502 = sbr.rel (0) target = $region104
              $region103: #{_lambda_.5} parent=88 // pred_region
                loop: start=0, step=1, limit=1
                $region105: #{_lambda_.5} parent=103 // loop_pre_header
                  _
                $region106: #{_lambda_.5} parent=103 // loop_header
                  %s504 = sphi 0, %s508
                  %p505 = scmp.ge.s32.totalorder %s504, 1
                  %s509 = sphi %s472, %s472
                  %s510 = sphi %s477, %s477
                $region107: #{_lambda_.5} parent=103 // loop_header_branch
                  %507 = sbr.rel (%p505) target = $region111
                $region108: #{_lambda_.5} parent=103 // loop_body
                  %v511 = vld [vmem:[%s509] sm:$0xff]
                  %512 = vst [vmem:[%s510] sm:$0xff] %v511
                  %v513 = vld [vmem:[%s509 + $0x8] sm:$0xff]
                  %514 = vst [vmem:[%s510 + $0x28] sm:$0xff] %v513
                  %v515 = vld [vmem:[%s509 + $0x10] sm:$0xff]
                  %516 = vst [vmem:[%s510 + $0x50] sm:$0xff] %v515
                  %v517 = vld [vmem:[%s509 + $0x18] sm:$0xff]
                  %518 = vst [vmem:[%s510 + $0x78] sm:$0xff] %v517
                $region109: #{_lambda_.5} parent=103 // loop_footer
                  %s508 = sadd.s32 1, %s504
                $region110: #{_lambda_.5} parent=103 // loop_footer_branch
                  %503 = sbr.rel target = $region106
                $region111: #{_lambda_.5} parent=103 // loop_exit
                  _
              $region104: #{_lambda_.5} parent=88 // pred_fallthru
                _
              // Predicated region
              $region112: #{_lambda_.5} parent=88 // pred_check
                _
              $region113: #{_lambda_.5} parent=88 // pred_check_branch
                %520 = sbr.rel target = $region115
              $region114: #{_lambda_.5} parent=88 // pred_region
                _
              $region115: #{_lambda_.5} parent=88 // pred_fallthru
                _
            $region89: #{_lambda_.5} parent=84 // pred_fallthru
              _
            // Predicated region
            $region90: #{_lambda_.5} parent=84 // pred_check
              _
            $region91: #{_lambda_.5} parent=84 // pred_check_branch
              %483 = sbr.rel target = $region93
            $region92: #{_lambda_.5} parent=84 // pred_region
              loop: start=0, step=1, limit=1
              $region94: #{_lambda_.5} parent=92 // loop_pre_header
                _
              $region95: #{_lambda_.5} parent=92 // loop_header
                %s486 = sphi 0, %s490
                %p487 = scmp.ge.s32.totalorder %s486, 1
                %s491 = sphi %s472, %s472
                %s492 = sphi %s477, %s477
              $region96: #{_lambda_.5} parent=92 // loop_header_branch
                %489 = sbr.rel (%p487) target = $region100
              $region97: #{_lambda_.5} parent=92 // loop_body
                %v493 = vld [vmem:[%s491] sm:$0xff]
                %494 = vst [vmem:[%s492] sm:$0xff] %v493
                %v495 = vld [vmem:[%s491 + $0x8] sm:$0xff]
                %496 = vst [vmem:[%s492 + $0x28] sm:$0xff] %v495
                %v497 = vld [vmem:[%s491 + $0x10] sm:$0xff]
                %498 = vst [vmem:[%s492 + $0x50] sm:$0xff] %v497
                %v499 = vld [vmem:[%s491 + $0x18] sm:$0xff]
                %500 = vst [vmem:[%s492 + $0x78] sm:$0xff] %v499
              $region98: #{_lambda_.5} parent=92 // loop_footer
                %s490 = sadd.s32 1, %s486
              $region99: #{_lambda_.5} parent=92 // loop_footer_branch
                %485 = sbr.rel target = $region95
              $region100: #{_lambda_.5} parent=92 // loop_exit
                _
            $region93: #{_lambda_.5} parent=84 // pred_fallthru
              _
          $region85: #{_lambda_.5} parent=80 // pred_fallthru
            _
          %521 = vnop
        $region81: #{_lambda_.5} parent=64 // pred_fallthru
          _
      $region65: #{_lambda_.5} parent=5 // pred_fallthru
        _
      %p522 = scmp.le.s32.totalorder 2, %s8
      // Predicated region
      $region116: #{_lambda_.5} parent=5 // pred_check
        %p523 = pneg %p522
      $region117: #{_lambda_.5} parent=5 // pred_check_branch
        %525 = sbr.rel (%p523) target = $region119
      $region118: #{_lambda_.5} parent=5 // pred_region
        %s526 = ssub.s32 %s8, 2
        // Predicated region
        $region120: #{_lambda_.5} parent=118 // pred_check
          %p527 = pneg %p103
        $region121: #{_lambda_.5} parent=118 // pred_check_branch
          %529 = sbr.rel (%p527) target = $region123
        $region122: #{_lambda_.5} parent=118 // pred_region
          %s530 = sand.u32 %s88, 1
          %s531 = sand.u32 %s88, 1
          %s532 = smul.addr %s531, 32
          %s533 = scalar_lea.vmem [#allocation4], %s532
        $region123: #{_lambda_.5} parent=118 // pred_fallthru
          _
      $region119: #{_lambda_.5} parent=5 // pred_fallthru
        _
    $region6: #{_lambda_.5} parent=1 // loop_footer
      %s12 = sadd.s32 1, %s8
    $region7: #{_lambda_.5} parent=1 // loop_footer_branch
      %7 = sbr.rel target = $region3
    $region8: #{_lambda_.5} parent=1 // loop_exit
      _

// kernel: _lambda_.6
$region0: #{_lambda_.6}
  #allocation0 [shape = 'u32[]', space=smem, size = 0x4, offset = 0x4, fixed_abs, tag = 'smem constant byte address 0x4 - core index']
  #allocation1 [shape = 'u32[144,128]{1,0:T(1,128)}', space=vmem, size = 0x12000, scoped, tag = 'internal scratch']
  %s0 = inlined_call_operand.vmem [shape: f32[8,2048], index: 0, kind: input, shape index: {}]
  %s1 = inlined_call_operand.vmem [shape: bf16[72,2048], index: 1, kind: output, shape index: {}]
  %s2 = sld [smem:[#allocation0]]
  $region71: #{_lambda_.6} parent=0
    _
  %s4 = ssub.s32 1, %s2
  %s5 = scalar_select 0, %s4, %s2
  $region1: #{_lambda_.6} parent=0
    #allocation2 [shape = 'u8[73728]{0}', space=vmem, size = 0x12000, scoped, tag = 'output window, operand 0']
    loop: start=0, step=1, limit=10
    $region2: #{_lambda_.6} parent=1 // loop_pre_header
      _
    $region3: #{_lambda_.6} parent=1 // loop_header
      %s7 = sphi 0, %s11
      %p8 = scmp.ge.s32.totalorder %s7, 10
      %s17 = sphi 0, %s19
      %s20 = sphi 0, %s17
      %s21 = sphi 0, %s20
      %s37 = sphi 0, %s21
      %s43 = sphi 0, %s45
      %s46 = sphi 0, %s43
      %s47 = sphi 0, %s46
      %s63 = sphi 0, %s47
    $region4: #{_lambda_.6} parent=1 // loop_header_branch
      %10 = sbr.rel (%p8) target = $region8
    $region5: #{_lambda_.6} parent=1 // loop_body
      %s12 = ssub.s32 %s7, 1
      %s13 = ssub.s32 %s7, 2
      %s14 = sadd.s32 %s7, 1
      %s15 = ssub.s32 %s7, %s14
      %p16 = scmp.eq.s32.totalorder %s15, 0
      %s18 = sadd.s32 %s17, 1
      %s19 = scalar_select %p16, %s17, %s18
      %p22 = pneg %p16
      %p23 = scmp.eq.s32.totalorder %s7, 7
      %p24 = por %p22, %p23
      %p25 = scmp.ne.s32.totalorder %s17, %s20
      %p26 = scmp.eq.s32.totalorder %s7, 0
      %p27 = por %p25, %p26
      %p28 = scmp.ne.s32.totalorder %s17, %s20
      %p29 = scmp.eq.s32.totalorder %s12, 7
      %p30 = por %p28, %p29
      %p31 = scmp.ne.s32.totalorder %s20, %s21
      %p32 = scmp.eq.s32.totalorder %s12, 0
      %p33 = por %p31, %p32
      %p34 = scmp.ne.s32.totalorder %s20, %s21
      %p35 = scmp.eq.s32.totalorder %s13, 7
      %p36 = por %p34, %p35
      %p38 = scmp.ne.s32.totalorder %s21, %s37
      %p39 = scmp.eq.s32.totalorder %s13, 0
      %p40 = por %p38, %p39
      %s41 = ssub.s32 %s7, %s14
      %p42 = scmp.eq.s32.totalorder %s41, 0
      %s44 = sadd.s32 %s43, 1
      %s45 = scalar_select %p42, %s43, %s44
      %p48 = pneg %p42
      %p49 = scmp.eq.s32.totalorder %s7, 7
      %p50 = por %p48, %p49
      %p51 = scmp.ne.s32.totalorder %s43, %s46
      %p52 = scmp.eq.s32.totalorder %s7, 0
      %p53 = por %p51, %p52
      %p54 = scmp.ne.s32.totalorder %s43, %s46
      %p55 = scmp.eq.s32.totalorder %s12, 7
      %p56 = por %p54, %p55
      %p57 = scmp.ne.s32.totalorder %s46, %s47
      %p58 = scmp.eq.s32.totalorder %s12, 0
      %p59 = por %p57, %p58
      %p60 = scmp.ne.s32.totalorder %s46, %s47
      %p61 = scmp.eq.s32.totalorder %s13, 7
      %p62 = por %p60, %p61
      %p64 = scmp.ne.s32.totalorder %s47, %s63
      %p65 = scmp.eq.s32.totalorder %s13, 0
      %p66 = por %p64, %p65
      %p67 = scmp.le.s32.totalorder 1, %s7
      %p68 = scmp.lt.s32.totalorder %s7, 9
      %p69 = pnand %p67, %p68
      %p70 = pneg %p69
      // Predicated region
      $region9: #{_lambda_.6} parent=5 // pred_check
        _
      $region10: #{_lambda_.6} parent=5 // pred_check_branch
        %72 = sbr.rel (%p69) target = $region12
      $region11: #{_lambda_.6} parent=5 // pred_region
        %s73 = ssub.s32 %s7, 1
      $region12: #{_lambda_.6} parent=5 // pred_fallthru
        _
      %p74 = scmp.lt.s32.totalorder %s7, 8
      // Predicated region
      $region13: #{_lambda_.6} parent=5 // pred_check
        %p75 = pneg %p74
      $region14: #{_lambda_.6} parent=5 // pred_check_branch
        %77 = sbr.rel (%p75) target = $region16
      $region15: #{_lambda_.6} parent=5 // pred_region
        // Predicated region
        $region17: #{_lambda_.6} parent=15 // pred_check
          %p78 = pneg %p27
        $region18: #{_lambda_.6} parent=15 // pred_check_branch
          %80 = sbr.rel (%p78) target = $region20
        $region19: #{_lambda_.6} parent=15 // pred_region
          %s81 = smul.u32 2, %s7
          %p82 = scmp.lt.s32.totalorder %s81, 15
          %s83 = scalar_select %p82, %s81, 15
          %s84 = smul.addr %s83, 8
          %s85 = scalar_lea.vmem %s0, %s84
          %s86 = smul.u32 2, %s7
        $region20: #{_lambda_.6} parent=15 // pred_fallthru
          _
      $region16: #{_lambda_.6} parent=5 // pred_fallthru
        _
      %p87 = scmp.le.s32.totalorder 1, %s7
      %p88 = scmp.lt.s32.totalorder %s7, 9
      %p89 = pnand %p87, %p88
      %p90 = pneg %p89
      // Predicated region
      $region21: #{_lambda_.6} parent=5 // pred_check
        _
      $region22: #{_lambda_.6} parent=5 // pred_check_branch
        %92 = sbr.rel (%p89) target = $region24
      $region23: #{_lambda_.6} parent=5 // pred_region
        %s93 = ssub.s32 %s7, 1
        %s94 = smul.u32 2, %s12
        %p95 = scmp.lt.s32.totalorder %s94, 15
        %s96 = scalar_select %p95, %s94, 15
        %s97 = smul.addr %s96, 8
        %s98 = scalar_lea.vmem %s0, %s97
        %p99 = pneg %p33
        %p100 = pneg %p30
        %p101 = pneg %p59
        %p102 = pneg %p56
        %s103 = sand.u32 %s46, 1
        %s104 = sand.u32 %s46, 1
        %s105 = smul.addr %s104, 72
        %s106 = scalar_lea.vmem [#allocation2], %s105
        %s107 = smul.u32 2, %s12
        %p108 = scmp.lt.s32.totalorder %s107, 15
        %s109 = scalar_select %p108, %s107, 15
        %s110 = smul.addr %s109, 8
        %s111 = scalar_lea.vmem %s0, %s110
        %s112 = smul.u32 2, %s12
        %s113 = smul.u32 2, %s12
        %v114 = vld [vmem:[%s111] sm:$0xff]
        %v115 = vld [vmem:[%s111 + $0x8] sm:$0xff]
        %v116 = vsub.f32 0.0, %v114
        %v117 = vsub.f32 0.0, %v115
        %v118 = vmul.f32 %v116, 1.442695
        %v119 = vpow.pop %v118
        %v120 = vmul.f32 %v117, 1.442695
        %v121 = vpow.pop %v120
        %v122 = vadd.f32 %v119, 1.0
        %v123 = vadd.f32 %v121, 1.0
        %v124 = vrcp.pop %v122
        %v125 = vrcp.pop %v123
        %v126 = vmul.f32 %v114, %v124
        %v127 = vmul.f32 %v115, %v125
        %vm128 = vcmp.ge.f32.partialorder %v114, -2.2
        %vm129 = vcmp.ge.f32.partialorder %v115, -2.2
        %vm130 = vcmp.lt.f32.partialorder %v114, -1.8
        %vm131 = vcmp.lt.f32.partialorder %v115, -1.8
        %vm132 = vmand %vm128, %vm130
        %vm133 = vmand %vm129, %vm131
        %v134 = vsel %vm132, 1.0, 0.0
        %v135 = vsel %vm133, 1.0, 0.0
        %vm136 = vcmp.ge.f32.partialorder %v114, -1.8
        %vm137 = vcmp.ge.f32.partialorder %v115, -1.8
        %vm138 = vcmp.lt.f32.partialorder %v114, -1.4
        %vm139 = vcmp.lt.f32.partialorder %v115, -1.4
        %vm140 = vmand %vm136, %vm138
        %vm141 = vmand %vm137, %vm139
        %v142 = vsel %vm140, 1.0, 0.0
        %v143 = vsel %vm141, 1.0, 0.0
        %vm144 = vcmp.ge.f32.partialorder %v114, -1.4
        %vm145 = vcmp.ge.f32.partialorder %v115, -1.4
        %vm146 = vcmp.lt.f32.partialorder %v114, -1.0
        %vm147 = vcmp.lt.f32.partialorder %v115, -1.0
        %vm148 = vmand %vm144, %vm146
        %vm149 = vmand %vm145, %vm147
        %v150 = vsel %vm148, 1.0, 0.0
        %v151 = vsel %vm149, 1.0, 0.0
        %vm152 = vcmp.ge.f32.partialorder %v114, -1.0
        %vm153 = vcmp.ge.f32.partialorder %v115, -1.0
        %vm154 = vcmp.lt.f32.partialorder %v114, -0.6
        %vm155 = vcmp.lt.f32.partialorder %v115, -0.6
        %vm156 = vmand %vm152, %vm154
        %vm157 = vmand %vm153, %vm155
        %v158 = vsel %vm156, 1.0, 0.0
        %v159 = vsel %vm157, 1.0, 0.0
        %vm160 = vcmp.ge.f32.partialorder %v114, -0.6
        %vm161 = vcmp.ge.f32.partialorder %v115, -0.6
        %vm162 = vcmp.lt.f32.partialorder %v114, -0.2
        %vm163 = vcmp.lt.f32.partialorder %v115, -0.2
        %vm164 = vmand %vm160, %vm162
        %vm165 = vmand %vm161, %vm163
        %v166 = vsel %vm164, 1.0, 0.0
        %v167 = vsel %vm165, 1.0, 0.0
        %vm168 = vcmp.ge.f32.partialorder %v114, -0.2
        %vm169 = vcmp.ge.f32.partialorder %v115, -0.2
        %vm170 = vcmp.lt.f32.partialorder %v114, 0.2
        %vm171 = vcmp.lt.f32.partialorder %v115, 0.2
        %vm172 = vmand %vm168, %vm170
        %vm173 = vmand %vm169, %vm171
        %v174 = vsel %vm172, 1.0, 0.0
        %v175 = vsel %vm173, 1.0, 0.0
        %vm176 = vcmp.ge.f32.partialorder %v114, 0.2
        %vm177 = vcmp.ge.f32.partialorder %v115, 0.2
        %vm178 = vcmp.lt.f32.partialorder %v114, 0.6
        %vm179 = vcmp.lt.f32.partialorder %v115, 0.6
        %vm180 = vmand %vm176, %vm178
        %vm181 = vmand %vm177, %vm179
        %v182 = vsel %vm180, 1.0, 0.0
        %v183 = vsel %vm181, 1.0, 0.0
        %vm184 = vcmp.ge.f32.partialorder %v114, 0.6
        %vm185 = vcmp.ge.f32.partialorder %v115, 0.6
        %vm186 = vcmp.lt.f32.partialorder %v114, 1.0
        %vm187 = vcmp.lt.f32.partialorder %v115, 1.0
        %vm188 = vmand %vm184, %vm186
        %vm189 = vmand %vm185, %vm187
        %v190 = vsel %vm188, 1.0, 0.0
        %v191 = vsel %vm189, 1.0, 0.0
        %vm192 = vcmp.ge.f32.partialorder %v114, 1.0
        %vm193 = vcmp.ge.f32.partialorder %v115, 1.0
        %vm194 = vcmp.lt.f32.partialorder %v114, 1.4
        %vm195 = vcmp.lt.f32.partialorder %v115, 1.4
        %vm196 = vmand %vm192, %vm194
        %vm197 = vmand %vm193, %vm195
        %v198 = vsel %vm196, 1.0, 0.0
        %v199 = vsel %vm197, 1.0, 0.0
        %vm200 = vcmp.ge.f32.partialorder %v114, 1.4
        %vm201 = vcmp.ge.f32.partialorder %v115, 1.4
        %vm202 = vcmp.lt.f32.partialorder %v114, 1.8
        %vm203 = vcmp.lt.f32.partialorder %v115, 1.8
        %vm204 = vmand %vm200, %vm202
        %vm205 = vmand %vm201, %vm203
        %v206 = vsel %vm204, 1.0, 0.0
        %v207 = vsel %vm205, 1.0, 0.0
        %vm208 = vcmp.ge.f32.partialorder %v114, 1.8
        %vm209 = vcmp.ge.f32.partialorder %v115, 1.8
        %vm210 = vcmp.lt.f32.partialorder %v114, 2.2
        %vm211 = vcmp.lt.f32.partialorder %v115, 2.2
        %vm212 = vmand %vm208, %vm210
        %vm213 = vmand %vm209, %vm211
        %v214 = vsel %vm212, 1.0, 0.0
        %v215 = vsel %vm213, 1.0, 0.0
        %v216 = vsub.f32 %v114, -2.2
        %v217 = vsub.f32 %v115, -2.2
        %v218 = vmul.f32 %v216, 2.5
        %v219 = vmul.f32 %v217, 2.5
        %v220 = vmul.f32 %v218, %v134
        %v221 = vmul.f32 %v219, %v135
        %v222 = vsub.f32 -1.4, %v114
        %v223 = vsub.f32 -1.4, %v115
        %v224 = vmul.f32 %v222, 2.5
        %v225 = vmul.f32 %v223, 2.5
        %v226 = vmul.f32 %v224, %v142
        %v227 = vmul.f32 %v225, %v143
        %v228 = vadd.f32 %v220, %v226
        %v229 = vadd.f32 %v221, %v227
        %v230 = vsub.f32 %v114, -1.8
        %v231 = vsub.f32 %v115, -1.8
        %v232 = vmul.f32 %v230, 2.5
        %v233 = vmul.f32 %v231, 2.5
        %v234 = vmul.f32 %v232, %v142
        %v235 = vmul.f32 %v233, %v143
        %v236 = vsub.f32 -1.0, %v114
        %v237 = vsub.f32 -1.0, %v115
        %v238 = vmul.f32 %v236, 2.5
        %v239 = vmul.f32 %v237, 2.5
        %v240 = vmul.f32 %v238, %v150
        %v241 = vmul.f32 %v239, %v151
        %v242 = vadd.f32 %v234, %v240
        %v243 = vadd.f32 %v235, %v241
        %v244 = vsub.f32 %v114, -1.4
        %v245 = vsub.f32 %v115, -1.4
        %v246 = vmul.f32 %v244, 2.5
        %v247 = vmul.f32 %v245, 2.5
        %v248 = vmul.f32 %v246, %v150
        %v249 = vmul.f32 %v247, %v151
        %v250 = vsub.f32 -0.6, %v114
        %v251 = vsub.f32 -0.6, %v115
        %v252 = vmul.f32 %v250, 2.5
        %v253 = vmul.f32 %v251, 2.5
        %v254 = vmul.f32 %v252, %v158
        %v255 = vmul.f32 %v253, %v159
        %v256 = vadd.f32 %v248, %v254
        %v257 = vadd.f32 %v249, %v255
        %v258 = vsub.f32 %v114, -1.0
        %v259 = vsub.f32 %v115, -1.0
        %v260 = vmul.f32 %v258, 2.5
        %v261 = vmul.f32 %v259, 2.5
        %v262 = vmul.f32 %v260, %v158
        %v263 = vmul.f32 %v261, %v159
        %v264 = vsub.f32 -0.2, %v114
        %v265 = vsub.f32 -0.2, %v115
        %v266 = vmul.f32 %v264, 2.5
        %v267 = vmul.f32 %v265, 2.5
        %v268 = vmul.f32 %v266, %v166
        %v269 = vmul.f32 %v267, %v167
        %v270 = vadd.f32 %v262, %v268
        %v271 = vadd.f32 %v263, %v269
        %v272 = vsub.f32 %v114, -0.6
        %v273 = vsub.f32 %v115, -0.6
        %v274 = vmul.f32 %v272, 2.5
        %v275 = vmul.f32 %v273, 2.5
        %v276 = vmul.f32 %v274, %v166
        %v277 = vmul.f32 %v275, %v167
        %v278 = vsub.f32 0.2, %v114
        %v279 = vsub.f32 0.2, %v115
        %v280 = vmul.f32 %v278, 2.5
        %v281 = vmul.f32 %v279, 2.5
        %v282 = vmul.f32 %v280, %v174
        %v283 = vmul.f32 %v281, %v175
        %v284 = vadd.f32 %v276, %v282
        %v285 = vadd.f32 %v277, %v283
        %v286 = vsub.f32 %v114, -0.2
        %v287 = vsub.f32 %v115, -0.2
        %v288 = vmul.f32 %v286, 2.5
        %v289 = vmul.f32 %v287, 2.5
        %v290 = vmul.f32 %v288, %v174
        %v291 = vmul.f32 %v289, %v175
        %v292 = vsub.f32 0.6, %v114
        %v293 = vsub.f32 0.6, %v115
        %v294 = vmul.f32 %v292, 2.5
        %v295 = vmul.f32 %v293, 2.5
        %v296 = vmul.f32 %v294, %v182
        %v297 = vmul.f32 %v295, %v183
        %v298 = vadd.f32 %v290, %v296
        %v299 = vadd.f32 %v291, %v297
        %v300 = vsub.f32 %v114, 0.2
        %v301 = vsub.f32 %v115, 0.2
        %v302 = vmul.f32 %v300, 2.5
        %v303 = vmul.f32 %v301, 2.5
        %v304 = vmul.f32 %v302, %v182
        %v305 = vmul.f32 %v303, %v183
        %v306 = vsub.f32 1.0, %v114
        %v307 = vsub.f32 1.0, %v115
        %v308 = vmul.f32 %v306, 2.5
        %v309 = vmul.f32 %v307, 2.5
        %v310 = vmul.f32 %v308, %v190
        %v311 = vmul.f32 %v309, %v191
        %v312 = vadd.f32 %v304, %v310
        %v313 = vadd.f32 %v305, %v311
        %v314 = vsub.f32 %v114, 0.6
        %v315 = vsub.f32 %v115, 0.6
        %v316 = vmul.f32 %v314, 2.5
        %v317 = vmul.f32 %v315, 2.5
        %v318 = vmul.f32 %v316, %v190
        %v319 = vmul.f32 %v317, %v191
        %v320 = vsub.f32 1.4, %v114
        %v321 = vsub.f32 1.4, %v115
        %v322 = vmul.f32 %v320, 2.5
        %v323 = vmul.f32 %v321, 2.5
        %v324 = vmul.f32 %v322, %v198
        %v325 = vmul.f32 %v323, %v199
        %v326 = vadd.f32 %v318, %v324
        %v327 = vadd.f32 %v319, %v325
        %v328 = vsub.f32 %v114, 1.0
        %v329 = vsub.f32 %v115, 1.0
        %v330 = vmul.f32 %v328, 2.5
        %v331 = vmul.f32 %v329, 2.5
        %v332 = vmul.f32 %v330, %v198
        %v333 = vmul.f32 %v331, %v199
        %v334 = vsub.f32 1.8, %v114
        %v335 = vsub.f32 1.8, %v115
        %v336 = vmul.f32 %v334, 2.5
        %v337 = vmul.f32 %v335, 2.5
        %v338 = vmul.f32 %v336, %v206
        %v339 = vmul.f32 %v337, %v207
        %v340 = vadd.f32 %v332, %v338
        %v341 = vadd.f32 %v333, %v339
        %v342 = vsub.f32 %v114, 1.4
        %v343 = vsub.f32 %v115, 1.4
        %v344 = vmul.f32 %v342, 2.5
        %v345 = vmul.f32 %v343, 2.5
        %v346 = vmul.f32 %v344, %v206
        %v347 = vmul.f32 %v345, %v207
        %v348 = vsub.f32 2.2, %v114
        %v349 = vsub.f32 2.2, %v115
        %v350 = vmul.f32 %v348, 2.5
        %v351 = vmul.f32 %v349, 2.5
        %v352 = vmul.f32 %v350, %v214
        %v353 = vmul.f32 %v351, %v215
        %v354 = vadd.f32 %v346, %v352
        %v355 = vadd.f32 %v347, %v353
        %v356 = vmul.f32 %v216, 1.25
        %v357 = vmul.f32 %v217, 1.25
        %v358 = vmul.f32 %v356, %v228
        %v359 = vmul.f32 %v357, %v229
        %v360 = vmul.f32 %v236, 1.25
        %v361 = vmul.f32 %v237, 1.25
        %v362 = vmul.f32 %v360, %v242
        %v363 = vmul.f32 %v361, %v243
        %v364 = vadd.f32 %v358, %v362
        %v365 = vadd.f32 %v359, %v363
        %v366 = vmul.f32 %v230, 1.25
        %v367 = vmul.f32 %v231, 1.25
        %v368 = vmul.f32 %v366, %v242
        %v369 = vmul.f32 %v367, %v243
        %v370 = vmul.f32 %v250, 1.25
        %v371 = vmul.f32 %v251, 1.25
        %v372 = vmul.f32 %v370, %v256
        %v373 = vmul.f32 %v371, %v257
        %v374 = vadd.f32 %v368, %v372
        %v375 = vadd.f32 %v369, %v373
        %v376 = vmul.f32 %v244, 1.25
        %v377 = vmul.f32 %v245, 1.25
        %v378 = vmul.f32 %v376, %v256
        %v379 = vmul.f32 %v377, %v257
        %v380 = vmul.f32 %v264, 1.25
        %v381 = vmul.f32 %v265, 1.25
        %v382 = vmul.f32 %v380, %v270
        %v383 = vmul.f32 %v381, %v271
        %v384 = vadd.f32 %v378, %v382
        %v385 = vadd.f32 %v379, %v383
        %v386 = vmul.f32 %v258, 1.25
        %v387 = vmul.f32 %v259, 1.25
        %v388 = vmul.f32 %v386, %v270
        %v389 = vmul.f32 %v387, %v271
        %v390 = vmul.f32 %v278, 1.25
        %v391 = vmul.f32 %v279, 1.25
        %v392 = vmul.f32 %v390, %v284
        %v393 = vmul.f32 %v391, %v285
        %v394 = vadd.f32 %v388, %v392
        %v395 = vadd.f32 %v389, %v393
        %v396 = vmul.f32 %v272, 1.25
        %v397 = vmul.f32 %v273, 1.25
        %v398 = vmul.f32 %v396, %v284
        %v399 = vmul.f32 %v397, %v285
        %v400 = vmul.f32 %v292, 1.25
        %v401 = vmul.f32 %v293, 1.25
        %v402 = vmul.f32 %v400, %v298
        %v403 = vmul.f32 %v401, %v299
        %v404 = vadd.f32 %v398, %v402
        %v405 = vadd.f32 %v399, %v403
        %v406 = vmul.f32 %v286, 1.25
        %v407 = vmul.f32 %v287, 1.25
        %v408 = vmul.f32 %v406, %v298
        %v409 = vmul.f32 %v407, %v299
        %v410 = vmul.f32 %v306, 1.25
        %v411 = vmul.f32 %v307, 1.25
        %v412 = vmul.f32 %v410, %v312
        %v413 = vmul.f32 %v411, %v313
        %v414 = vadd.f32 %v408, %v412
        %v415 = vadd.f32 %v409, %v413
        %v416 = vmul.f32 %v300, 1.25
        %v417 = vmul.f32 %v301, 1.25
        %v418 = vmul.f32 %v416, %v312
        %v419 = vmul.f32 %v417, %v313
        %v420 = vmul.f32 %v320, 1.25
        %v421 = vmul.f32 %v321, 1.25
        %v422 = vmul.f32 %v420, %v326
        %v423 = vmul.f32 %v421, %v327
        %v424 = vadd.f32 %v418, %v422
        %v425 = vadd.f32 %v419, %v423
        %v426 = vmul.f32 %v314, 1.25
        %v427 = vmul.f32 %v315, 1.25
        %v428 = vmul.f32 %v426, %v326
        %v429 = vmul.f32 %v427, %v327
        %v430 = vmul.f32 %v334, 1.25
        %v431 = vmul.f32 %v335, 1.25
        %v432 = vmul.f32 %v430, %v340
        %v433 = vmul.f32 %v431, %v341
        %v434 = vadd.f32 %v428, %v432
        %v435 = vadd.f32 %v429, %v433
        %v436 = vmul.f32 %v328, 1.25
        %v437 = vmul.f32 %v329, 1.25
        %v438 = vmul.f32 %v436, %v340
        %v439 = vmul.f32 %v437, %v341
        %v440 = vmul.f32 %v348, 1.25
        %v441 = vmul.f32 %v349, 1.25
        %v442 = vmul.f32 %v440, %v354
        %v443 = vmul.f32 %v441, %v355
        %v444 = vadd.f32 %v438, %v442
        %v445 = vadd.f32 %v439, %v443
        %v446 = vmul.f32 %v216, 0.8333333
        %v447 = vmul.f32 %v217, 0.8333333
        %v448 = vmul.f32 %v446, %v364
        %v449 = vmul.f32 %v447, %v365
        %v450 = vmul.f32 %v250, 0.8333333
        %v451 = vmul.f32 %v251, 0.8333333
        %v452 = vmul.f32 %v450, %v374
        %v453 = vmul.f32 %v451, %v375
        %v454 = vadd.f32 %v448, %v452
        %v455 = vadd.f32 %v449, %v453
        %v456 = vmul.f32 %v230, 0.8333333
        %v457 = vmul.f32 %v231, 0.8333333
        %v458 = vmul.f32 %v456, %v374
        %v459 = vmul.f32 %v457, %v375
        %v460 = vmul.f32 %v264, 0.8333333
        %v461 = vmul.f32 %v265, 0.8333333
        %v462 = vmul.f32 %v460, %v384
        %v463 = vmul.f32 %v461, %v385
        %v464 = vadd.f32 %v458, %v462
        %v465 = vadd.f32 %v459, %v463
        %v466 = vmul.f32 %v244, 0.8333333
        %v467 = vmul.f32 %v245, 0.8333333
        %v468 = vmul.f32 %v466, %v384
        %v469 = vmul.f32 %v467, %v385
        %v470 = vmul.f32 %v278, 0.8333333
        %v471 = vmul.f32 %v279, 0.8333333
        %v472 = vmul.f32 %v470, %v394
        %v473 = vmul.f32 %v471, %v395
        %v474 = vadd.f32 %v468, %v472
        %v475 = vadd.f32 %v469, %v473
        %v476 = vmul.f32 %v258, 0.8333333
        %v477 = vmul.f32 %v259, 0.8333333
        %v478 = vmul.f32 %v476, %v394
        %v479 = vmul.f32 %v477, %v395
        %v480 = vmul.f32 %v292, 0.8333333
        %v481 = vmul.f32 %v293, 0.8333333
        %v482 = vmul.f32 %v480, %v404
        %v483 = vmul.f32 %v481, %v405
        %v484 = vadd.f32 %v478, %v482
        %v485 = vadd.f32 %v479, %v483
        %v486 = vmul.f32 %v272, 0.8333333
        %v487 = vmul.f32 %v273, 0.8333333
        %v488 = vmul.f32 %v486, %v404
        %v489 = vmul.f32 %v487, %v405
        %v490 = vmul.f32 %v306, 0.8333333
        %v491 = vmul.f32 %v307, 0.8333333
        %v492 = vmul.f32 %v490, %v414
        %v493 = vmul.f32 %v491, %v415
        %v494 = vadd.f32 %v488, %v492
        %v495 = vadd.f32 %v489, %v493
        %v496 = vmul.f32 %v286, 0.8333333
        %v497 = vmul.f32 %v287, 0.8333333
        %v498 = vmul.f32 %v496, %v414
        %v499 = vmul.f32 %v497, %v415
        %v500 = vmul.f32 %v320, 0.8333333
        %v501 = vmul.f32 %v321, 0.8333333
        %v502 = vmul.f32 %v500, %v424
        %v503 = vmul.f32 %v501, %v425
        %v504 = vadd.f32 %v498, %v502
        %v505 = vadd.f32 %v499, %v503
        %v506 = vmul.f32 %v300, 0.8333333
        %v507 = vmul.f32 %v301, 0.8333333
        %v508 = vmul.f32 %v506, %v424
        %v509 = vmul.f32 %v507, %v425
        %v510 = vmul.f32 %v334, 0.8333333
        %v511 = vmul.f32 %v335, 0.8333333
        %v512 = vmul.f32 %v510, %v434
        %v513 = vmul.f32 %v511, %v435
        %v514 = vadd.f32 %v508, %v512
        %v515 = vadd.f32 %v509, %v513
        %v516 = vmul.f32 %v314, 0.8333333
        %v517 = vmul.f32 %v315, 0.8333333
        %v518 = vmul.f32 %v516, %v434
        %v519 = vmul.f32 %v517, %v435
        %v520 = vmul.f32 %v348, 0.8333333
        %v521 = vmul.f32 %v349, 0.8333333
        %v522 = vmul.f32 %v520, %v444
        %v523 = vmul.f32 %v521, %v445
        %v524 = vadd.f32 %v518, %v522
        %v525 = vadd.f32 %v519, %v523
        %v526 = vpack.c.bf16 %v454, %v126
        %v527 = vpack.c.bf16 %v455, %v127
        %v528 = vpack.c.bf16 %v474, %v464
        %v529 = vpack.c.bf16 %v475, %v465
        %v530 = vpack.c.bf16 %v494, %v484
        %v531 = vpack.c.bf16 %v495, %v485
        %v532 = vpack.c.bf16 %v514, %v504
        %v533 = vpack.c.bf16 %v515, %v505
        %v534 = vpack.c.bf16 %v524, %v524
        %v535 = vpack.c.bf16 %v525, %v525
        %v546 = vunpack.c.l.b16 %v526
        %v547 = vunpack.c.l.b16 %v527
        %v548 = vunpack.c.h.b16 %v526
        %v549 = vunpack.c.h.b16 %v527
        %v550 = vunpack.c.l.b16 %v528
        %v551 = vunpack.c.l.b16 %v529
        %v552 = vunpack.c.h.b16 %v528
        %v553 = vunpack.c.h.b16 %v529
        %v554 = vunpack.c.l.b16 %v530
        %v555 = vunpack.c.l.b16 %v531
        %v556 = vunpack.c.h.b16 %v530
        %v557 = vunpack.c.h.b16 %v531
        %v558 = vunpack.c.l.b16 %v532
        %v559 = vunpack.c.l.b16 %v533
        %v560 = vunpack.c.h.b16 %v532
        %v561 = vunpack.c.h.b16 %v533
        %v562 = vunpack.c.l.b16 %v534
        %v563 = vunpack.c.l.b16 %v535
        %v564 = vpack.c.b16 %v547, %v546
        %v565 = vpack.c.b16 %v549, %v548
        %v566 = vpack.c.b16 %v551, %v550
        %v567 = vpack.c.b16 %v553, %v552
        %v568 = vpack.c.b16 %v555, %v554
        %v569 = vpack.c.b16 %v557, %v556
        %v570 = vpack.c.b16 %v559, %v558
        %v571 = vpack.c.b16 %v561, %v560
        %v572 = vpack.c.b16 %v563, %v562
        %582 = vst [vmem:[%s106] sm:$0xff] %v564
        %583 = vst [vmem:[%s106 + $0x8] sm:$0xff] %v565
        %584 = vst [vmem:[%s106 + $0x10] sm:$0xff] %v566
        %585 = vst [vmem:[%s106 + $0x18] sm:$0xff] %v567
        %586 = vst [vmem:[%s106 + $0x20] sm:$0xff] %v568
        %587 = vst [vmem:[%s106 + $0x28] sm:$0xff] %v569
        %588 = vst [vmem:[%s106 + $0x30] sm:$0xff] %v570
        %589 = vst [vmem:[%s106 + $0x38] sm:$0xff] %v571
        %590 = vst [vmem:[%s106 + $0x40] sm:$0xff] %v572
        %s591 = sand.u32 %s46, 1
        %s592 = sand.u32 %s46, 1
        %s593 = smul.addr %s592, 72
        %s594 = scalar_lea.vmem [#allocation2], %s593
        // Predicated region
        $region25: #{_lambda_.6} parent=23 // pred_check
          %p595 = pneg %p56
        $region26: #{_lambda_.6} parent=23 // pred_check_branch
          %597 = sbr.rel (%p595) target = $region28
        $region27: #{_lambda_.6} parent=23 // pred_region
          %s598 = smul.u32 2, %s12
          %s599 = smul.addr %s598, 4
          %s600 = scalar_lea.vmem %s1, %s599
          // Predicated region
          $region29: #{_lambda_.6} parent=27 // pred_check
            _
          $region30: #{_lambda_.6} parent=27 // pred_check_branch
            %602 = sbr.rel (0) target = $region32
          $region31: #{_lambda_.6} parent=27 // pred_region
            // Predicated region
            $region33: #{_lambda_.6} parent=31 // pred_check
              _
            $region34: #{_lambda_.6} parent=31 // pred_check_branch
              %604 = sbr.rel (0) target = $region36
            $region35: #{_lambda_.6} parent=31 // pred_region
              // Predicated region
              $region48: #{_lambda_.6} parent=35 // pred_check
                _
              $region49: #{_lambda_.6} parent=35 // pred_check_branch
                %635 = sbr.rel (0) target = $region51
              $region50: #{_lambda_.6} parent=35 // pred_region
                loop: start=0, step=1, limit=1
                $region52: #{_lambda_.6} parent=50 // loop_pre_header
                  _
                $region53: #{_lambda_.6} parent=50 // loop_header
                  %s637 = sphi 0, %s641
                  %p638 = scmp.ge.s32.totalorder %s637, 1
                  %s642 = sphi %s594, %s594
                  %s643 = sphi %s600, %s600
                $region54: #{_lambda_.6} parent=50 // loop_header_branch
                  %640 = sbr.rel (%p638) target = $region58
                $region55: #{_lambda_.6} parent=50 // loop_body
                  %v644 = vld [vmem:[%s642] sm:$0xff]
                  %645 = vst [vmem:[%s643] sm:$0xff] %v644
                  %v646 = vld [vmem:[%s642 + $0x8] sm:$0xff]
                  %647 = vst [vmem:[%s643 + $0x40] sm:$0xff] %v646
                  %v648 = vld [vmem:[%s642 + $0x10] sm:$0xff]
                  %649 = vst [vmem:[%s643 + $0x80] sm:$0xff] %v648
                  %v650 = vld [vmem:[%s642 + $0x18] sm:$0xff]
                  %651 = vst [vmem:[%s643 + $0xc0] sm:$0xff] %v650
                  %v652 = vld [vmem:[%s642 + $0x20] sm:$0xff]
                  %653 = vst [vmem:[%s643 + $0x100] sm:$0xff] %v652
                  %v654 = vld [vmem:[%s642 + $0x28] sm:$0xff]
                  %655 = vst [vmem:[%s643 + $0x140] sm:$0xff] %v654
                  %v656 = vld [vmem:[%s642 + $0x30] sm:$0xff]
                  %657 = vst [vmem:[%s643 + $0x180] sm:$0xff] %v656
                  %v658 = vld [vmem:[%s642 + $0x38] sm:$0xff]
                  %659 = vst [vmem:[%s643 + $0x1c0] sm:$0xff] %v658
                  %v660 = vld [vmem:[%s642 + $0x40] sm:$0xff]
                  %661 = vst [vmem:[%s643 + $0x200] sm:$0xff] %v660
                $region56: #{_lambda_.6} parent=50 // loop_footer
                  %s641 = sadd.s32 1, %s637
                $region57: #{_lambda_.6} parent=50 // loop_footer_branch
                  %636 = sbr.rel target = $region53
                $region58: #{_lambda_.6} parent=50 // loop_exit
                  _
              $region51: #{_lambda_.6} parent=35 // pred_fallthru
                _
              // Predicated region
              $region59: #{_lambda_.6} parent=35 // pred_check
                _
              $region60: #{_lambda_.6} parent=35 // pred_check_branch
                %663 = sbr.rel target = $region62
              $region61: #{_lambda_.6} parent=35 // pred_region
                _
              $region62: #{_lambda_.6} parent=35 // pred_fallthru
                _
            $region36: #{_lambda_.6} parent=31 // pred_fallthru
              _
            // Predicated region
            $region37: #{_lambda_.6} parent=31 // pred_check
              _
            $region38: #{_lambda_.6} parent=31 // pred_check_branch
              %606 = sbr.rel target = $region40
            $region39: #{_lambda_.6} parent=31 // pred_region
              loop: start=0, step=1, limit=1
              $region41: #{_lambda_.6} parent=39 // loop_pre_header
                _
              $region42: #{_lambda_.6} parent=39 // loop_header
                %s609 = sphi 0, %s613
                %p610 = scmp.ge.s32.totalorder %s609, 1
                %s614 = sphi %s594, %s594
                %s615 = sphi %s600, %s600
              $region43: #{_lambda_.6} parent=39 // loop_header_branch
                %612 = sbr.rel (%p610) target = $region47
              $region44: #{_lambda_.6} parent=39 // loop_body
                %v616 = vld [vmem:[%s614] sm:$0xff]
                %617 = vst [vmem:[%s615] sm:$0xff] %v616
                %v618 = vld [vmem:[%s614 + $0x8] sm:$0xff]
                %619 = vst [vmem:[%s615 + $0x40] sm:$0xff] %v618
                %v620 = vld [vmem:[%s614 + $0x10] sm:$0xff]
                %621 = vst [vmem:[%s615 + $0x80] sm:$0xff] %v620
                %v622 = vld [vmem:[%s614 + $0x18] sm:$0xff]
                %623 = vst [vmem:[%s615 + $0xc0] sm:$0xff] %v622
                %v624 = vld [vmem:[%s614 + $0x20] sm:$0xff]
                %625 = vst [vmem:[%s615 + $0x100] sm:$0xff] %v624
                %v626 = vld [vmem:[%s614 + $0x28] sm:$0xff]
                %627 = vst [vmem:[%s615 + $0x140] sm:$0xff] %v626
                %v628 = vld [vmem:[%s614 + $0x30] sm:$0xff]
                %629 = vst [vmem:[%s615 + $0x180] sm:$0xff] %v628
                %v630 = vld [vmem:[%s614 + $0x38] sm:$0xff]
                %631 = vst [vmem:[%s615 + $0x1c0] sm:$0xff] %v630
                %v632 = vld [vmem:[%s614 + $0x40] sm:$0xff]
                %633 = vst [vmem:[%s615 + $0x200] sm:$0xff] %v632
              $region45: #{_lambda_.6} parent=39 // loop_footer
                %s613 = sadd.s32 1, %s609
              $region46: #{_lambda_.6} parent=39 // loop_footer_branch
                %608 = sbr.rel target = $region42
              $region47: #{_lambda_.6} parent=39 // loop_exit
                _
            $region40: #{_lambda_.6} parent=31 // pred_fallthru
              _
          $region32: #{_lambda_.6} parent=27 // pred_fallthru
            _
          %664 = vnop
        $region28: #{_lambda_.6} parent=23 // pred_fallthru
          _
      $region24: #{_lambda_.6} parent=5 // pred_fallthru
        _
      %p665 = scmp.le.s32.totalorder 2, %s7
      // Predicated region
      $region63: #{_lambda_.6} parent=5 // pred_check
        %p666 = pneg %p665
      $region64: #{_lambda_.6} parent=5 // pred_check_branch
        %668 = sbr.rel (%p666) target = $region66
      $region65: #{_lambda_.6} parent=5 // pred_region
        %s669 = ssub.s32 %s7, 2
        // Predicated region
        $region67: #{_lambda_.6} parent=65 // pred_check
          %p670 = pneg %p62
        $region68: #{_lambda_.6} parent=65 // pred_check_branch
          %672 = sbr.rel (%p670) target = $region70
        $region69: #{_lambda_.6} parent=65 // pred_region
          %s673 = sand.u32 %s47, 1
          %s674 = sand.u32 %s47, 1
          %s675 = smul.addr %s674, 72
          %s676 = scalar_lea.vmem [#allocation2], %s675
        $region70: #{_lambda_.6} parent=65 // pred_fallthru
          _
      $region66: #{_lambda_.6} parent=5 // pred_fallthru
        _
    $region6: #{_lambda_.6} parent=1 // loop_footer
      %s11 = sadd.s32 1, %s7
    $region7: #{_lambda_.6} parent=1 // loop_footer_branch
      %6 = sbr.rel target = $region3
    $region8: #{_lambda_.6} parent=1 // loop_exit
      _

// kernel: _lambda_.7
$region0: #{_lambda_.7}
  #allocation0 [shape = 'u32[]', space=smem, size = 0x4, offset = 0x4, fixed_abs, tag = 'smem constant byte address 0x4 - core index']
  #allocation1 [shape = 'u32[144,128]{1,0:T(1,128)}', space=vmem, size = 0x12000, scoped, tag = 'internal scratch']
  #allocation2 [shape = 'f32[12,128]{1,0:T(8,128)}', space=vmem, size = 0x2000, scoped, tag = 'scratch operand']
  %s0 = inlined_call_operand.vmem [shape: bf16[12,288], index: 0, kind: input, shape index: {}]
  %s1 = inlined_call_operand.vmem [shape: bf16[288,2304], index: 1, kind: input, shape index: {}]
  %s2 = inlined_call_operand.vmem [shape: f32[12,2304], index: 2, kind: output, shape index: {}]
  %s3 = sld [smem:[#allocation0]]
  $region124: #{_lambda_.7} parent=0
    _
  %s5 = ssub.s32 1, %s3
  %s6 = scalar_select 0, %s5, %s3
  $region1: #{_lambda_.7} parent=0
    #allocation3 [shape = 'u8[147456]{0}', space=vmem, size = 0x24000, scoped, tag = 'input window, operand 1']
    #allocation4 [shape = 'u8[16384]{0}', space=vmem, size = 0x4000, scoped, tag = 'output window, operand 0']
    loop: start=0, step=1, limit=20
    $region2: #{_lambda_.7} parent=1 // loop_pre_header
      _
    $region3: #{_lambda_.7} parent=1 // loop_header
      %s8 = sphi 0, %s12
      %p9 = scmp.ge.s32.totalorder %s8, 20
      %s15 = sphi 0, %s27
      %s16 = sphi 0, %s23
      %s17 = sphi 0, %s15
      %s18 = sphi 0, %s16
      %s19 = sphi 0, %s17
      %s20 = sphi 0, %s18
      %s30 = sphi 0, %s32
      %s33 = sphi 0, %s30
      %s34 = sphi 0, %s33
      %s50 = sphi 0, %s34
      %s58 = sphi 0, %s60
      %s61 = sphi 0, %s58
      %s62 = sphi 0, %s61
      %s78 = sphi 0, %s62
      %s84 = sphi 0, %s86
      %s87 = sphi 0, %s84
      %s88 = sphi 0, %s87
      %s104 = sphi 0, %s88
    $region4: #{_lambda_.7} parent=1 // loop_header_branch
      %11 = sbr.rel (%p9) target = $region8
    $region5: #{_lambda_.7} parent=1 // loop_body
      %s13 = ssub.s32 %s8, 1
      %s14 = ssub.s32 %s8, 2
      %s21 = sadd.s32 1, %s16
      %p22 = scmp.ge.s32.totalorder %s21, 1
      %s23 = scalar_select %p22, 0, %s21
      %s24 = sadd.s32 1, %s15
      %s25 = scalar_select %p22, %s24, %s15
      %p26 = scmp.ge.s32.totalorder %s25, 18
      %s27 = scalar_select %p26, 0, %s25
      %s28 = ssub.s32 %s16, %s23
      %p29 = scmp.eq.s32.totalorder %s28, 0
      %s31 = sadd.s32 %s30, 1
      %s32 = scalar_select %p29, %s30, %s31
      %p35 = pneg %p29
      %p36 = scmp.eq.s32.totalorder %s8, 17
      %p37 = por %p35, %p36
      %p38 = scmp.ne.s32.totalorder %s30, %s33
      %p39 = scmp.eq.s32.totalorder %s8, 0
      %p40 = por %p38, %p39
      %p41 = scmp.ne.s32.totalorder %s30, %s33
      %p42 = scmp.eq.s32.totalorder %s13, 17
      %p43 = por %p41, %p42
      %p44 = scmp.ne.s32.totalorder %s33, %s34
      %p45 = scmp.eq.s32.totalorder %s13, 0
      %p46 = por %p44, %p45
      %p47 = scmp.ne.s32.totalorder %s33, %s34
      %p48 = scmp.eq.s32.totalorder %s14, 17
      %p49 = por %p47, %p48
      %p51 = scmp.ne.s32.totalorder %s34, %s50
      %p52 = scmp.eq.s32.totalorder %s14, 0
      %p53 = por %p51, %p52
      %s54 = ssub.s32 %s16, %s23
      %s55 = ssub.s32 %s15, %s27
      %s56 = sor.u32 %s54, %s55
      %p57 = scmp.eq.s32.totalorder %s56, 0
      %s59 = sadd.s32 %s58, 1
      %s60 = scalar_select %p57, %s58, %s59
      %p63 = pneg %p57
      %p64 = scmp.eq.s32.totalorder %s8, 17
      %p65 = por %p63, %p64
      %p66 = scmp.ne.s32.totalorder %s58, %s61
      %p67 = scmp.eq.s32.totalorder %s8, 0
      %p68 = por %p66, %p67
      %p69 = scmp.ne.s32.totalorder %s58, %s61
      %p70 = scmp.eq.s32.totalorder %s13, 17
      %p71 = por %p69, %p70
      %p72 = scmp.ne.s32.totalorder %s61, %s62
      %p73 = scmp.eq.s32.totalorder %s13, 0
      %p74 = por %p72, %p73
      %p75 = scmp.ne.s32.totalorder %s61, %s62
      %p76 = scmp.eq.s32.totalorder %s14, 17
      %p77 = por %p75, %p76
      %p79 = scmp.ne.s32.totalorder %s62, %s78
      %p80 = scmp.eq.s32.totalorder %s14, 0
      %p81 = por %p79, %p80
      %s82 = ssub.s32 %s15, %s27
      %p83 = scmp.eq.s32.totalorder %s82, 0
      %s85 = sadd.s32 %s84, 1
      %s86 = scalar_select %p83, %s84, %s85
      %p89 = pneg %p83
      %p90 = scmp.eq.s32.totalorder %s8, 17
      %p91 = por %p89, %p90
      %p92 = scmp.ne.s32.totalorder %s84, %s87
      %p93 = scmp.eq.s32.totalorder %s8, 0
      %p94 = por %p92, %p93
      %p95 = scmp.ne.s32.totalorder %s84, %s87
      %p96 = scmp.eq.s32.totalorder %s13, 17
      %p97 = por %p95, %p96
      %p98 = scmp.ne.s32.totalorder %s87, %s88
      %p99 = scmp.eq.s32.totalorder %s13, 0
      %p100 = por %p98, %p99
      %p101 = scmp.ne.s32.totalorder %s87, %s88
      %p102 = scmp.eq.s32.totalorder %s14, 17
      %p103 = por %p101, %p102
      %p105 = scmp.ne.s32.totalorder %s88, %s104
      %p106 = scmp.eq.s32.totalorder %s14, 0
      %p107 = por %p105, %p106
      %p108 = scmp.le.s32.totalorder 1, %s8
      %p109 = scmp.lt.s32.totalorder %s8, 19
      %p110 = pnand %p108, %p109
      %p111 = pneg %p110
      // Predicated region
      $region9: #{_lambda_.7} parent=5 // pred_check
        _
      $region10: #{_lambda_.7} parent=5 // pred_check_branch
        %113 = sbr.rel (%p110) target = $region12
      $region11: #{_lambda_.7} parent=5 // pred_region
        %s114 = ssub.s32 %s8, 1
        // Predicated region
        $region13: #{_lambda_.7} parent=11 // pred_check
          %p115 = pneg %p46
        $region14: #{_lambda_.7} parent=11 // pred_check_branch
          %117 = sbr.rel (%p115) target = $region16
        $region15: #{_lambda_.7} parent=11 // pred_region
          %s118 = smul.u32 3, %s18
          %p119 = scmp.lt.s32.totalorder %s118, 2
          %s120 = scalar_select %p119, %s118, 2
          %s121 = smul.addr %s120, 4
          %s122 = scalar_lea.vmem %s0, %s121
          %s123 = smul.u32 3, %s18
        $region16: #{_lambda_.7} parent=11 // pred_fallthru
          _
      $region12: #{_lambda_.7} parent=5 // pred_fallthru
        _
      %p124 = scmp.lt.s32.totalorder %s8, 18
      // Predicated region
      $region17: #{_lambda_.7} parent=5 // pred_check
        %p125 = pneg %p124
      $region18: #{_lambda_.7} parent=5 // pred_check_branch
        %127 = sbr.rel (%p125) target = $region20
      $region19: #{_lambda_.7} parent=5 // pred_region
        // Predicated region
        $region21: #{_lambda_.7} parent=19 // pred_check
          %p128 = pneg %p68
        $region22: #{_lambda_.7} parent=19 // pred_check_branch
          %130 = sbr.rel (%p128) target = $region24
        $region23: #{_lambda_.7} parent=19 // pred_region
          %s131 = sand.u32 %s58, 1
          %s132 = sand.u32 %s58, 1
          %s133 = smul.addr %s132, 144
          %s134 = scalar_lea.vmem [#allocation3], %s133
          %s135 = smul.u32 36, %s16
          %s136 = smul.addr %s135, 18
          %s137 = sadd.s32 %s15, %s136
          %s138 = smul.addr %s137, 4
          %s139 = scalar_lea.vmem %s1, %s138
          // Predicated region
          $region25: #{_lambda_.7} parent=23 // pred_check
            _
          $region26: #{_lambda_.7} parent=23 // pred_check_branch
            %141 = sbr.rel (0) target = $region28
          $region27: #{_lambda_.7} parent=23 // pred_region
            // Predicated region
            $region29: #{_lambda_.7} parent=27 // pred_check
              _
            $region30: #{_lambda_.7} parent=27 // pred_check_branch
              %143 = sbr.rel target = $region32
            $region31: #{_lambda_.7} parent=27 // pred_region
              // Predicated region
              $region44: #{_lambda_.7} parent=31 // pred_check
                _
              $region45: #{_lambda_.7} parent=31 // pred_check_branch
                %228 = sbr.rel (0) target = $region47
              $region46: #{_lambda_.7} parent=31 // pred_region
                loop: start=0, step=1, limit=1
                $region48: #{_lambda_.7} parent=46 // loop_pre_header
                  _
                $region49: #{_lambda_.7} parent=46 // loop_header
                  %s230 = sphi 0, %s234
                  %p231 = scmp.ge.s32.totalorder %s230, 1
                  %s235 = sphi %s139, %s139
                  %s236 = sphi %s134, %s134
                $region50: #{_lambda_.7} parent=46 // loop_header_branch
                  %233 = sbr.rel (%p231) target = $region54
                $region51: #{_lambda_.7} parent=46 // loop_body
                  _
                $region52: #{_lambda_.7} parent=46 // loop_footer
                  %s234 = sadd.s32 1, %s230
                $region53: #{_lambda_.7} parent=46 // loop_footer_branch
                  %229 = sbr.rel target = $region49
                $region54: #{_lambda_.7} parent=46 // loop_exit
                  _
                loop: start=0, step=1, limit=1
                $region55: #{_lambda_.7} parent=46 // loop_pre_header
                  _
                $region56: #{_lambda_.7} parent=46 // loop_header
                  %s239 = sphi 0, %s243
                  %p240 = scmp.ge.s32.totalorder %s239, 1
                  %s244 = sphi %s139, %s139
                  %s245 = sphi %s134, %s134
                $region57: #{_lambda_.7} parent=46 // loop_header_branch
                  %242 = sbr.rel (%p240) target = $region61
                $region58: #{_lambda_.7} parent=46 // loop_body
                  %v246 = vld [vmem:[%s244] sm:$0xf]
                  %247 = vst [vmem:[%s245] sm:$0xf] %v246
                  %v248 = vld [vmem:[%s244 + $0x48] sm:$0xf]
                  %249 = vst [vmem:[%s245 + $0x4] sm:$0xf] %v248
                  %v250 = vld [vmem:[%s244 + $0x90] sm:$0xf]
                  %251 = vst [vmem:[%s245 + $0x8] sm:$0xf] %v250
                  %v252 = vld [vmem:[%s244 + $0xd8] sm:$0xf]
                  %253 = vst [vmem:[%s245 + $0xc] sm:$0xf] %v252
                  %v254 = vld [vmem:[%s244 + $0x120] sm:$0xf]
                  %255 = vst [vmem:[%s245 + $0x10] sm:$0xf] %v254
                  %v256 = vld [vmem:[%s244 + $0x168] sm:$0xf]
                  %257 = vst [vmem:[%s245 + $0x14] sm:$0xf] %v256
                  %v258 = vld [vmem:[%s244 + $0x1b0] sm:$0xf]
                  %259 = vst [vmem:[%s245 + $0x18] sm:$0xf] %v258
                  %v260 = vld [vmem:[%s244 + $0x1f8] sm:$0xf]
                  %261 = vst [vmem:[%s245 + $0x1c] sm:$0xf] %v260
                  %v262 = vld [vmem:[%s244 + $0x240] sm:$0xf]
                  %263 = vst [vmem:[%s245 + $0x20] sm:$0xf] %v262
                  %v264 = vld [vmem:[%s244 + $0x288] sm:$0xf]
                  %265 = vst [vmem:[%s245 + $0x24] sm:$0xf] %v264
                  %v266 = vld [vmem:[%s244 + $0x2d0] sm:$0xf]
                  %267 = vst [vmem:[%s245 + $0x28] sm:$0xf] %v266
                  %v268 = vld [vmem:[%s244 + $0x318] sm:$0xf]
                  %269 = vst [vmem:[%s245 + $0x2c] sm:$0xf] %v268
                  %v270 = vld [vmem:[%s244 + $0x360] sm:$0xf]
                  %271 = vst [vmem:[%s245 + $0x30] sm:$0xf] %v270
                  %v272 = vld [vmem:[%s244 + $0x3a8] sm:$0xf]
                  %273 = vst [vmem:[%s245 + $0x34] sm:$0xf] %v272
                  %v274 = vld [vmem:[%s244 + $0x3f0] sm:$0xf]
                  %275 = vst [vmem:[%s245 + $0x38] sm:$0xf] %v274
                  %v276 = vld [vmem:[%s244 + $0x438] sm:$0xf]
                  %277 = vst [vmem:[%s245 + $0x3c] sm:$0xf] %v276
                  %v278 = vld [vmem:[%s244 + $0x480] sm:$0xf]
                  %279 = vst [vmem:[%s245 + $0x40] sm:$0xf] %v278
                  %v280 = vld [vmem:[%s244 + $0x4c8] sm:$0xf]
                  %281 = vst [vmem:[%s245 + $0x44] sm:$0xf] %v280
                  %v282 = vld [vmem:[%s244 + $0x510] sm:$0xf]
                  %283 = vst [vmem:[%s245 + $0x48] sm:$0xf] %v282
                  %v284 = vld [vmem:[%s244 + $0x558] sm:$0xf]
                  %285 = vst [vmem:[%s245 + $0x4c] sm:$0xf] %v284
                  %v286 = vld [vmem:[%s244 + $0x5a0] sm:$0xf]
                  %287 = vst [vmem:[%s245 + $0x50] sm:$0xf] %v286
                  %v288 = vld [vmem:[%s244 + $0x5e8] sm:$0xf]
                  %289 = vst [vmem:[%s245 + $0x54] sm:$0xf] %v288
                  %v290 = vld [vmem:[%s244 + $0x630] sm:$0xf]
                  %291 = vst [vmem:[%s245 + $0x58] sm:$0xf] %v290
                  %v292 = vld [vmem:[%s244 + $0x678] sm:$0xf]
                  %293 = vst [vmem:[%s245 + $0x5c] sm:$0xf] %v292
                  %v294 = vld [vmem:[%s244 + $0x6c0] sm:$0xf]
                  %295 = vst [vmem:[%s245 + $0x60] sm:$0xf] %v294
                  %v296 = vld [vmem:[%s244 + $0x708] sm:$0xf]
                  %297 = vst [vmem:[%s245 + $0x64] sm:$0xf] %v296
                  %v298 = vld [vmem:[%s244 + $0x750] sm:$0xf]
                  %299 = vst [vmem:[%s245 + $0x68] sm:$0xf] %v298
                  %v300 = vld [vmem:[%s244 + $0x798] sm:$0xf]
                  %301 = vst [vmem:[%s245 + $0x6c] sm:$0xf] %v300
                  %v302 = vld [vmem:[%s244 + $0x7e0] sm:$0xf]
                  %303 = vst [vmem:[%s245 + $0x70] sm:$0xf] %v302
                  %v304 = vld [vmem:[%s244 + $0x828] sm:$0xf]
                  %305 = vst [vmem:[%s245 + $0x74] sm:$0xf] %v304
                  %v306 = vld [vmem:[%s244 + $0x870] sm:$0xf]
                  %307 = vst [vmem:[%s245 + $0x78] sm:$0xf] %v306
                  %v308 = vld [vmem:[%s244 + $0x8b8] sm:$0xf]
                  %309 = vst [vmem:[%s245 + $0x7c] sm:$0xf] %v308
                  %v310 = vld [vmem:[%s244 + $0x900] sm:$0xf]
                  %311 = vst [vmem:[%s245 + $0x80] sm:$0xf] %v310
                  %v312 = vld [vmem:[%s244 + $0x948] sm:$0xf]
                  %313 = vst [vmem:[%s245 + $0x84] sm:$0xf] %v312
                  %v314 = vld [vmem:[%s244 + $0x990] sm:$0xf]
                  %315 = vst [vmem:[%s245 + $0x88] sm:$0xf] %v314
                  %v316 = vld [vmem:[%s244 + $0x9d8] sm:$0xf]
                  %317 = vst [vmem:[%s245 + $0x8c] sm:$0xf] %v316
                $region59: #{_lambda_.7} parent=46 // loop_footer
                  %s243 = sadd.s32 1, %s239
                $region60: #{_lambda_.7} parent=46 // loop_footer_branch
                  %238 = sbr.rel target = $region56
                $region61: #{_lambda_.7} parent=46 // loop_exit
                  _
              $region47: #{_lambda_.7} parent=31 // pred_fallthru
                _
            $region32: #{_lambda_.7} parent=27 // pred_fallthru
              _
            // Predicated region
            $region33: #{_lambda_.7} parent=27 // pred_check
              _
            $region34: #{_lambda_.7} parent=27 // pred_check_branch
              %145 = sbr.rel (0) target = $region36
            $region35: #{_lambda_.7} parent=27 // pred_region
              loop: start=0, step=1, limit=1
              $region37: #{_lambda_.7} parent=35 // loop_pre_header
                _
              $region38: #{_lambda_.7} parent=35 // loop_header
                %s148 = sphi 0, %s152
                %p149 = scmp.ge.s32.totalorder %s148, 1
                %s153 = sphi %s139, %s139
                %s154 = sphi %s134, %s134
              $region39: #{_lambda_.7} parent=35 // loop_header_branch
                %151 = sbr.rel (%p149) target = $region43
              $region40: #{_lambda_.7} parent=35 // loop_body
                %v155 = vld [vmem:[%s153] sm:$0xf]
                %156 = vst [vmem:[%s154] sm:$0xf] %v155
                %v157 = vld [vmem:[%s153 + $0x48] sm:$0xf]
                %158 = vst [vmem:[%s154 + $0x4] sm:$0xf] %v157
                %v159 = vld [vmem:[%s153 + $0x90] sm:$0xf]
                %160 = vst [vmem:[%s154 + $0x8] sm:$0xf] %v159
                %v161 = vld [vmem:[%s153 + $0xd8] sm:$0xf]
                %162 = vst [vmem:[%s154 + $0xc] sm:$0xf] %v161
                %v163 = vld [vmem:[%s153 + $0x120] sm:$0xf]
                %164 = vst [vmem:[%s154 + $0x10] sm:$0xf] %v163
                %v165 = vld [vmem:[%s153 + $0x168] sm:$0xf]
                %166 = vst [vmem:[%s154 + $0x14] sm:$0xf] %v165
                %v167 = vld [vmem:[%s153 + $0x1b0] sm:$0xf]
                %168 = vst [vmem:[%s154 + $0x18] sm:$0xf] %v167
                %v169 = vld [vmem:[%s153 + $0x1f8] sm:$0xf]
                %170 = vst [vmem:[%s154 + $0x1c] sm:$0xf] %v169
                %v171 = vld [vmem:[%s153 + $0x240] sm:$0xf]
                %172 = vst [vmem:[%s154 + $0x20] sm:$0xf] %v171
                %v173 = vld [vmem:[%s153 + $0x288] sm:$0xf]
                %174 = vst [vmem:[%s154 + $0x24] sm:$0xf] %v173
                %v175 = vld [vmem:[%s153 + $0x2d0] sm:$0xf]
                %176 = vst [vmem:[%s154 + $0x28] sm:$0xf] %v175
                %v177 = vld [vmem:[%s153 + $0x318] sm:$0xf]
                %178 = vst [vmem:[%s154 + $0x2c] sm:$0xf] %v177
                %v179 = vld [vmem:[%s153 + $0x360] sm:$0xf]
                %180 = vst [vmem:[%s154 + $0x30] sm:$0xf] %v179
                %v181 = vld [vmem:[%s153 + $0x3a8] sm:$0xf]
                %182 = vst [vmem:[%s154 + $0x34] sm:$0xf] %v181
                %v183 = vld [vmem:[%s153 + $0x3f0] sm:$0xf]
                %184 = vst [vmem:[%s154 + $0x38] sm:$0xf] %v183
                %v185 = vld [vmem:[%s153 + $0x438] sm:$0xf]
                %186 = vst [vmem:[%s154 + $0x3c] sm:$0xf] %v185
                %v187 = vld [vmem:[%s153 + $0x480] sm:$0xf]
                %188 = vst [vmem:[%s154 + $0x40] sm:$0xf] %v187
                %v189 = vld [vmem:[%s153 + $0x4c8] sm:$0xf]
                %190 = vst [vmem:[%s154 + $0x44] sm:$0xf] %v189
                %v191 = vld [vmem:[%s153 + $0x510] sm:$0xf]
                %192 = vst [vmem:[%s154 + $0x48] sm:$0xf] %v191
                %v193 = vld [vmem:[%s153 + $0x558] sm:$0xf]
                %194 = vst [vmem:[%s154 + $0x4c] sm:$0xf] %v193
                %v195 = vld [vmem:[%s153 + $0x5a0] sm:$0xf]
                %196 = vst [vmem:[%s154 + $0x50] sm:$0xf] %v195
                %v197 = vld [vmem:[%s153 + $0x5e8] sm:$0xf]
                %198 = vst [vmem:[%s154 + $0x54] sm:$0xf] %v197
                %v199 = vld [vmem:[%s153 + $0x630] sm:$0xf]
                %200 = vst [vmem:[%s154 + $0x58] sm:$0xf] %v199
                %v201 = vld [vmem:[%s153 + $0x678] sm:$0xf]
                %202 = vst [vmem:[%s154 + $0x5c] sm:$0xf] %v201
                %v203 = vld [vmem:[%s153 + $0x6c0] sm:$0xf]
                %204 = vst [vmem:[%s154 + $0x60] sm:$0xf] %v203
                %v205 = vld [vmem:[%s153 + $0x708] sm:$0xf]
                %206 = vst [vmem:[%s154 + $0x64] sm:$0xf] %v205
                %v207 = vld [vmem:[%s153 + $0x750] sm:$0xf]
                %208 = vst [vmem:[%s154 + $0x68] sm:$0xf] %v207
                %v209 = vld [vmem:[%s153 + $0x798] sm:$0xf]
                %210 = vst [vmem:[%s154 + $0x6c] sm:$0xf] %v209
                %v211 = vld [vmem:[%s153 + $0x7e0] sm:$0xf]
                %212 = vst [vmem:[%s154 + $0x70] sm:$0xf] %v211
                %v213 = vld [vmem:[%s153 + $0x828] sm:$0xf]
                %214 = vst [vmem:[%s154 + $0x74] sm:$0xf] %v213
                %v215 = vld [vmem:[%s153 + $0x870] sm:$0xf]
                %216 = vst [vmem:[%s154 + $0x78] sm:$0xf] %v215
                %v217 = vld [vmem:[%s153 + $0x8b8] sm:$0xf]
                %218 = vst [vmem:[%s154 + $0x7c] sm:$0xf] %v217
                %v219 = vld [vmem:[%s153 + $0x900] sm:$0xf]
                %220 = vst [vmem:[%s154 + $0x80] sm:$0xf] %v219
                %v221 = vld [vmem:[%s153 + $0x948] sm:$0xf]
                %222 = vst [vmem:[%s154 + $0x84] sm:$0xf] %v221
                %v223 = vld [vmem:[%s153 + $0x990] sm:$0xf]
                %224 = vst [vmem:[%s154 + $0x88] sm:$0xf] %v223
                %v225 = vld [vmem:[%s153 + $0x9d8] sm:$0xf]
                %226 = vst [vmem:[%s154 + $0x8c] sm:$0xf] %v225
              $region41: #{_lambda_.7} parent=35 // loop_footer
                %s152 = sadd.s32 1, %s148
              $region42: #{_lambda_.7} parent=35 // loop_footer_branch
                %147 = sbr.rel target = $region38
              $region43: #{_lambda_.7} parent=35 // loop_exit
                _
            $region36: #{_lambda_.7} parent=27 // pred_fallthru
              _
          $region28: #{_lambda_.7} parent=23 // pred_fallthru
            _
          %318 = vnop
        $region24: #{_lambda_.7} parent=19 // pred_fallthru
          _
      $region20: #{_lambda_.7} parent=5 // pred_fallthru
        _
      %p319 = scmp.le.s32.totalorder 1, %s8
      %p320 = scmp.lt.s32.totalorder %s8, 19
      %p321 = pnand %p319, %p320
      %p322 = pneg %p321
      // Predicated region
      $region62: #{_lambda_.7} parent=5 // pred_check
        _
      $region63: #{_lambda_.7} parent=5 // pred_check_branch
        %324 = sbr.rel (%p321) target = $region65
      $region64: #{_lambda_.7} parent=5 // pred_region
        %s325 = ssub.s32 %s8, 1
        %s326 = sand.u32 %s61, 1
        %s327 = sand.u32 %s61, 1
        %s328 = smul.addr %s327, 144
        %s329 = scalar_lea.vmem [#allocation3], %s328
        // Predicated region
        $region66: #{_lambda_.7} parent=64 // pred_check
          %p330 = pneg %p74
        $region67: #{_lambda_.7} parent=64 // pred_check_branch
          %332 = sbr.rel (%p330) target = $region69
        $region68: #{_lambda_.7} parent=64 // pred_region
          _
        $region69: #{_lambda_.7} parent=64 // pred_fallthru
          _
        %s333 = smul.u32 3, %s18
        %p334 = scmp.lt.s32.totalorder %s333, 2
        %s335 = scalar_select %p334, %s333, 2
        %s336 = smul.addr %s335, 4
        %s337 = scalar_lea.vmem %s0, %s336
        %p338 = pneg %p46
        %p339 = pneg %p43
        %s340 = sand.u32 %s61, 1
        %s341 = sand.u32 %s61, 1
        %s342 = smul.addr %s341, 144
        %s343 = scalar_lea.vmem [#allocation3], %s342
        %p344 = pneg %p74
        %p345 = pneg %p71
        %p346 = pneg %p100
        %p347 = pneg %p97
        %s348 = sand.u32 %s87, 1
        %s349 = sand.u32 %s87, 1
        %s350 = smul.addr %s349, 16
        %s351 = scalar_lea.vmem [#allocation4], %s350
        %s352 = smul.u32 3, %s18
        %p353 = scmp.lt.s32.totalorder %s352, 2
        %s354 = scalar_select %p353, %s352, 2
        %s355 = smul.addr %s354, 4
        %s356 = scalar_lea.vmem %s0, %s355
        %s357 = smul.u32 3, %s18
        %s358 = smul.u32 36, %s18
        %p360 = scmp.eq.s32.totalorder %s18, 0
        // Predicated region
        $region70: #{_lambda_.7} parent=64 // pred_check
          %p361 = pneg %p360
        $region71: #{_lambda_.7} parent=64 // pred_check_branch
          %363 = sbr.rel (%p361) target = $region73
        $region72: #{_lambda_.7} parent=64 // pred_region
          %364 = vst [vmem:[#allocation2] sm:$0xff] 0.0
          %365 = vst [vmem:[#allocation2 + $0x8] sm:$0xf] 0.0
        $region73: #{_lambda_.7} parent=64 // pred_fallthru
          _
        %v366 = vld [vmem:[#allocation2] sm:$0xff]
        %v367 = vld [vmem:[#allocation2 + $0x8] sm:$0xf]
        %v368 = vld [vmem:[%s356] sm:$0xff]
        %v369 = vld [vmem:[%s356 + $0x8] sm:$0xf]
        %v370 = vld [vmem:[%s356 + $0xc] sm:$0x33]
        %v371 = vld [vmem:[%s356 + $0x14] sm:$0x3]
        %v372 = vld [vmem:[%s329] sm:$0xf]
        %v373 = vld [vmem:[%s329 + $0x4] sm:$0xf]
        %v374 = vld [vmem:[%s329 + $0x8] sm:$0xf]
        %v375 = vld [vmem:[%s329 + $0xc] sm:$0xf]
        %v376 = vld [vmem:[%s329 + $0x10] sm:$0xf]
        %v377 = vld [vmem:[%s329 + $0x14] sm:$0xf]
        %v378 = vld [vmem:[%s329 + $0x18] sm:$0xf]
        %v379 = vld [vmem:[%s329 + $0x1c] sm:$0xf]
        %v380 = vld [vmem:[%s329 + $0x20] sm:$0xf]
        %v381 = vld [vmem:[%s329 + $0x24] sm:$0xf]
        %v382 = vld [vmem:[%s329 + $0x28] sm:$0xf]
        %v383 = vld [vmem:[%s329 + $0x2c] sm:$0xf]
        %v384 = vld [vmem:[%s329 + $0x30] sm:$0xf]
        %v385 = vld [vmem:[%s329 + $0x34] sm:$0xf]
        %v386 = vld [vmem:[%s329 + $0x38] sm:$0xf]
        %v387 = vld [vmem:[%s329 + $0x3c] sm:$0xf]
        %v388 = vld [vmem:[%s329 + $0x40] sm:$0xf]
        %v389 = vld [vmem:[%s329 + $0x44] sm:$0xf]
        %v390 = vld [vmem:[%s329 + $0x48] sm:$0xf]
        %v391 = vld [vmem:[%s329 + $0x4c] sm:$0xf]
        %v392 = vld [vmem:[%s329 + $0x50] sm:$0xf]
        %v393 = vld [vmem:[%s329 + $0x54] sm:$0xf]
        %v394 = vld [vmem:[%s329 + $0x58] sm:$0xf]
        %v395 = vld [vmem:[%s329 + $0x5c] sm:$0xf]
        %v396 = vld [vmem:[%s329 + $0x60] sm:$0xf]
        %v397 = vld [vmem:[%s329 + $0x64] sm:$0xf]
        %v398 = vld [vmem:[%s329 + $0x68] sm:$0xf]
        %v399 = vld [vmem:[%s329 + $0x6c] sm:$0xf]
        %v400 = vld [vmem:[%s329 + $0x70] sm:$0xf]
        %v401 = vld [vmem:[%s329 + $0x74] sm:$0xf]
        %v402 = vld [vmem:[%s329 + $0x78] sm:$0xf]
        %v403 = vld [vmem:[%s329 + $0x7c] sm:$0xf]
        %v404 = vld [vmem:[%s329 + $0x80] sm:$0xf]
        %v405 = vld [vmem:[%s329 + $0x84] sm:$0xf]
        %v406 = vld [vmem:[%s329 + $0x88] sm:$0xf]
        %v407 = vld [vmem:[%s329 + $0x8c] sm:$0xf]
        %v412 = vunpack.c.l.b16 %v368
        %v413 = vunpack.c.h.b16 %v368
        %v414 = vunpack.c.l.b16 %v369
        %v415 = vunpack.c.l.b16 %v370
        %v416 = vunpack.c.h.b16 %v370
        %v417 = vunpack.c.l.b16 %v371
        %v418 = vpack.c.b16 %v415, %v412
        %v419 = vpack.c.b16 %v416, %v413
        %v420 = vpack.c.b16 %v417, %v414
        %v459 = vunpack.c.l.b16 %v372
        %v460 = vunpack.c.l.b16 %v373
        %v461 = vunpack.c.l.b16 %v374
        %v462 = vunpack.c.l.b16 %v375
        %v463 = vunpack.c.l.b16 %v376
        %v464 = vunpack.c.l.b16 %v377
        %v465 = vunpack.c.l.b16 %v378
        %v466 = vunpack.c.l.b16 %v379
        %v467 = vunpack.c.l.b16 %v380
        %v468 = vunpack.c.l.b16 %v381
        %v469 = vunpack.c.l.b16 %v382
        %v470 = vunpack.c.l.b16 %v383
        %v471 = vunpack.c.l.b16 %v384
        %v472 = vunpack.c.l.b16 %v385
        %v473 = vunpack.c.l.b16 %v386
        %v474 = vunpack.c.l.b16 %v387
        %v475 = vunpack.c.l.b16 %v388
        %v476 = vunpack.c.l.b16 %v389
        %v477 = vunpack.c.l.b16 %v390
        %v478 = vunpack.c.l.b16 %v391
        %v479 = vunpack.c.l.b16 %v392
        %v480 = vunpack.c.l.b16 %v393
        %v481 = vunpack.c.l.b16 %v394
        %v482 = vunpack.c.l.b16 %v395
        %v483 = vunpack.c.l.b16 %v396
        %v484 = vunpack.c.l.b16 %v397
        %v485 = vunpack.c.l.b16 %v398
        %v486 = vunpack.c.l.b16 %v399
        %v487 = vunpack.c.l.b16 %v400
        %v488 = vunpack.c.l.b16 %v401
        %v489 = vunpack.c.l.b16 %v402
        %v490 = vunpack.c.l.b16 %v403
        %v491 = vunpack.c.l.b16 %v404
        %v492 = vunpack.c.l.b16 %v405
        %v493 = vunpack.c.l.b16 %v406
        %v494 = vunpack.c.l.b16 %v407
        %v495 = vpack.c.b16 %v460, %v459
        %v496 = vpack.c.b16 %v462, %v461
        %v497 = vpack.c.b16 %v464, %v463
        %v498 = vpack.c.b16 %v466, %v465
        %v499 = vpack.c.b16 %v468, %v467
        %v500 = vpack.c.b16 %v470, %v469
        %v501 = vpack.c.b16 %v472, %v471
        %v502 = vpack.c.b16 %v474, %v473
        %v503 = vpack.c.b16 %v476, %v475
        %v504 = vpack.c.b16 %v478, %v477
        %v505 = vpack.c.b16 %v480, %v479
        %v506 = vpack.c.b16 %v482, %v481
        %v507 = vpack.c.b16 %v484, %v483
        %v508 = vpack.c.b16 %v486, %v485
        %v509 = vpack.c.b16 %v488, %v487
        %v510 = vpack.c.b16 %v490, %v489
        %v511 = vpack.c.b16 %v492, %v491
        %v512 = vpack.c.b16 %v494, %v493
        %vm531 = vcmask 261120
        %v533 = vsel %vm531, %v420, 0
        %535 = vmatprep.subr.bf16.mxu0 0
        %536 = vmatpush1.bf16.msra.mxu0 %v495
        %537 = vmatprep.subr.bf16.mxu0 0
        %538 = vmatpush1.bf16.msra.mxu0 %v496
        %539 = vmatprep.subr.bf16.mxu0 0
        %540 = vmatpush1.bf16.msra.mxu0 %v497
        %541 = vmatprep.subr.bf16.mxu0 0
        %542 = vmatpush1.bf16.msra.mxu0 %v498
        %543 = vmatprep.subr.bf16.mxu0 0
        %544 = vmatpush1.bf16.msra.mxu0 %v499
        %545 = vmatprep.subr.bf16.mxu0 0
        %546 = vmatpush1.bf16.msra.mxu0 %v500
        %547 = vmatprep.subr.bf16.mxu0 0
        %548 = vmatpush1.bf16.msra.mxu0 %v501
        %549 = vmatprep.subr.bf16.mxu0 0
        %550 = vmatpush1.bf16.msra.mxu0 %v502
        %551 = vmatprep.subr.bf16.mxu0 0
        %552 = vmatpush1.bf16.msra.mxu0 %v503
        %553 = vmatprep.subr.bf16.mxu0 0
        %554 = vmatpush1.bf16.msra.mxu0 %v504
        %555 = vmatprep.subr.bf16.mxu0 0
        %556 = vmatpush1.bf16.msra.mxu0 %v505
        %557 = vmatprep.subr.bf16.mxu0 0
        %558 = vmatpush1.bf16.msra.mxu0 %v506
        %559 = vmatprep.subr.bf16.mxu0 0
        %560 = vmatpush1.bf16.msra.mxu0 %v507
        %561 = vmatprep.subr.bf16.mxu0 0
        %562 = vmatpush1.bf16.msra.mxu0 %v508
        %563 = vmatprep.subr.bf16.mxu0 0
        %564 = vmatpush1.bf16.msra.mxu0 %v509
        %565 = vmatprep.subr.bf16.mxu0 0
        %566 = vmatpush1.bf16.msra.mxu0 %v510
        %567 = vmatprep.mubr.bf16.mxu0 %v419
        %568 = vmatmul.mubr.bf16.gmra.mrb[0].mxu0 %v418
        %v569 = vpop.f32.mrb[0].mxu0
        %v570 = vadd.f32 0.0, %v569
        %v571 = vpop.f32.mrb[0].mxu0
        %v572 = vpop.f32.mrb[0].mxu0
        %v573 = vadd.f32 0.0, %v572
        %v574 = vpop.f32.mrb[0].mxu0
        %575 = vdwg.mxu0
        %576 = vmatprep.subr.bf16.mxu0 0
        %577 = vmatpush1.bf16.msra.mxu0 %v511
        %578 = vmatprep.subr.bf16.mxu0 0
        %579 = vmatpush1.bf16.msra.mxu0 %v512
        %580 = vmatprep.subr.bf16.mxu0 0
        %581 = vmatpush1.bf16.msra.mxu0 0
        %582 = vmatprep.subr.bf16.mxu0 0
        %583 = vmatpush1.bf16.msra.mxu0 0
        %584 = vmatprep.subr.bf16.mxu0 0
        %585 = vmatpush1.bf16.msra.mxu0 0
        %586 = vmatprep.subr.bf16.mxu0 0
        %587 = vmatpush1.bf16.msra.mxu0 0
        %588 = vmatprep.subr.bf16.mxu0 0
        %589 = vmatpush1.bf16.msra.mxu0 0
        %590 = vmatprep.subr.bf16.mxu0 0
        %591 = vmatpush1.bf16.msra.mxu0 0
        %592 = vmatprep.subr.bf16.mxu0 0
        %593 = vmatpush1.bf16.msra.mxu0 0
        %594 = vmatprep.subr.bf16.mxu0 0
        %595 = vmatpush1.bf16.msra.mxu0 0
        %596 = vmatprep.subr.bf16.mxu0 0
        %597 = vmatpush1.bf16.msra.mxu0 0
        %598 = vmatprep.subr.bf16.mxu0 0
        %599 = vmatpush1.bf16.msra.mxu0 0
        %600 = vmatprep.subr.bf16.mxu0 0
        %601 = vmatpush1.bf16.msra.mxu0 0
        %602 = vmatprep.subr.bf16.mxu0 0
        %603 = vmatpush1.bf16.msra.mxu0 0
        %604 = vmatprep.subr.bf16.mxu0 0
        %605 = vmatpush1.bf16.msra.mxu0 0
        %606 = vmatprep.subr.bf16.mxu0 0
        %607 = vmatpush1.bf16.msra.mxu0 0
        %608 = vmatprep.mubr.bf16.mxu0 0
        %609 = vmatmul.mubr.bf16.gmra.mrb[0].mxu0 %v533
        %v610 = vpop.f32.mrb[0].mxu0
        %v611 = vadd.f32 %v570, %v610
        %v612 = vpop.f32.mrb[0].mxu0
        %v613 = vpop.f32.mrb[0].mxu0
        %v614 = vadd.f32 %v573, %v613
        %v615 = vpop.f32.mrb[0].mxu0
        %616 = vdwg.mxu0
        %v617 = vadd.f32 %v366, %v611
        %v618 = vadd.f32 %v367, %v614
        %619 = vst [vmem:[#allocation2] sm:$0xff] %v617
        %620 = vst [vmem:[#allocation2 + $0x8] sm:$0xf] %v618
        // Predicated region
        $region74: #{_lambda_.7} parent=64 // pred_check
          %p621 = pneg %p360
        $region75: #{_lambda_.7} parent=64 // pred_check_branch
          %623 = sbr.rel (%p621) target = $region77
        $region76: #{_lambda_.7} parent=64 // pred_region
          %v624 = vld [vmem:[#allocation2] sm:$0xff]
          %v625 = vld [vmem:[#allocation2 + $0x8] sm:$0xf]
          %626 = vst [vmem:[%s351] sm:$0xff] %v624
          %627 = vst [vmem:[%s351 + $0x8] sm:$0xf] %v625
        $region77: #{_lambda_.7} parent=64 // pred_fallthru
          _
        %s628 = sand.u32 %s87, 1
        %s629 = sand.u32 %s87, 1
        %s630 = smul.addr %s629, 16
        %s631 = scalar_lea.vmem [#allocation4], %s630
        // Predicated region
        $region78: #{_lambda_.7} parent=64 // pred_check
          %p632 = pneg %p97
        $region79: #{_lambda_.7} parent=64 // pred_check_branch
          %634 = sbr.rel (%p632) target = $region81
        $region80: #{_lambda_.7} parent=64 // pred_region
          %s635 = smul.addr %s17, 8
          %s636 = scalar_lea.vmem %s2, %s635
          // Predicated region
          $region82: #{_lambda_.7} parent=80 // pred_check
            _
          $region83: #{_lambda_.7} parent=80 // pred_check_branch
            %638 = sbr.rel (0) target = $region85
          $region84: #{_lambda_.7} parent=80 // pred_region
            // Predicated region
            $region86: #{_lambda_.7} parent=84 // pred_check
              _
            $region87: #{_lambda_.7} parent=84 // pred_check_branch
              %640 = sbr.rel (0) target = $region89
            $region88: #{_lambda_.7} parent=84 // pred_region
              // Predicated region
              $region101: #{_lambda_.7} parent=88 // pred_check
                _
              $region102: #{_lambda_.7} parent=88 // pred_check_branch
                %657 = sbr.rel (0) target = $region104
              $region103: #{_lambda_.7} parent=88 // pred_region
                loop: start=0, step=1, limit=1
                $region105: #{_lambda_.7} parent=103 // loop_pre_header
                  _
                $region106: #{_lambda_.7} parent=103 // loop_header
                  %s659 = sphi 0, %s663
                  %p660 = scmp.ge.s32.totalorder %s659, 1
                  %s664 = sphi %s631, %s631
                  %s665 = sphi %s636, %s636
                $region107: #{_lambda_.7} parent=103 // loop_header_branch
                  %662 = sbr.rel (%p660) target = $region111
                $region108: #{_lambda_.7} parent=103 // loop_body
                  %v666 = vld [vmem:[%s664] sm:$0xff]
                  %667 = vst [vmem:[%s665] sm:$0xff] %v666
                  %v668 = vld [vmem:[%s664 + $0x8] sm:$0xff]
                  %669 = vst [vmem:[%s665 + $0x90] sm:$0xff] %v668
                $region109: #{_lambda_.7} parent=103 // loop_footer
                  %s663 = sadd.s32 1, %s659
                $region110: #{_lambda_.7} parent=103 // loop_footer_branch
                  %658 = sbr.rel target = $region106
                $region111: #{_lambda_.7} parent=103 // loop_exit
                  _
              $region104: #{_lambda_.7} parent=88 // pred_fallthru
                _
              // Predicated region
              $region112: #{_lambda_.7} parent=88 // pred_check
                _
              $region113: #{_lambda_.7} parent=88 // pred_check_branch
                %671 = sbr.rel target = $region115
              $region114: #{_lambda_.7} parent=88 // pred_region
                _
              $region115: #{_lambda_.7} parent=88 // pred_fallthru
                _
            $region89: #{_lambda_.7} parent=84 // pred_fallthru
              _
            // Predicated region
            $region90: #{_lambda_.7} parent=84 // pred_check
              _
            $region91: #{_lambda_.7} parent=84 // pred_check_branch
              %642 = sbr.rel target = $region93
            $region92: #{_lambda_.7} parent=84 // pred_region
              loop: start=0, step=1, limit=1
              $region94: #{_lambda_.7} parent=92 // loop_pre_header
                _
              $region95: #{_lambda_.7} parent=92 // loop_header
                %s645 = sphi 0, %s649
                %p646 = scmp.ge.s32.totalorder %s645, 1
                %s650 = sphi %s631, %s631
                %s651 = sphi %s636, %s636
              $region96: #{_lambda_.7} parent=92 // loop_header_branch
                %648 = sbr.rel (%p646) target = $region100
              $region97: #{_lambda_.7} parent=92 // loop_body
                %v652 = vld [vmem:[%s650] sm:$0xff]
                %653 = vst [vmem:[%s651] sm:$0xff] %v652
                %v654 = vld [vmem:[%s650 + $0x8] sm:$0xff]
                %655 = vst [vmem:[%s651 + $0x90] sm:$0xff] %v654
              $region98: #{_lambda_.7} parent=92 // loop_footer
                %s649 = sadd.s32 1, %s645
              $region99: #{_lambda_.7} parent=92 // loop_footer_branch
                %644 = sbr.rel target = $region95
              $region100: #{_lambda_.7} parent=92 // loop_exit
                _
            $region93: #{_lambda_.7} parent=84 // pred_fallthru
              _
          $region85: #{_lambda_.7} parent=80 // pred_fallthru
            _
          %672 = vnop
        $region81: #{_lambda_.7} parent=64 // pred_fallthru
          _
      $region65: #{_lambda_.7} parent=5 // pred_fallthru
        _
      %p673 = scmp.le.s32.totalorder 2, %s8
      // Predicated region
      $region116: #{_lambda_.7} parent=5 // pred_check
        %p674 = pneg %p673
      $region117: #{_lambda_.7} parent=5 // pred_check_branch
        %676 = sbr.rel (%p674) target = $region119
      $region118: #{_lambda_.7} parent=5 // pred_region
        %s677 = ssub.s32 %s8, 2
        // Predicated region
        $region120: #{_lambda_.7} parent=118 // pred_check
          %p678 = pneg %p103
        $region121: #{_lambda_.7} parent=118 // pred_check_branch
          %680 = sbr.rel (%p678) target = $region123
        $region122: #{_lambda_.7} parent=118 // pred_region
          %s681 = sand.u32 %s88, 1
          %s682 = sand.u32 %s88, 1
          %s683 = smul.addr %s682, 16
          %s684 = scalar_lea.vmem [#allocation4], %s683
        $region123: #{_lambda_.7} parent=118 // pred_fallthru
          _
      $region119: #{_lambda_.7} parent=5 // pred_fallthru
        _
    $region6: #{_lambda_.7} parent=1 // loop_footer
      %s12 = sadd.s32 1, %s8
    $region7: #{_lambda_.7} parent=1 // loop_footer_branch
      %7 = sbr.rel target = $region3
    $region8: #{_lambda_.7} parent=1 // loop_exit
      _

</llo_original>
